<compile_context>
chip_gen: v5e
topology: v5e:2x2
jax: 0.10.0
libtpu: 0.0.40
codegen_flags: <defaults>
</compile_context>

<pallas_src>
import functools
import math

import jax
import jax.numpy as jnp
import numpy as np
from jax.experimental import pallas as pl
from jax.experimental.pallas import tpu as pltpu


# ------------------------------ Pallas kernel -------------------------------

def _autoint_kernel(emb_ref, linfc_ref, projw_ref, projb_ref,
                    ipw_ref, ipb_ref, opw_ref, opb_ref,
                    afw_ref, w1_ref, b1_ref, w2_ref, b2_ref, w3_ref, cb_ref,
                    out_ref, *, num_layers, num_heads, head_dim, num_fields,
                    b_tile):
    f32 = jnp.float32
    dn = (((1,), (1,)), ((), ()))            # x @ W^T for PyTorch (out,in) weights
    bdn_qk = (((2,), (2,)), ((0,), (0,)))    # (BT,F,dh) x (BT,F,dh) -> (BT,F,F)
    bdn_pv = (((2,), (1,)), ((0,), (0,)))    # (BT,F,F) x (BT,F,dh) -> (BT,F,dh)

    L, H, dh, F_, BT = num_layers, num_heads, head_dim, num_fields, b_tile
    A = H * dh
    M = BT * F_

    def lin_t(x, w, b=None):
        y = jax.lax.dot_general(x, w, dn, preferred_element_type=f32)
        return y if b is None else y + b

    emb = emb_ref[...]                               # (BT, F, E)
    emb2 = emb.reshape(M, emb.shape[-1])             # (BT*F, E) — free leading merge

    # ---------------- attention branch ----------------
    cross = lin_t(emb2, projw_ref[0], projb_ref[0])  # atten_embedding   (M, A)

    for l in range(L):
        acc = opb_ref[l]                             # (1, A) — broadcasts on first add
        for h in range(H):
            base = (l * 3) * H + h                   # q slab index
            q2 = lin_t(cross, ipw_ref[base],         ipb_ref[base])          # (M, dh)
            k2 = lin_t(cross, ipw_ref[base + H],     ipb_ref[base + H])      # (M, dh)
            v2 = lin_t(cross, ipw_ref[base + 2 * H], ipb_ref[base + 2 * H])  # (M, dh)
            q3 = q2.reshape(BT, F_, dh)
            k3 = k2.reshape(BT, F_, dh)
            v3 = v2.reshape(BT, F_, dh)
            s = jax.lax.dot_general(q3, k3, bdn_qk, preferred_element_type=f32)
            s = s - jnp.max(s, axis=-1, keepdims=True)
            e = jnp.exp(s)
            p = e * pl.reciprocal(jnp.sum(e, axis=-1, keepdims=True), approx=True)
            ctx = jax.lax.dot_general(p, v3, bdn_pv, preferred_element_type=f32)
            # accumulate this head's out_proj contribution (no lane concat)
            acc = acc + lin_t(ctx.reshape(M, dh), opw_ref[l * H + h])
        cross = acc                                  # (M, A)

    v_res = lin_t(emb2, projw_ref[1], projb_ref[1])  # V_res_embedding   (M, A)
    act = jnp.maximum(cross + v_res, 0.0).reshape(BT, F_, A)

    ones_f = jnp.ones((1, F_), f32)

    # attn_fc: sum_{f,a} act * afw, emitted as a lane-dense (1, BT) row
    attn_rows = jnp.sum(act * afw_ref[...][None, :, :], axis=2)            # (BT, F)
    attn_row = jax.lax.dot_general(ones_f, attn_rows, dn,
                                   preferred_element_type=f32)             # (1, BT)

    # FeaturesLinear: sum over fields of the gathered per-field weights
    lin_row = jax.lax.dot_general(ones_f, linfc_ref[...], dn,
                                  preferred_element_type=f32)              # (1, BT)

    # ---------------- MLP branch (BatchNorm folded into w1/b1, w2/b2) -------
    h1 = b1_ref[...]                                                       # (1, M1)
    for f in range(F_):
        h1 = h1 + lin_t(emb_ref[:, f, :], w1_ref[f])                       # (BT, M1)
    h1 = jnp.maximum(h1, 0.0)
    h2 = jnp.maximum(lin_t(h1, w2_ref[...], b2_ref[...]), 0.0)             # (BT, M2)
    mlp_row = jax.lax.dot_general(w3_ref[...], h2, dn,
                                  preferred_element_type=f32)              # (1, BT)

    logit = lin_row + attn_row + mlp_row + cb_ref[...]                     # (1, BT)

    # numerically stable sigmoid
    z = jnp.exp(-jnp.abs(logit))
    pos = 1.0 / (1.0 + z)
    out_ref[...] = jnp.where(logit >= 0.0, pos, 1.0 - pos)


# ----------------------------- Pallas wrapper --------------------------------

def autoint_forward_pallas(x_idx, params, field_dims, embed_dim, atten_embed_dim,
                           num_heads, num_layers, mlp_dims, bn_eps=1e-5,
                           b_tile=128):
    F_ = len(field_dims)
    B = int(x_idx.shape[0])
    E, A, L, H = embed_dim, atten_embed_dim, num_layers, num_heads
    dh = A // H
    M1, M2 = mlp_dims

    b_tile = max(1, min(b_tile, B))
    nb = -(-B // b_tile)
    B_pad = nb * b_tile

    offsets = jnp.asarray(np.concatenate(([0], np.cumsum(field_dims)[:-1])), jnp.int32)
    idx = x_idx.astype(jnp.int32) + offsets[None, :]                  # (B, F)

    # Embedding gathers (data-dependent) stay outside the kernel.
    embed_x = jnp.take(params["emb_table"], idx, axis=0)              # (B, F, E)
    lin_fc = jnp.take(params["lin_table"], idx, axis=0)               # (B, F)
    if B_pad != B:
        embed_x = jnp.pad(embed_x, ((0, B_pad - B), (0, 0), (0, 0)))
        lin_fc = jnp.pad(lin_fc, ((0, B_pad - B), (0, 0)))

    inv_scale = 1.0 / math.sqrt(dh)

    # atten_embedding / V_res stacked on a leading axis
    proj_w = jnp.stack([params["aew"], params["vrw"]], axis=0)        # (2, A, E)
    proj_b = jnp.stack([params["aeb"], params["vrb"]], axis=0).reshape(2, 1, A)

    # per-head in_proj slabs, q-scale folded into weight AND bias
    ipw = params["ipw"].reshape(L, 3, H, dh, A)
    ipw = ipw.at[:, 0].multiply(inv_scale)
    ipw = ipw.reshape(L * 3 * H, dh, A)
    ipb = params["ipb"].reshape(L, 3, H, dh)
    ipb = ipb.at[:, 0].multiply(inv_scale)
    ipb = ipb.reshape(L * 3 * H, 1, dh)

    # per-head out_proj slabs (columns of out_proj.weight per head)
    opw = params["opw"].reshape(L, A, H, dh).transpose(0, 2, 1, 3).reshape(L * H, A, dh)
    opb = params["opb"].reshape(L, 1, A)

    afw = params["afw"].reshape(F_, A)

    # Inference-time BatchNorm folding into the preceding Linear.
    def bn_fold(w, b, g, beta, m, v):
        s = g / jnp.sqrt(v + bn_eps)
        return w * s[:, None], (b - m) * s + beta

    w1f, b1f = bn_fold(params["w1"], params["b1"], params["bn1_g"],
                       params["bn1_b"], params["bn1_m"], params["bn1_v"])
    w2f, b2f = bn_fold(params["w2"], params["b2"], params["bn2_g"],
                       params["bn2_b"], params["bn2_m"], params["bn2_v"])
    w1r = w1f.reshape(M1, F_, E).transpose(1, 0, 2)                   # (F, M1, E)
    b1r = b1f.reshape(1, M1)
    b2r = b2f.reshape(1, M2)
    w3 = params["w3"].reshape(1, M2)
    cbias = (params["b3"].reshape(()) + params["afb"].reshape(())
             + params["lin_bias"].reshape(())).reshape(1, 1)

    kernel = functools.partial(_autoint_kernel, num_layers=L, num_heads=H,
                               head_dim=dh, num_fields=F_, b_tile=b_tile)

    def wspec(shape):  # full-array block, same for every grid point
        nd = len(shape)
        return pl.BlockSpec(shape, lambda i, _nd=nd: (0,) * _nd)

    in_specs = [
        pl.BlockSpec((b_tile, F_, E), lambda i: (i, 0, 0)),           # embed_x
        pl.BlockSpec((b_tile, F_), lambda i: (i, 0)),                 # gathered linear
        wspec((2, A, E)), wspec((2, 1, A)),                           # atten/V_res
        wspec((L * 3 * H, dh, A)), wspec((L * 3 * H, 1, dh)),         # in_proj slabs
        wspec((L * H, A, dh)), wspec((L, 1, A)),                      # out_proj slabs
        wspec((F_, A)),                                               # attn_fc
        wspec((F_, M1, E)), wspec((1, M1)),                           # MLP-1 (BN folded)
        wspec((M2, M1)), wspec((1, M2)),                              # MLP-2 (BN folded)
        wspec((1, M2)), wspec((1, 1)),                                # MLP out, scalar
    ]

    per_sample_flops = (2 * 2 * F_ * E * A
                        + L * (2 * F_ * A * 3 * A
                               + H * 2 * (2 * F_ * F_ * dh)
                               + 2 * F_ * dh * A * H)
                        + 2 * F_ * A
                        + 2 * F_ * E * M1 + 2 * M1 * M2 + 2 * M2
                        + 2 * F_)
    weight_bytes = 4 * int(sum(int(a.size) for a in
                               (proj_w, proj_b, ipw, ipb, opw, opb, afw,
                                w1r, b1r, w2f, b2r, w3, cbias)))
    cost = pl.CostEstimate(
        flops=int(B_pad * per_sample_flops),
        transcendentals=int(B_pad * (L * H * F_ * F_ + 1)),
        bytes_accessed=4 * int(embed_x.size + lin_fc.size) + weight_bytes + 4 * B_pad)

    out = pl.pallas_call(
        kernel,
        out_shape=jax.ShapeDtypeStruct((nb, 1, b_tile), jnp.float32),
        grid=(nb,),
        in_specs=in_specs,
        out_specs=pl.BlockSpec((None, 1, b_tile), lambda i: (i, 0, 0)),
        compiler_params=pltpu.CompilerParams(
            dimension_semantics=("parallel",),
            vmem_limit_bytes=32 * 1024 * 1024),
        cost_estimate=cost,
    )(embed_x, lin_fc, proj_w, proj_b, ipw, ipb, opw, opb, afw,
      w1r, b1r, w2f, b2r, w3, cbias)

    return out.reshape(nb * b_tile)[:B]


# --------------------------- reference (pure JAX) -----------------------------

def autoint_forward_ref(x_idx, params, field_dims, embed_dim, atten_embed_dim,
                        num_heads, num_layers, mlp_dims, bn_eps=1e-5):
    F_ = len(field_dims)
    B = x_idx.shape[0]
    E, A, H, L = embed_dim, atten_embed_dim, num_heads, num_layers
    dh = A // H
    offsets = jnp.asarray(np.concatenate(([0], np.cumsum(field_dims)[:-1])), jnp.int32)
    idx = x_idx.astype(jnp.int32) + offsets[None, :]

    embed_x = params["emb_table"][idx]                                    # (B, F, E)

    atten_x = jnp.einsum("bfe,ae->bfa", embed_x, params["aew"]) + params["aeb"]
    cross = jnp.transpose(atten_x, (1, 0, 2))                             # (F, B, A)
    for l in range(L):
        qkv = jnp.einsum("fba,ca->fbc", cross, params["ipw"][l]) + params["ipb"][l]
        q, k, v = qkv[..., :A], qkv[..., A:2 * A], qkv[..., 2 * A:]
        to_heads = lambda t: jnp.transpose(t.reshape(F_, B * H, dh), (1, 0, 2))
        qh = to_heads(q) / math.sqrt(dh)
        kh, vh = to_heads(k), to_heads(v)
        s = jnp.einsum("nfd,ngd->nfg", qh, kh)
        p = jax.nn.softmax(s, axis=-1)
        o = jnp.einsum("nfg,ngd->nfd", p, vh)
        o = jnp.transpose(o, (1, 0, 2)).reshape(F_, B, A)
        cross = jnp.einsum("fba,ca->fbc", o, params["opw"][l]) + params["opb"][l]
    cross = jnp.transpose(cross, (1, 0, 2))                               # (B, F, A)
    v_res = jnp.einsum("bfe,ae->bfa", embed_x, params["vrw"]) + params["vrb"]
    cross = jax.nn.relu(cross + v_res).reshape(B, F_ * A)

    lin_part = jnp.sum(params["lin_table"][idx], axis=1, keepdims=True) + params["lin_bias"]
    attn_part = cross @ params["afw"].T + params["afb"]

    h = embed_x.reshape(B, F_ * E)
    h = h @ params["w1"].T + params["b1"]
    h = (h - params["bn1_m"]) / jnp.sqrt(params["bn1_v"] + bn_eps) * params["bn1_g"] + params["bn1_b"]
    h = jax.nn.relu(h)
    h = h @ params["w2"].T + params["b2"]
    h = (h - params["bn2_m"]) / jnp.sqrt(params["bn2_v"] + bn_eps) * params["bn2_g"] + params["bn2_b"]
    h = jax.nn.relu(h)
    mlp_part = h @ params["w3"].T + params["b3"]

    logit = lin_part + attn_part + mlp_part                               # (B, 1)
    return jax.nn.sigmoid(logit[:, 0])


# ---------------------------------- main --------------------------------------

if __name__ == "__main__":
    field_dims = (8, 6, 4, 10, 5, 7, 3, 9)   # num_fields = 8
    B = 4
    embed_dim = 16
    atten_embed_dim = 32
    num_heads = 4
    num_layers = 2
    mlp_dims = (64, 32)

    F_ = len(field_dims)
    E, A, L = embed_dim, atten_embed_dim, num_layers
    M1, M2 = mlp_dims
    S = int(sum(field_dims))

    key = jax.random.PRNGKey(0)
    ks = jax.random.split(key, 24)

    def u(k, shape, fan_in):
        b = 1.0 / math.sqrt(fan_in)
        return jax.random.uniform(k, shape, jnp.float32, -b, b)

    params = {
        "emb_table": 0.1 * jax.random.normal(ks[0], (S, E), jnp.float32),
        "lin_table": 0.1 * jax.random.normal(ks[1], (S,), jnp.float32),
        "lin_bias": jnp.zeros((1,), jnp.float32),
        "aew": u(ks[2], (A, E), E), "aeb": u(ks[3], (A,), E),
        "ipw": u(ks[4], (L, 3 * A, A), A), "ipb": u(ks[5], (L, 3 * A), A),
        "opw": u(ks[6], (L, A, A), A), "opb": u(ks[7], (L, A), A),
        "vrw": u(ks[8], (A, E), E), "vrb": u(ks[9], (A,), E),
        "afw": u(ks[10], (1, F_ * A), F_ * A), "afb": u(ks[11], (1,), F_ * A),
        "w1": u(ks[12], (M1, F_ * E), F_ * E), "b1": u(ks[13], (M1,), F_ * E),
        "bn1_g": jnp.ones((M1,), jnp.float32), "bn1_b": jnp.zeros((M1,), jnp.float32),
        "bn1_m": jnp.zeros((M1,), jnp.float32), "bn1_v": jnp.ones((M1,), jnp.float32),
        "w2": u(ks[14], (M2, M1), M1), "b2": u(ks[15], (M2,), M1),
        "bn2_g": jnp.ones((M2,), jnp.float32), "bn2_b": jnp.zeros((M2,), jnp.float32),
        "bn2_m": jnp.zeros((M2,), jnp.float32), "bn2_v": jnp.ones((M2,), jnp.float32),
        "w3": u(ks[16], (1, M2), M2), "b3": u(ks[17], (1,), M2),
    }

    fd = jnp.asarray(field_dims, jnp.int32)
    x_idx = jax.random.randint(ks[18], (B, F_), 0, 1_000_000, dtype=jnp.int32) % fd[None, :]

    out = autoint_forward_pallas(x_idx, params, field_dims, embed_dim,
                                 atten_embed_dim, num_heads, num_layers, mlp_dims)
    out = jax.block_until_ready(out)

    ref = jax.block_until_ready(
        autoint_forward_ref(x_idx, params, field_dims, embed_dim,
                            atten_embed_dim, num_heads, num_layers, mlp_dims))

    assert out.shape == (B,)
    np.testing.assert_allclose(np.asarray(out), np.asarray(ref), rtol=1e-2, atol=1e-2)
    print("KERNEL_OK")
</pallas_src>

<mosaic_0001>
module attributes {stable_mosaic.version = 11 : i64} {
  func.func @_autoint_kernel(%arg0: i32, %arg1: memref<4x8x16xf32, #tpu.memory_space<vmem>>, %arg2: memref<4x8xf32, #tpu.memory_space<vmem>>, %arg3: memref<2x32x16xf32, #tpu.memory_space<vmem>>, %arg4: memref<2x1x32xf32, #tpu.memory_space<vmem>>, %arg5: memref<24x8x32xf32, #tpu.memory_space<vmem>>, %arg6: memref<24x1x8xf32, #tpu.memory_space<vmem>>, %arg7: memref<8x32x8xf32, #tpu.memory_space<vmem>>, %arg8: memref<2x1x32xf32, #tpu.memory_space<vmem>>, %arg9: memref<8x32xf32, #tpu.memory_space<vmem>>, %arg10: memref<8x64x16xf32, #tpu.memory_space<vmem>>, %arg11: memref<1x64xf32, #tpu.memory_space<vmem>>, %arg12: memref<32x64xf32, #tpu.memory_space<vmem>>, %arg13: memref<1x32xf32, #tpu.memory_space<vmem>>, %arg14: memref<1x32xf32, #tpu.memory_space<vmem>>, %arg15: memref<1x1xf32, #tpu.memory_space<vmem>>, %arg16: memref<1x1x4xf32, #tpu.memory_space<vmem>>) attributes {dimension_semantics = [#tpu.dimension_semantics<parallel>], iteration_bounds = array<i64: 1>, scalar_prefetch = 0 : i64, scratch_operands = 0 : i64, tpu.core_type = #tpu.core_type<tc>, window_params = [{transform_indices = @transform_0, window_bounds = array<i64: 4, 8, 16>}, {transform_indices = @transform_1, window_bounds = array<i64: 4, 8>}, {pipeline_mode = #tpu.pipeline_mode<synchronous>, transform_indices = @transform_2, window_bounds = array<i64: 2, 32, 16>}, {pipeline_mode = #tpu.pipeline_mode<synchronous>, transform_indices = @transform_3, window_bounds = array<i64: 2, 1, 32>}, {pipeline_mode = #tpu.pipeline_mode<synchronous>, transform_indices = @transform_4, window_bounds = array<i64: 24, 8, 32>}, {pipeline_mode = #tpu.pipeline_mode<synchronous>, transform_indices = @transform_5, window_bounds = array<i64: 24, 1, 8>}, {pipeline_mode = #tpu.pipeline_mode<synchronous>, transform_indices = @transform_6, window_bounds = array<i64: 8, 32, 8>}, {pipeline_mode = #tpu.pipeline_mode<synchronous>, transform_indices = @transform_7, window_bounds = array<i64: 2, 1, 32>}, {pipeline_mode = #tpu.pipeline_mode<synchronous>, transform_indices = @transform_8, window_bounds = array<i64: 8, 32>}, {pipeline_mode = #tpu.pipeline_mode<synchronous>, transform_indices = @transform_9, window_bounds = array<i64: 8, 64, 16>}, {pipeline_mode = #tpu.pipeline_mode<synchronous>, transform_indices = @transform_10, window_bounds = array<i64: 1, 64>}, {pipeline_mode = #tpu.pipeline_mode<synchronous>, transform_indices = @transform_11, window_bounds = array<i64: 32, 64>}, {pipeline_mode = #tpu.pipeline_mode<synchronous>, transform_indices = @transform_12, window_bounds = array<i64: 1, 32>}, {pipeline_mode = #tpu.pipeline_mode<synchronous>, transform_indices = @transform_13, window_bounds = array<i64: 1, 32>}, {pipeline_mode = #tpu.pipeline_mode<synchronous>, transform_indices = @transform_14, window_bounds = array<i64: 1, 1>}, {transform_indices = @transform_15, window_bounds = array<i64: 1, 1, 4>}]} {
    %c0 = arith.constant 0 : index
    %c0_0 = arith.constant 0 : index
    %c0_1 = arith.constant 0 : index
    %0 = vector.load %arg1[%c0, %c0_0, %c0_1] : memref<4x8x16xf32, #tpu.memory_space<vmem>>, vector<4x8x16xf32>
    %1 = vector.shape_cast %0 : vector<4x8x16xf32> to vector<32x16xf32>
    %c0_2 = arith.constant 0 : index
    %c0_3 = arith.constant 0 : index
    %c0_4 = arith.constant 0 : index
    %2 = vector.load %arg3[%c0_2, %c0_3, %c0_4] : memref<2x32x16xf32, #tpu.memory_space<vmem>>, vector<1x32x16xf32>
    %3 = vector.shape_cast %2 : vector<1x32x16xf32> to vector<32x16xf32>
    %c0_5 = arith.constant 0 : index
    %c0_6 = arith.constant 0 : index
    %c0_7 = arith.constant 0 : index
    %4 = vector.load %arg4[%c0_5, %c0_6, %c0_7] : memref<2x1x32xf32, #tpu.memory_space<vmem>>, vector<1x1x32xf32>
    %5 = vector.shape_cast %4 : vector<1x1x32xf32> to vector<1x32xf32>
    %cst = arith.constant dense<0.000000e+00> : vector<32x32xf32>
    %6 = tpu.matmul %1, %3, %cst {dimension_numbers = #tpu.dot_dimension_numbers<[1], [1], [0], [0], [0, 0, 1, 0], [], []>} : vector<32x16xf32>, vector<32x16xf32>, vector<32x32xf32> -> vector<32x32xf32>
    %7 = vector.broadcast %5 : vector<1x32xf32> to vector<32x32xf32>
    %8 = arith.addf %6, %7 : vector<32x32xf32>
    %c0_8 = arith.constant 0 : index
    %c0_9 = arith.constant 0 : index
    %c0_10 = arith.constant 0 : index
    %9 = vector.load %arg8[%c0_8, %c0_9, %c0_10] : memref<2x1x32xf32, #tpu.memory_space<vmem>>, vector<1x1x32xf32>
    %10 = vector.shape_cast %9 : vector<1x1x32xf32> to vector<1x32xf32>
    %c0_11 = arith.constant 0 : index
    %c0_12 = arith.constant 0 : index
    %c0_13 = arith.constant 0 : index
    %11 = vector.load %arg5[%c0_11, %c0_12, %c0_13] : memref<24x8x32xf32, #tpu.memory_space<vmem>>, vector<1x8x32xf32>
    %12 = vector.shape_cast %11 : vector<1x8x32xf32> to vector<8x32xf32>
    %c0_14 = arith.constant 0 : index
    %c0_15 = arith.constant 0 : index
    %c0_16 = arith.constant 0 : index
    %13 = vector.load %arg6[%c0_14, %c0_15, %c0_16] : memref<24x1x8xf32, #tpu.memory_space<vmem>>, vector<1x1x8xf32>
    %14 = vector.shape_cast %13 : vector<1x1x8xf32> to vector<1x8xf32>
    %cst_17 = arith.constant dense<0.000000e+00> : vector<32x8xf32>
    %15 = tpu.matmul %8, %12, %cst_17 {dimension_numbers = #tpu.dot_dimension_numbers<[1], [1], [0], [0], [0, 0, 1, 0], [], []>} : vector<32x32xf32>, vector<8x32xf32>, vector<32x8xf32> -> vector<32x8xf32>
    %16 = vector.broadcast %14 : vector<1x8xf32> to vector<32x8xf32>
    %17 = arith.addf %15, %16 : vector<32x8xf32>
    %c4 = arith.constant 4 : index
    %c0_18 = arith.constant 0 : index
    %c0_19 = arith.constant 0 : index
    %18 = vector.load %arg5[%c4, %c0_18, %c0_19] : memref<24x8x32xf32, #tpu.memory_space<vmem>>, vector<1x8x32xf32>
    %19 = vector.shape_cast %18 : vector<1x8x32xf32> to vector<8x32xf32>
    %c4_20 = arith.constant 4 : index
    %c0_21 = arith.constant 0 : index
    %c0_22 = arith.constant 0 : index
    %20 = vector.load %arg6[%c4_20, %c0_21, %c0_22] : memref<24x1x8xf32, #tpu.memory_space<vmem>>, vector<1x1x8xf32>
    %21 = vector.shape_cast %20 : vector<1x1x8xf32> to vector<1x8xf32>
    %cst_23 = arith.constant dense<0.000000e+00> : vector<32x8xf32>
    %22 = tpu.matmul %8, %19, %cst_23 {dimension_numbers = #tpu.dot_dimension_numbers<[1], [1], [0], [0], [0, 0, 1, 0], [], []>} : vector<32x32xf32>, vector<8x32xf32>, vector<32x8xf32> -> vector<32x8xf32>
    %23 = vector.broadcast %21 : vector<1x8xf32> to vector<32x8xf32>
    %24 = arith.addf %22, %23 : vector<32x8xf32>
    %c8 = arith.constant 8 : index
    %c0_24 = arith.constant 0 : index
    %c0_25 = arith.constant 0 : index
    %25 = vector.load %arg5[%c8, %c0_24, %c0_25] : memref<24x8x32xf32, #tpu.memory_space<vmem>>, vector<1x8x32xf32>
    %26 = vector.shape_cast %25 : vector<1x8x32xf32> to vector<8x32xf32>
    %c8_26 = arith.constant 8 : index
    %c0_27 = arith.constant 0 : index
    %c0_28 = arith.constant 0 : index
    %27 = vector.load %arg6[%c8_26, %c0_27, %c0_28] : memref<24x1x8xf32, #tpu.memory_space<vmem>>, vector<1x1x8xf32>
    %28 = vector.shape_cast %27 : vector<1x1x8xf32> to vector<1x8xf32>
    %cst_29 = arith.constant dense<0.000000e+00> : vector<32x8xf32>
    %29 = tpu.matmul %8, %26, %cst_29 {dimension_numbers = #tpu.dot_dimension_numbers<[1], [1], [0], [0], [0, 0, 1, 0], [], []>} : vector<32x32xf32>, vector<8x32xf32>, vector<32x8xf32> -> vector<32x8xf32>
    %30 = vector.broadcast %28 : vector<1x8xf32> to vector<32x8xf32>
    %31 = arith.addf %29, %30 : vector<32x8xf32>
    %32 = vector.shape_cast %17 : vector<32x8xf32> to vector<4x8x8xf32>
    %33 = vector.shape_cast %24 : vector<32x8xf32> to vector<4x8x8xf32>
    %34 = vector.shape_cast %31 : vector<32x8xf32> to vector<4x8x8xf32>
    %cst_30 = arith.constant dense<0.000000e+00> : vector<4x8x8xf32>
    %35 = tpu.matmul %32, %33, %cst_30 {dimension_numbers = #tpu.dot_dimension_numbers<[2], [2], [1], [1], [0, 0, 0, 1, 1, 1], [0], [0]>} : vector<4x8x8xf32>, vector<4x8x8xf32>, vector<4x8x8xf32> -> vector<4x8x8xf32>
    %cst_31 = arith.constant dense<0xFF800000> : vector<4x8xf32>
    %36 = vector.multi_reduction <maximumf>, %35, %cst_31 [2] : vector<4x8x8xf32> to vector<4x8xf32>
    %37 = vector.shape_cast %36 : vector<4x8xf32> to vector<4x8x1xf32>
    %38 = vector.broadcast %37 : vector<4x8x1xf32> to vector<4x8x8xf32>
    %39 = arith.subf %35, %38 : vector<4x8x8xf32>
    %40 = math.exp %39 : vector<4x8x8xf32>
    %cst_32 = arith.constant dense<0.000000e+00> : vector<4x8xf32>
    %41 = vector.multi_reduction <add>, %40, %cst_32 [2] : vector<4x8x8xf32> to vector<4x8xf32>
    %42 = vector.shape_cast %41 : vector<4x8xf32> to vector<4x8x1xf32>
    %43 = tpu.reciprocal %42 {approx = true} : vector<4x8x1xf32> -> vector<4x8x1xf32>
    %44 = vector.broadcast %43 : vector<4x8x1xf32> to vector<4x8x8xf32>
    %45 = arith.mulf %40, %44 : vector<4x8x8xf32>
    %cst_33 = arith.constant dense<0.000000e+00> : vector<4x8x8xf32>
    %46 = tpu.matmul %45, %34, %cst_33 {dimension_numbers = #tpu.dot_dimension_numbers<[2], [1], [1], [2], [0, 0, 0, 1, 1, 2], [0], [0]>} : vector<4x8x8xf32>, vector<4x8x8xf32>, vector<4x8x8xf32> -> vector<4x8x8xf32>
    %47 = vector.shape_cast %46 : vector<4x8x8xf32> to vector<32x8xf32>
    %c0_34 = arith.constant 0 : index
    %c0_35 = arith.constant 0 : index
    %c0_36 = arith.constant 0 : index
    %48 = vector.load %arg7[%c0_34, %c0_35, %c0_36] : memref<8x32x8xf32, #tpu.memory_space<vmem>>, vector<1x32x8xf32>
    %49 = vector.shape_cast %48 : vector<1x32x8xf32> to vector<32x8xf32>
    %cst_37 = arith.constant dense<0.000000e+00> : vector<32x32xf32>
    %50 = tpu.matmul %47, %49, %cst_37 {dimension_numbers = #tpu.dot_dimension_numbers<[1], [1], [0], [0], [0, 0, 1, 0], [], []>} : vector<32x8xf32>, vector<32x8xf32>, vector<32x32xf32> -> vector<32x32xf32>
    %51 = vector.broadcast %10 : vector<1x32xf32> to vector<32x32xf32>
    %52 = arith.addf %51, %50 : vector<32x32xf32>
    %c1 = arith.constant 1 : index
    %c0_38 = arith.constant 0 : index
    %c0_39 = arith.constant 0 : index
    %53 = vector.load %arg5[%c1, %c0_38, %c0_39] : memref<24x8x32xf32, #tpu.memory_space<vmem>>, vector<1x8x32xf32>
    %54 = vector.shape_cast %53 : vector<1x8x32xf32> to vector<8x32xf32>
    %c1_40 = arith.constant 1 : index
    %c0_41 = arith.constant 0 : index
    %c0_42 = arith.constant 0 : index
    %55 = vector.load %arg6[%c1_40, %c0_41, %c0_42] : memref<24x1x8xf32, #tpu.memory_space<vmem>>, vector<1x1x8xf32>
    %56 = vector.shape_cast %55 : vector<1x1x8xf32> to vector<1x8xf32>
    %cst_43 = arith.constant dense<0.000000e+00> : vector<32x8xf32>
    %57 = tpu.matmul %8, %54, %cst_43 {dimension_numbers = #tpu.dot_dimension_numbers<[1], [1], [0], [0], [0, 0, 1, 0], [], []>} : vector<32x32xf32>, vector<8x32xf32>, vector<32x8xf32> -> vector<32x8xf32>
    %58 = vector.broadcast %56 : vector<1x8xf32> to vector<32x8xf32>
    %59 = arith.addf %57, %58 : vector<32x8xf32>
    %c5 = arith.constant 5 : index
    %c0_44 = arith.constant 0 : index
    %c0_45 = arith.constant 0 : index
    %60 = vector.load %arg5[%c5, %c0_44, %c0_45] : memref<24x8x32xf32, #tpu.memory_space<vmem>>, vector<1x8x32xf32>
    %61 = vector.shape_cast %60 : vector<1x8x32xf32> to vector<8x32xf32>
    %c5_46 = arith.constant 5 : index
    %c0_47 = arith.constant 0 : index
    %c0_48 = arith.constant 0 : index
    %62 = vector.load %arg6[%c5_46, %c0_47, %c0_48] : memref<24x1x8xf32, #tpu.memory_space<vmem>>, vector<1x1x8xf32>
    %63 = vector.shape_cast %62 : vector<1x1x8xf32> to vector<1x8xf32>
    %cst_49 = arith.constant dense<0.000000e+00> : vector<32x8xf32>
    %64 = tpu.matmul %8, %61, %cst_49 {dimension_numbers = #tpu.dot_dimension_numbers<[1], [1], [0], [0], [0, 0, 1, 0], [], []>} : vector<32x32xf32>, vector<8x32xf32>, vector<32x8xf32> -> vector<32x8xf32>
    %65 = vector.broadcast %63 : vector<1x8xf32> to vector<32x8xf32>
    %66 = arith.addf %64, %65 : vector<32x8xf32>
    %c9 = arith.constant 9 : index
    %c0_50 = arith.constant 0 : index
    %c0_51 = arith.constant 0 : index
    %67 = vector.load %arg5[%c9, %c0_50, %c0_51] : memref<24x8x32xf32, #tpu.memory_space<vmem>>, vector<1x8x32xf32>
    %68 = vector.shape_cast %67 : vector<1x8x32xf32> to vector<8x32xf32>
    %c9_52 = arith.constant 9 : index
    %c0_53 = arith.constant 0 : index
    %c0_54 = arith.constant 0 : index
    %69 = vector.load %arg6[%c9_52, %c0_53, %c0_54] : memref<24x1x8xf32, #tpu.memory_space<vmem>>, vector<1x1x8xf32>
    %70 = vector.shape_cast %69 : vector<1x1x8xf32> to vector<1x8xf32>
    %cst_55 = arith.constant dense<0.000000e+00> : vector<32x8xf32>
    %71 = tpu.matmul %8, %68, %cst_55 {dimension_numbers = #tpu.dot_dimension_numbers<[1], [1], [0], [0], [0, 0, 1, 0], [], []>} : vector<32x32xf32>, vector<8x32xf32>, vector<32x8xf32> -> vector<32x8xf32>
    %72 = vector.broadcast %70 : vector<1x8xf32> to vector<32x8xf32>
    %73 = arith.addf %71, %72 : vector<32x8xf32>
    %74 = vector.shape_cast %59 : vector<32x8xf32> to vector<4x8x8xf32>
    %75 = vector.shape_cast %66 : vector<32x8xf32> to vector<4x8x8xf32>
    %76 = vector.shape_cast %73 : vector<32x8xf32> to vector<4x8x8xf32>
    %cst_56 = arith.constant dense<0.000000e+00> : vector<4x8x8xf32>
    %77 = tpu.matmul %74, %75, %cst_56 {dimension_numbers = #tpu.dot_dimension_numbers<[2], [2], [1], [1], [0, 0, 0, 1, 1, 1], [0], [0]>} : vector<4x8x8xf32>, vector<4x8x8xf32>, vector<4x8x8xf32> -> vector<4x8x8xf32>
    %cst_57 = arith.constant dense<0xFF800000> : vector<4x8xf32>
    %78 = vector.multi_reduction <maximumf>, %77, %cst_57 [2] : vector<4x8x8xf32> to vector<4x8xf32>
    %79 = vector.shape_cast %78 : vector<4x8xf32> to vector<4x8x1xf32>
    %80 = vector.broadcast %79 : vector<4x8x1xf32> to vector<4x8x8xf32>
    %81 = arith.subf %77, %80 : vector<4x8x8xf32>
    %82 = math.exp %81 : vector<4x8x8xf32>
    %cst_58 = arith.constant dense<0.000000e+00> : vector<4x8xf32>
    %83 = vector.multi_reduction <add>, %82, %cst_58 [2] : vector<4x8x8xf32> to vector<4x8xf32>
    %84 = vector.shape_cast %83 : vector<4x8xf32> to vector<4x8x1xf32>
    %85 = tpu.reciprocal %84 {approx = true} : vector<4x8x1xf32> -> vector<4x8x1xf32>
    %86 = vector.broadcast %85 : vector<4x8x1xf32> to vector<4x8x8xf32>
    %87 = arith.mulf %82, %86 : vector<4x8x8xf32>
    %cst_59 = arith.constant dense<0.000000e+00> : vector<4x8x8xf32>
    %88 = tpu.matmul %87, %76, %cst_59 {dimension_numbers = #tpu.dot_dimension_numbers<[2], [1], [1], [2], [0, 0, 0, 1, 1, 2], [0], [0]>} : vector<4x8x8xf32>, vector<4x8x8xf32>, vector<4x8x8xf32> -> vector<4x8x8xf32>
    %89 = vector.shape_cast %88 : vector<4x8x8xf32> to vector<32x8xf32>
    %c1_60 = arith.constant 1 : index
    %c0_61 = arith.constant 0 : index
    %c0_62 = arith.constant 0 : index
    %90 = vector.load %arg7[%c1_60, %c0_61, %c0_62] : memref<8x32x8xf32, #tpu.memory_space<vmem>>, vector<1x32x8xf32>
    %91 = vector.shape_cast %90 : vector<1x32x8xf32> to vector<32x8xf32>
    %cst_63 = arith.constant dense<0.000000e+00> : vector<32x32xf32>
    %92 = tpu.matmul %89, %91, %cst_63 {dimension_numbers = #tpu.dot_dimension_numbers<[1], [1], [0], [0], [0, 0, 1, 0], [], []>} : vector<32x8xf32>, vector<32x8xf32>, vector<32x32xf32> -> vector<32x32xf32>
    %93 = arith.addf %52, %92 : vector<32x32xf32>
    %c2 = arith.constant 2 : index
    %c0_64 = arith.constant 0 : index
    %c0_65 = arith.constant 0 : index
    %94 = vector.load %arg5[%c2, %c0_64, %c0_65] : memref<24x8x32xf32, #tpu.memory_space<vmem>>, vector<1x8x32xf32>
    %95 = vector.shape_cast %94 : vector<1x8x32xf32> to vector<8x32xf32>
    %c2_66 = arith.constant 2 : index
    %c0_67 = arith.constant 0 : index
    %c0_68 = arith.constant 0 : index
    %96 = vector.load %arg6[%c2_66, %c0_67, %c0_68] : memref<24x1x8xf32, #tpu.memory_space<vmem>>, vector<1x1x8xf32>
    %97 = vector.shape_cast %96 : vector<1x1x8xf32> to vector<1x8xf32>
    %cst_69 = arith.constant dense<0.000000e+00> : vector<32x8xf32>
    %98 = tpu.matmul %8, %95, %cst_69 {dimension_numbers = #tpu.dot_dimension_numbers<[1], [1], [0], [0], [0, 0, 1, 0], [], []>} : vector<32x32xf32>, vector<8x32xf32>, vector<32x8xf32> -> vector<32x8xf32>
    %99 = vector.broadcast %97 : vector<1x8xf32> to vector<32x8xf32>
    %100 = arith.addf %98, %99 : vector<32x8xf32>
    %c6 = arith.constant 6 : index
    %c0_70 = arith.constant 0 : index
    %c0_71 = arith.constant 0 : index
    %101 = vector.load %arg5[%c6, %c0_70, %c0_71] : memref<24x8x32xf32, #tpu.memory_space<vmem>>, vector<1x8x32xf32>
    %102 = vector.shape_cast %101 : vector<1x8x32xf32> to vector<8x32xf32>
    %c6_72 = arith.constant 6 : index
    %c0_73 = arith.constant 0 : index
    %c0_74 = arith.constant 0 : index
    %103 = vector.load %arg6[%c6_72, %c0_73, %c0_74] : memref<24x1x8xf32, #tpu.memory_space<vmem>>, vector<1x1x8xf32>
    %104 = vector.shape_cast %103 : vector<1x1x8xf32> to vector<1x8xf32>
    %cst_75 = arith.constant dense<0.000000e+00> : vector<32x8xf32>
    %105 = tpu.matmul %8, %102, %cst_75 {dimension_numbers = #tpu.dot_dimension_numbers<[1], [1], [0], [0], [0, 0, 1, 0], [], []>} : vector<32x32xf32>, vector<8x32xf32>, vector<32x8xf32> -> vector<32x8xf32>
    %106 = vector.broadcast %104 : vector<1x8xf32> to vector<32x8xf32>
    %107 = arith.addf %105, %106 : vector<32x8xf32>
    %c10 = arith.constant 10 : index
    %c0_76 = arith.constant 0 : index
    %c0_77 = arith.constant 0 : index
    %108 = vector.load %arg5[%c10, %c0_76, %c0_77] : memref<24x8x32xf32, #tpu.memory_space<vmem>>, vector<1x8x32xf32>
    %109 = vector.shape_cast %108 : vector<1x8x32xf32> to vector<8x32xf32>
    %c10_78 = arith.constant 10 : index
    %c0_79 = arith.constant 0 : index
    %c0_80 = arith.constant 0 : index
    %110 = vector.load %arg6[%c10_78, %c0_79, %c0_80] : memref<24x1x8xf32, #tpu.memory_space<vmem>>, vector<1x1x8xf32>
    %111 = vector.shape_cast %110 : vector<1x1x8xf32> to vector<1x8xf32>
    %cst_81 = arith.constant dense<0.000000e+00> : vector<32x8xf32>
    %112 = tpu.matmul %8, %109, %cst_81 {dimension_numbers = #tpu.dot_dimension_numbers<[1], [1], [0], [0], [0, 0, 1, 0], [], []>} : vector<32x32xf32>, vector<8x32xf32>, vector<32x8xf32> -> vector<32x8xf32>
    %113 = vector.broadcast %111 : vector<1x8xf32> to vector<32x8xf32>
    %114 = arith.addf %112, %113 : vector<32x8xf32>
    %115 = vector.shape_cast %100 : vector<32x8xf32> to vector<4x8x8xf32>
    %116 = vector.shape_cast %107 : vector<32x8xf32> to vector<4x8x8xf32>
    %117 = vector.shape_cast %114 : vector<32x8xf32> to vector<4x8x8xf32>
    %cst_82 = arith.constant dense<0.000000e+00> : vector<4x8x8xf32>
    %118 = tpu.matmul %115, %116, %cst_82 {dimension_numbers = #tpu.dot_dimension_numbers<[2], [2], [1], [1], [0, 0, 0, 1, 1, 1], [0], [0]>} : vector<4x8x8xf32>, vector<4x8x8xf32>, vector<4x8x8xf32> -> vector<4x8x8xf32>
    %cst_83 = arith.constant dense<0xFF800000> : vector<4x8xf32>
    %119 = vector.multi_reduction <maximumf>, %118, %cst_83 [2] : vector<4x8x8xf32> to vector<4x8xf32>
    %120 = vector.shape_cast %119 : vector<4x8xf32> to vector<4x8x1xf32>
    %121 = vector.broadcast %120 : vector<4x8x1xf32> to vector<4x8x8xf32>
    %122 = arith.subf %118, %121 : vector<4x8x8xf32>
    %123 = math.exp %122 : vector<4x8x8xf32>
    %cst_84 = arith.constant dense<0.000000e+00> : vector<4x8xf32>
    %124 = vector.multi_reduction <add>, %123, %cst_84 [2] : vector<4x8x8xf32> to vector<4x8xf32>
    %125 = vector.shape_cast %124 : vector<4x8xf32> to vector<4x8x1xf32>
    %126 = tpu.reciprocal %125 {approx = true} : vector<4x8x1xf32> -> vector<4x8x1xf32>
    %127 = vector.broadcast %126 : vector<4x8x1xf32> to vector<4x8x8xf32>
    %128 = arith.mulf %123, %127 : vector<4x8x8xf32>
    %cst_85 = arith.constant dense<0.000000e+00> : vector<4x8x8xf32>
    %129 = tpu.matmul %128, %117, %cst_85 {dimension_numbers = #tpu.dot_dimension_numbers<[2], [1], [1], [2], [0, 0, 0, 1, 1, 2], [0], [0]>} : vector<4x8x8xf32>, vector<4x8x8xf32>, vector<4x8x8xf32> -> vector<4x8x8xf32>
    %130 = vector.shape_cast %129 : vector<4x8x8xf32> to vector<32x8xf32>
    %c2_86 = arith.constant 2 : index
    %c0_87 = arith.constant 0 : index
    %c0_88 = arith.constant 0 : index
    %131 = vector.load %arg7[%c2_86, %c0_87, %c0_88] : memref<8x32x8xf32, #tpu.memory_space<vmem>>, vector<1x32x8xf32>
    %132 = vector.shape_cast %131 : vector<1x32x8xf32> to vector<32x8xf32>
    %cst_89 = arith.constant dense<0.000000e+00> : vector<32x32xf32>
    %133 = tpu.matmul %130, %132, %cst_89 {dimension_numbers = #tpu.dot_dimension_numbers<[1], [1], [0], [0], [0, 0, 1, 0], [], []>} : vector<32x8xf32>, vector<32x8xf32>, vector<32x32xf32> -> vector<32x32xf32>
    %134 = arith.addf %93, %133 : vector<32x32xf32>
    %c3 = arith.constant 3 : index
    %c0_90 = arith.constant 0 : index
    %c0_91 = arith.constant 0 : index
    %135 = vector.load %arg5[%c3, %c0_90, %c0_91] : memref<24x8x32xf32, #tpu.memory_space<vmem>>, vector<1x8x32xf32>
    %136 = vector.shape_cast %135 : vector<1x8x32xf32> to vector<8x32xf32>
    %c3_92 = arith.constant 3 : index
    %c0_93 = arith.constant 0 : index
    %c0_94 = arith.constant 0 : index
    %137 = vector.load %arg6[%c3_92, %c0_93, %c0_94] : memref<24x1x8xf32, #tpu.memory_space<vmem>>, vector<1x1x8xf32>
    %138 = vector.shape_cast %137 : vector<1x1x8xf32> to vector<1x8xf32>
    %cst_95 = arith.constant dense<0.000000e+00> : vector<32x8xf32>
    %139 = tpu.matmul %8, %136, %cst_95 {dimension_numbers = #tpu.dot_dimension_numbers<[1], [1], [0], [0], [0, 0, 1, 0], [], []>} : vector<32x32xf32>, vector<8x32xf32>, vector<32x8xf32> -> vector<32x8xf32>
    %140 = vector.broadcast %138 : vector<1x8xf32> to vector<32x8xf32>
    %141 = arith.addf %139, %140 : vector<32x8xf32>
    %c7 = arith.constant 7 : index
    %c0_96 = arith.constant 0 : index
    %c0_97 = arith.constant 0 : index
    %142 = vector.load %arg5[%c7, %c0_96, %c0_97] : memref<24x8x32xf32, #tpu.memory_space<vmem>>, vector<1x8x32xf32>
    %143 = vector.shape_cast %142 : vector<1x8x32xf32> to vector<8x32xf32>
    %c7_98 = arith.constant 7 : index
    %c0_99 = arith.constant 0 : index
    %c0_100 = arith.constant 0 : index
    %144 = vector.load %arg6[%c7_98, %c0_99, %c0_100] : memref<24x1x8xf32, #tpu.memory_space<vmem>>, vector<1x1x8xf32>
    %145 = vector.shape_cast %144 : vector<1x1x8xf32> to vector<1x8xf32>
    %cst_101 = arith.constant dense<0.000000e+00> : vector<32x8xf32>
    %146 = tpu.matmul %8, %143, %cst_101 {dimension_numbers = #tpu.dot_dimension_numbers<[1], [1], [0], [0], [0, 0, 1, 0], [], []>} : vector<32x32xf32>, vector<8x32xf32>, vector<32x8xf32> -> vector<32x8xf32>
    %147 = vector.broadcast %145 : vector<1x8xf32> to vector<32x8xf32>
    %148 = arith.addf %146, %147 : vector<32x8xf32>
    %c11 = arith.constant 11 : index
    %c0_102 = arith.constant 0 : index
    %c0_103 = arith.constant 0 : index
    %149 = vector.load %arg5[%c11, %c0_102, %c0_103] : memref<24x8x32xf32, #tpu.memory_space<vmem>>, vector<1x8x32xf32>
    %150 = vector.shape_cast %149 : vector<1x8x32xf32> to vector<8x32xf32>
    %c11_104 = arith.constant 11 : index
    %c0_105 = arith.constant 0 : index
    %c0_106 = arith.constant 0 : index
    %151 = vector.load %arg6[%c11_104, %c0_105, %c0_106] : memref<24x1x8xf32, #tpu.memory_space<vmem>>, vector<1x1x8xf32>
    %152 = vector.shape_cast %151 : vector<1x1x8xf32> to vector<1x8xf32>
    %cst_107 = arith.constant dense<0.000000e+00> : vector<32x8xf32>
    %153 = tpu.matmul %8, %150, %cst_107 {dimension_numbers = #tpu.dot_dimension_numbers<[1], [1], [0], [0], [0, 0, 1, 0], [], []>} : vector<32x32xf32>, vector<8x32xf32>, vector<32x8xf32> -> vector<32x8xf32>
    %154 = vector.broadcast %152 : vector<1x8xf32> to vector<32x8xf32>
    %155 = arith.addf %153, %154 : vector<32x8xf32>
    %156 = vector.shape_cast %141 : vector<32x8xf32> to vector<4x8x8xf32>
    %157 = vector.shape_cast %148 : vector<32x8xf32> to vector<4x8x8xf32>
    %158 = vector.shape_cast %155 : vector<32x8xf32> to vector<4x8x8xf32>
    %cst_108 = arith.constant dense<0.000000e+00> : vector<4x8x8xf32>
    %159 = tpu.matmul %156, %157, %cst_108 {dimension_numbers = #tpu.dot_dimension_numbers<[2], [2], [1], [1], [0, 0, 0, 1, 1, 1], [0], [0]>} : vector<4x8x8xf32>, vector<4x8x8xf32>, vector<4x8x8xf32> -> vector<4x8x8xf32>
    %cst_109 = arith.constant dense<0xFF800000> : vector<4x8xf32>
    %160 = vector.multi_reduction <maximumf>, %159, %cst_109 [2] : vector<4x8x8xf32> to vector<4x8xf32>
    %161 = vector.shape_cast %160 : vector<4x8xf32> to vector<4x8x1xf32>
    %162 = vector.broadcast %161 : vector<4x8x1xf32> to vector<4x8x8xf32>
    %163 = arith.subf %159, %162 : vector<4x8x8xf32>
    %164 = math.exp %163 : vector<4x8x8xf32>
    %cst_110 = arith.constant dense<0.000000e+00> : vector<4x8xf32>
    %165 = vector.multi_reduction <add>, %164, %cst_110 [2] : vector<4x8x8xf32> to vector<4x8xf32>
    %166 = vector.shape_cast %165 : vector<4x8xf32> to vector<4x8x1xf32>
    %167 = tpu.reciprocal %166 {approx = true} : vector<4x8x1xf32> -> vector<4x8x1xf32>
    %168 = vector.broadcast %167 : vector<4x8x1xf32> to vector<4x8x8xf32>
    %169 = arith.mulf %164, %168 : vector<4x8x8xf32>
    %cst_111 = arith.constant dense<0.000000e+00> : vector<4x8x8xf32>
    %170 = tpu.matmul %169, %158, %cst_111 {dimension_numbers = #tpu.dot_dimension_numbers<[2], [1], [1], [2], [0, 0, 0, 1, 1, 2], [0], [0]>} : vector<4x8x8xf32>, vector<4x8x8xf32>, vector<4x8x8xf32> -> vector<4x8x8xf32>
    %171 = vector.shape_cast %170 : vector<4x8x8xf32> to vector<32x8xf32>
    %c3_112 = arith.constant 3 : index
    %c0_113 = arith.constant 0 : index
    %c0_114 = arith.constant 0 : index
    %172 = vector.load %arg7[%c3_112, %c0_113, %c0_114] : memref<8x32x8xf32, #tpu.memory_space<vmem>>, vector<1x32x8xf32>
    %173 = vector.shape_cast %172 : vector<1x32x8xf32> to vector<32x8xf32>
    %cst_115 = arith.constant dense<0.000000e+00> : vector<32x32xf32>
    %174 = tpu.matmul %171, %173, %cst_115 {dimension_numbers = #tpu.dot_dimension_numbers<[1], [1], [0], [0], [0, 0, 1, 0], [], []>} : vector<32x8xf32>, vector<32x8xf32>, vector<32x32xf32> -> vector<32x32xf32>
    %175 = arith.addf %134, %174 : vector<32x32xf32>
    %c1_116 = arith.constant 1 : index
    %c0_117 = arith.constant 0 : index
    %c0_118 = arith.constant 0 : index
    %176 = vector.load %arg8[%c1_116, %c0_117, %c0_118] : memref<2x1x32xf32, #tpu.memory_space<vmem>>, vector<1x1x32xf32>
    %177 = vector.shape_cast %176 : vector<1x1x32xf32> to vector<1x32xf32>
    %c12 = arith.constant 12 : index
    %c0_119 = arith.constant 0 : index
    %c0_120 = arith.constant 0 : index
    %178 = vector.load %arg5[%c12, %c0_119, %c0_120] : memref<24x8x32xf32, #tpu.memory_space<vmem>>, vector<1x8x32xf32>
    %179 = vector.shape_cast %178 : vector<1x8x32xf32> to vector<8x32xf32>
    %c12_121 = arith.constant 12 : index
    %c0_122 = arith.constant 0 : index
    %c0_123 = arith.constant 0 : index
    %180 = vector.load %arg6[%c12_121, %c0_122, %c0_123] : memref<24x1x8xf32, #tpu.memory_space<vmem>>, vector<1x1x8xf32>
    %181 = vector.shape_cast %180 : vector<1x1x8xf32> to vector<1x8xf32>
    %cst_124 = arith.constant dense<0.000000e+00> : vector<32x8xf32>
    %182 = tpu.matmul %175, %179, %cst_124 {dimension_numbers = #tpu.dot_dimension_numbers<[1], [1], [0], [0], [0, 0, 1, 0], [], []>} : vector<32x32xf32>, vector<8x32xf32>, vector<32x8xf32> -> vector<32x8xf32>
    %183 = vector.broadcast %181 : vector<1x8xf32> to vector<32x8xf32>
    %184 = arith.addf %182, %183 : vector<32x8xf32>
    %c16 = arith.constant 16 : index
    %c0_125 = arith.constant 0 : index
    %c0_126 = arith.constant 0 : index
    %185 = vector.load %arg5[%c16, %c0_125, %c0_126] : memref<24x8x32xf32, #tpu.memory_space<vmem>>, vector<1x8x32xf32>
    %186 = vector.shape_cast %185 : vector<1x8x32xf32> to vector<8x32xf32>
    %c16_127 = arith.constant 16 : index
    %c0_128 = arith.constant 0 : index
    %c0_129 = arith.constant 0 : index
    %187 = vector.load %arg6[%c16_127, %c0_128, %c0_129] : memref<24x1x8xf32, #tpu.memory_space<vmem>>, vector<1x1x8xf32>
    %188 = vector.shape_cast %187 : vector<1x1x8xf32> to vector<1x8xf32>
    %cst_130 = arith.constant dense<0.000000e+00> : vector<32x8xf32>
    %189 = tpu.matmul %175, %186, %cst_130 {dimension_numbers = #tpu.dot_dimension_numbers<[1], [1], [0], [0], [0, 0, 1, 0], [], []>} : vector<32x32xf32>, vector<8x32xf32>, vector<32x8xf32> -> vector<32x8xf32>
    %190 = vector.broadcast %188 : vector<1x8xf32> to vector<32x8xf32>
    %191 = arith.addf %189, %190 : vector<32x8xf32>
    %c20 = arith.constant 20 : index
    %c0_131 = arith.constant 0 : index
    %c0_132 = arith.constant 0 : index
    %192 = vector.load %arg5[%c20, %c0_131, %c0_132] : memref<24x8x32xf32, #tpu.memory_space<vmem>>, vector<1x8x32xf32>
    %193 = vector.shape_cast %192 : vector<1x8x32xf32> to vector<8x32xf32>
    %c20_133 = arith.constant 20 : index
    %c0_134 = arith.constant 0 : index
    %c0_135 = arith.constant 0 : index
    %194 = vector.load %arg6[%c20_133, %c0_134, %c0_135] : memref<24x1x8xf32, #tpu.memory_space<vmem>>, vector<1x1x8xf32>
    %195 = vector.shape_cast %194 : vector<1x1x8xf32> to vector<1x8xf32>
    %cst_136 = arith.constant dense<0.000000e+00> : vector<32x8xf32>
    %196 = tpu.matmul %175, %193, %cst_136 {dimension_numbers = #tpu.dot_dimension_numbers<[1], [1], [0], [0], [0, 0, 1, 0], [], []>} : vector<32x32xf32>, vector<8x32xf32>, vector<32x8xf32> -> vector<32x8xf32>
    %197 = vector.broadcast %195 : vector<1x8xf32> to vector<32x8xf32>
    %198 = arith.addf %196, %197 : vector<32x8xf32>
    %199 = vector.shape_cast %184 : vector<32x8xf32> to vector<4x8x8xf32>
    %200 = vector.shape_cast %191 : vector<32x8xf32> to vector<4x8x8xf32>
    %201 = vector.shape_cast %198 : vector<32x8xf32> to vector<4x8x8xf32>
    %cst_137 = arith.constant dense<0.000000e+00> : vector<4x8x8xf32>
    %202 = tpu.matmul %199, %200, %cst_137 {dimension_numbers = #tpu.dot_dimension_numbers<[2], [2], [1], [1], [0, 0, 0, 1, 1, 1], [0], [0]>} : vector<4x8x8xf32>, vector<4x8x8xf32>, vector<4x8x8xf32> -> vector<4x8x8xf32>
    %cst_138 = arith.constant dense<0xFF800000> : vector<4x8xf32>
    %203 = vector.multi_reduction <maximumf>, %202, %cst_138 [2] : vector<4x8x8xf32> to vector<4x8xf32>
    %204 = vector.shape_cast %203 : vector<4x8xf32> to vector<4x8x1xf32>
    %205 = vector.broadcast %204 : vector<4x8x1xf32> to vector<4x8x8xf32>
    %206 = arith.subf %202, %205 : vector<4x8x8xf32>
    %207 = math.exp %206 : vector<4x8x8xf32>
    %cst_139 = arith.constant dense<0.000000e+00> : vector<4x8xf32>
    %208 = vector.multi_reduction <add>, %207, %cst_139 [2] : vector<4x8x8xf32> to vector<4x8xf32>
    %209 = vector.shape_cast %208 : vector<4x8xf32> to vector<4x8x1xf32>
    %210 = tpu.reciprocal %209 {approx = true} : vector<4x8x1xf32> -> vector<4x8x1xf32>
    %211 = vector.broadcast %210 : vector<4x8x1xf32> to vector<4x8x8xf32>
    %212 = arith.mulf %207, %211 : vector<4x8x8xf32>
    %cst_140 = arith.constant dense<0.000000e+00> : vector<4x8x8xf32>
    %213 = tpu.matmul %212, %201, %cst_140 {dimension_numbers = #tpu.dot_dimension_numbers<[2], [1], [1], [2], [0, 0, 0, 1, 1, 2], [0], [0]>} : vector<4x8x8xf32>, vector<4x8x8xf32>, vector<4x8x8xf32> -> vector<4x8x8xf32>
    %214 = vector.shape_cast %213 : vector<4x8x8xf32> to vector<32x8xf32>
    %c4_141 = arith.constant 4 : index
    %c0_142 = arith.constant 0 : index
    %c0_143 = arith.constant 0 : index
    %215 = vector.load %arg7[%c4_141, %c0_142, %c0_143] : memref<8x32x8xf32, #tpu.memory_space<vmem>>, vector<1x32x8xf32>
    %216 = vector.shape_cast %215 : vector<1x32x8xf32> to vector<32x8xf32>
    %cst_144 = arith.constant dense<0.000000e+00> : vector<32x32xf32>
    %217 = tpu.matmul %214, %216, %cst_144 {dimension_numbers = #tpu.dot_dimension_numbers<[1], [1], [0], [0], [0, 0, 1, 0], [], []>} : vector<32x8xf32>, vector<32x8xf32>, vector<32x32xf32> -> vector<32x32xf32>
    %218 = vector.broadcast %177 : vector<1x32xf32> to vector<32x32xf32>
    %219 = arith.addf %218, %217 : vector<32x32xf32>
    %c13 = arith.constant 13 : index
    %c0_145 = arith.constant 0 : index
    %c0_146 = arith.constant 0 : index
    %220 = vector.load %arg5[%c13, %c0_145, %c0_146] : memref<24x8x32xf32, #tpu.memory_space<vmem>>, vector<1x8x32xf32>
    %221 = vector.shape_cast %220 : vector<1x8x32xf32> to vector<8x32xf32>
    %c13_147 = arith.constant 13 : index
    %c0_148 = arith.constant 0 : index
    %c0_149 = arith.constant 0 : index
    %222 = vector.load %arg6[%c13_147, %c0_148, %c0_149] : memref<24x1x8xf32, #tpu.memory_space<vmem>>, vector<1x1x8xf32>
    %223 = vector.shape_cast %222 : vector<1x1x8xf32> to vector<1x8xf32>
    %cst_150 = arith.constant dense<0.000000e+00> : vector<32x8xf32>
    %224 = tpu.matmul %175, %221, %cst_150 {dimension_numbers = #tpu.dot_dimension_numbers<[1], [1], [0], [0], [0, 0, 1, 0], [], []>} : vector<32x32xf32>, vector<8x32xf32>, vector<32x8xf32> -> vector<32x8xf32>
    %225 = vector.broadcast %223 : vector<1x8xf32> to vector<32x8xf32>
    %226 = arith.addf %224, %225 : vector<32x8xf32>
    %c17 = arith.constant 17 : index
    %c0_151 = arith.constant 0 : index
    %c0_152 = arith.constant 0 : index
    %227 = vector.load %arg5[%c17, %c0_151, %c0_152] : memref<24x8x32xf32, #tpu.memory_space<vmem>>, vector<1x8x32xf32>
    %228 = vector.shape_cast %227 : vector<1x8x32xf32> to vector<8x32xf32>
    %c17_153 = arith.constant 17 : index
    %c0_154 = arith.constant 0 : index
    %c0_155 = arith.constant 0 : index
    %229 = vector.load %arg6[%c17_153, %c0_154, %c0_155] : memref<24x1x8xf32, #tpu.memory_space<vmem>>, vector<1x1x8xf32>
    %230 = vector.shape_cast %229 : vector<1x1x8xf32> to vector<1x8xf32>
    %cst_156 = arith.constant dense<0.000000e+00> : vector<32x8xf32>
    %231 = tpu.matmul %175, %228, %cst_156 {dimension_numbers = #tpu.dot_dimension_numbers<[1], [1], [0], [0], [0, 0, 1, 0], [], []>} : vector<32x32xf32>, vector<8x32xf32>, vector<32x8xf32> -> vector<32x8xf32>
    %232 = vector.broadcast %230 : vector<1x8xf32> to vector<32x8xf32>
    %233 = arith.addf %231, %232 : vector<32x8xf32>
    %c21 = arith.constant 21 : index
    %c0_157 = arith.constant 0 : index
    %c0_158 = arith.constant 0 : index
    %234 = vector.load %arg5[%c21, %c0_157, %c0_158] : memref<24x8x32xf32, #tpu.memory_space<vmem>>, vector<1x8x32xf32>
    %235 = vector.shape_cast %234 : vector<1x8x32xf32> to vector<8x32xf32>
    %c21_159 = arith.constant 21 : index
    %c0_160 = arith.constant 0 : index
    %c0_161 = arith.constant 0 : index
    %236 = vector.load %arg6[%c21_159, %c0_160, %c0_161] : memref<24x1x8xf32, #tpu.memory_space<vmem>>, vector<1x1x8xf32>
    %237 = vector.shape_cast %236 : vector<1x1x8xf32> to vector<1x8xf32>
    %cst_162 = arith.constant dense<0.000000e+00> : vector<32x8xf32>
    %238 = tpu.matmul %175, %235, %cst_162 {dimension_numbers = #tpu.dot_dimension_numbers<[1], [1], [0], [0], [0, 0, 1, 0], [], []>} : vector<32x32xf32>, vector<8x32xf32>, vector<32x8xf32> -> vector<32x8xf32>
    %239 = vector.broadcast %237 : vector<1x8xf32> to vector<32x8xf32>
    %240 = arith.addf %238, %239 : vector<32x8xf32>
    %241 = vector.shape_cast %226 : vector<32x8xf32> to vector<4x8x8xf32>
    %242 = vector.shape_cast %233 : vector<32x8xf32> to vector<4x8x8xf32>
    %243 = vector.shape_cast %240 : vector<32x8xf32> to vector<4x8x8xf32>
    %cst_163 = arith.constant dense<0.000000e+00> : vector<4x8x8xf32>
    %244 = tpu.matmul %241, %242, %cst_163 {dimension_numbers = #tpu.dot_dimension_numbers<[2], [2], [1], [1], [0, 0, 0, 1, 1, 1], [0], [0]>} : vector<4x8x8xf32>, vector<4x8x8xf32>, vector<4x8x8xf32> -> vector<4x8x8xf32>
    %cst_164 = arith.constant dense<0xFF800000> : vector<4x8xf32>
    %245 = vector.multi_reduction <maximumf>, %244, %cst_164 [2] : vector<4x8x8xf32> to vector<4x8xf32>
    %246 = vector.shape_cast %245 : vector<4x8xf32> to vector<4x8x1xf32>
    %247 = vector.broadcast %246 : vector<4x8x1xf32> to vector<4x8x8xf32>
    %248 = arith.subf %244, %247 : vector<4x8x8xf32>
    %249 = math.exp %248 : vector<4x8x8xf32>
    %cst_165 = arith.constant dense<0.000000e+00> : vector<4x8xf32>
    %250 = vector.multi_reduction <add>, %249, %cst_165 [2] : vector<4x8x8xf32> to vector<4x8xf32>
    %251 = vector.shape_cast %250 : vector<4x8xf32> to vector<4x8x1xf32>
    %252 = tpu.reciprocal %251 {approx = true} : vector<4x8x1xf32> -> vector<4x8x1xf32>
    %253 = vector.broadcast %252 : vector<4x8x1xf32> to vector<4x8x8xf32>
    %254 = arith.mulf %249, %253 : vector<4x8x8xf32>
    %cst_166 = arith.constant dense<0.000000e+00> : vector<4x8x8xf32>
    %255 = tpu.matmul %254, %243, %cst_166 {dimension_numbers = #tpu.dot_dimension_numbers<[2], [1], [1], [2], [0, 0, 0, 1, 1, 2], [0], [0]>} : vector<4x8x8xf32>, vector<4x8x8xf32>, vector<4x8x8xf32> -> vector<4x8x8xf32>
    %256 = vector.shape_cast %255 : vector<4x8x8xf32> to vector<32x8xf32>
    %c5_167 = arith.constant 5 : index
    %c0_168 = arith.constant 0 : index
    %c0_169 = arith.constant 0 : index
    %257 = vector.load %arg7[%c5_167, %c0_168, %c0_169] : memref<8x32x8xf32, #tpu.memory_space<vmem>>, vector<1x32x8xf32>
    %258 = vector.shape_cast %257 : vector<1x32x8xf32> to vector<32x8xf32>
    %cst_170 = arith.constant dense<0.000000e+00> : vector<32x32xf32>
    %259 = tpu.matmul %256, %258, %cst_170 {dimension_numbers = #tpu.dot_dimension_numbers<[1], [1], [0], [0], [0, 0, 1, 0], [], []>} : vector<32x8xf32>, vector<32x8xf32>, vector<32x32xf32> -> vector<32x32xf32>
    %260 = arith.addf %219, %259 : vector<32x32xf32>
    %c14 = arith.constant 14 : index
    %c0_171 = arith.constant 0 : index
    %c0_172 = arith.constant 0 : index
    %261 = vector.load %arg5[%c14, %c0_171, %c0_172] : memref<24x8x32xf32, #tpu.memory_space<vmem>>, vector<1x8x32xf32>
    %262 = vector.shape_cast %261 : vector<1x8x32xf32> to vector<8x32xf32>
    %c14_173 = arith.constant 14 : index
    %c0_174 = arith.constant 0 : index
    %c0_175 = arith.constant 0 : index
    %263 = vector.load %arg6[%c14_173, %c0_174, %c0_175] : memref<24x1x8xf32, #tpu.memory_space<vmem>>, vector<1x1x8xf32>
    %264 = vector.shape_cast %263 : vector<1x1x8xf32> to vector<1x8xf32>
    %cst_176 = arith.constant dense<0.000000e+00> : vector<32x8xf32>
    %265 = tpu.matmul %175, %262, %cst_176 {dimension_numbers = #tpu.dot_dimension_numbers<[1], [1], [0], [0], [0, 0, 1, 0], [], []>} : vector<32x32xf32>, vector<8x32xf32>, vector<32x8xf32> -> vector<32x8xf32>
    %266 = vector.broadcast %264 : vector<1x8xf32> to vector<32x8xf32>
    %267 = arith.addf %265, %266 : vector<32x8xf32>
    %c18 = arith.constant 18 : index
    %c0_177 = arith.constant 0 : index
    %c0_178 = arith.constant 0 : index
    %268 = vector.load %arg5[%c18, %c0_177, %c0_178] : memref<24x8x32xf32, #tpu.memory_space<vmem>>, vector<1x8x32xf32>
    %269 = vector.shape_cast %268 : vector<1x8x32xf32> to vector<8x32xf32>
    %c18_179 = arith.constant 18 : index
    %c0_180 = arith.constant 0 : index
    %c0_181 = arith.constant 0 : index
    %270 = vector.load %arg6[%c18_179, %c0_180, %c0_181] : memref<24x1x8xf32, #tpu.memory_space<vmem>>, vector<1x1x8xf32>
    %271 = vector.shape_cast %270 : vector<1x1x8xf32> to vector<1x8xf32>
    %cst_182 = arith.constant dense<0.000000e+00> : vector<32x8xf32>
    %272 = tpu.matmul %175, %269, %cst_182 {dimension_numbers = #tpu.dot_dimension_numbers<[1], [1], [0], [0], [0, 0, 1, 0], [], []>} : vector<32x32xf32>, vector<8x32xf32>, vector<32x8xf32> -> vector<32x8xf32>
    %273 = vector.broadcast %271 : vector<1x8xf32> to vector<32x8xf32>
    %274 = arith.addf %272, %273 : vector<32x8xf32>
    %c22 = arith.constant 22 : index
    %c0_183 = arith.constant 0 : index
    %c0_184 = arith.constant 0 : index
    %275 = vector.load %arg5[%c22, %c0_183, %c0_184] : memref<24x8x32xf32, #tpu.memory_space<vmem>>, vector<1x8x32xf32>
    %276 = vector.shape_cast %275 : vector<1x8x32xf32> to vector<8x32xf32>
    %c22_185 = arith.constant 22 : index
    %c0_186 = arith.constant 0 : index
    %c0_187 = arith.constant 0 : index
    %277 = vector.load %arg6[%c22_185, %c0_186, %c0_187] : memref<24x1x8xf32, #tpu.memory_space<vmem>>, vector<1x1x8xf32>
    %278 = vector.shape_cast %277 : vector<1x1x8xf32> to vector<1x8xf32>
    %cst_188 = arith.constant dense<0.000000e+00> : vector<32x8xf32>
    %279 = tpu.matmul %175, %276, %cst_188 {dimension_numbers = #tpu.dot_dimension_numbers<[1], [1], [0], [0], [0, 0, 1, 0], [], []>} : vector<32x32xf32>, vector<8x32xf32>, vector<32x8xf32> -> vector<32x8xf32>
    %280 = vector.broadcast %278 : vector<1x8xf32> to vector<32x8xf32>
    %281 = arith.addf %279, %280 : vector<32x8xf32>
    %282 = vector.shape_cast %267 : vector<32x8xf32> to vector<4x8x8xf32>
    %283 = vector.shape_cast %274 : vector<32x8xf32> to vector<4x8x8xf32>
    %284 = vector.shape_cast %281 : vector<32x8xf32> to vector<4x8x8xf32>
    %cst_189 = arith.constant dense<0.000000e+00> : vector<4x8x8xf32>
    %285 = tpu.matmul %282, %283, %cst_189 {dimension_numbers = #tpu.dot_dimension_numbers<[2], [2], [1], [1], [0, 0, 0, 1, 1, 1], [0], [0]>} : vector<4x8x8xf32>, vector<4x8x8xf32>, vector<4x8x8xf32> -> vector<4x8x8xf32>
    %cst_190 = arith.constant dense<0xFF800000> : vector<4x8xf32>
    %286 = vector.multi_reduction <maximumf>, %285, %cst_190 [2] : vector<4x8x8xf32> to vector<4x8xf32>
    %287 = vector.shape_cast %286 : vector<4x8xf32> to vector<4x8x1xf32>
    %288 = vector.broadcast %287 : vector<4x8x1xf32> to vector<4x8x8xf32>
    %289 = arith.subf %285, %288 : vector<4x8x8xf32>
    %290 = math.exp %289 : vector<4x8x8xf32>
    %cst_191 = arith.constant dense<0.000000e+00> : vector<4x8xf32>
    %291 = vector.multi_reduction <add>, %290, %cst_191 [2] : vector<4x8x8xf32> to vector<4x8xf32>
    %292 = vector.shape_cast %291 : vector<4x8xf32> to vector<4x8x1xf32>
    %293 = tpu.reciprocal %292 {approx = true} : vector<4x8x1xf32> -> vector<4x8x1xf32>
    %294 = vector.broadcast %293 : vector<4x8x1xf32> to vector<4x8x8xf32>
    %295 = arith.mulf %290, %294 : vector<4x8x8xf32>
    %cst_192 = arith.constant dense<0.000000e+00> : vector<4x8x8xf32>
    %296 = tpu.matmul %295, %284, %cst_192 {dimension_numbers = #tpu.dot_dimension_numbers<[2], [1], [1], [2], [0, 0, 0, 1, 1, 2], [0], [0]>} : vector<4x8x8xf32>, vector<4x8x8xf32>, vector<4x8x8xf32> -> vector<4x8x8xf32>
    %297 = vector.shape_cast %296 : vector<4x8x8xf32> to vector<32x8xf32>
    %c6_193 = arith.constant 6 : index
    %c0_194 = arith.constant 0 : index
    %c0_195 = arith.constant 0 : index
    %298 = vector.load %arg7[%c6_193, %c0_194, %c0_195] : memref<8x32x8xf32, #tpu.memory_space<vmem>>, vector<1x32x8xf32>
    %299 = vector.shape_cast %298 : vector<1x32x8xf32> to vector<32x8xf32>
    %cst_196 = arith.constant dense<0.000000e+00> : vector<32x32xf32>
    %300 = tpu.matmul %297, %299, %cst_196 {dimension_numbers = #tpu.dot_dimension_numbers<[1], [1], [0], [0], [0, 0, 1, 0], [], []>} : vector<32x8xf32>, vector<32x8xf32>, vector<32x32xf32> -> vector<32x32xf32>
    %301 = arith.addf %260, %300 : vector<32x32xf32>
    %c15 = arith.constant 15 : index
    %c0_197 = arith.constant 0 : index
    %c0_198 = arith.constant 0 : index
    %302 = vector.load %arg5[%c15, %c0_197, %c0_198] : memref<24x8x32xf32, #tpu.memory_space<vmem>>, vector<1x8x32xf32>
    %303 = vector.shape_cast %302 : vector<1x8x32xf32> to vector<8x32xf32>
    %c15_199 = arith.constant 15 : index
    %c0_200 = arith.constant 0 : index
    %c0_201 = arith.constant 0 : index
    %304 = vector.load %arg6[%c15_199, %c0_200, %c0_201] : memref<24x1x8xf32, #tpu.memory_space<vmem>>, vector<1x1x8xf32>
    %305 = vector.shape_cast %304 : vector<1x1x8xf32> to vector<1x8xf32>
    %cst_202 = arith.constant dense<0.000000e+00> : vector<32x8xf32>
    %306 = tpu.matmul %175, %303, %cst_202 {dimension_numbers = #tpu.dot_dimension_numbers<[1], [1], [0], [0], [0, 0, 1, 0], [], []>} : vector<32x32xf32>, vector<8x32xf32>, vector<32x8xf32> -> vector<32x8xf32>
    %307 = vector.broadcast %305 : vector<1x8xf32> to vector<32x8xf32>
    %308 = arith.addf %306, %307 : vector<32x8xf32>
    %c19 = arith.constant 19 : index
    %c0_203 = arith.constant 0 : index
    %c0_204 = arith.constant 0 : index
    %309 = vector.load %arg5[%c19, %c0_203, %c0_204] : memref<24x8x32xf32, #tpu.memory_space<vmem>>, vector<1x8x32xf32>
    %310 = vector.shape_cast %309 : vector<1x8x32xf32> to vector<8x32xf32>
    %c19_205 = arith.constant 19 : index
    %c0_206 = arith.constant 0 : index
    %c0_207 = arith.constant 0 : index
    %311 = vector.load %arg6[%c19_205, %c0_206, %c0_207] : memref<24x1x8xf32, #tpu.memory_space<vmem>>, vector<1x1x8xf32>
    %312 = vector.shape_cast %311 : vector<1x1x8xf32> to vector<1x8xf32>
    %cst_208 = arith.constant dense<0.000000e+00> : vector<32x8xf32>
    %313 = tpu.matmul %175, %310, %cst_208 {dimension_numbers = #tpu.dot_dimension_numbers<[1], [1], [0], [0], [0, 0, 1, 0], [], []>} : vector<32x32xf32>, vector<8x32xf32>, vector<32x8xf32> -> vector<32x8xf32>
    %314 = vector.broadcast %312 : vector<1x8xf32> to vector<32x8xf32>
    %315 = arith.addf %313, %314 : vector<32x8xf32>
    %c23 = arith.constant 23 : index
    %c0_209 = arith.constant 0 : index
    %c0_210 = arith.constant 0 : index
    %316 = vector.load %arg5[%c23, %c0_209, %c0_210] : memref<24x8x32xf32, #tpu.memory_space<vmem>>, vector<1x8x32xf32>
    %317 = vector.shape_cast %316 : vector<1x8x32xf32> to vector<8x32xf32>
    %c23_211 = arith.constant 23 : index
    %c0_212 = arith.constant 0 : index
    %c0_213 = arith.constant 0 : index
    %318 = vector.load %arg6[%c23_211, %c0_212, %c0_213] : memref<24x1x8xf32, #tpu.memory_space<vmem>>, vector<1x1x8xf32>
    %319 = vector.shape_cast %318 : vector<1x1x8xf32> to vector<1x8xf32>
    %cst_214 = arith.constant dense<0.000000e+00> : vector<32x8xf32>
    %320 = tpu.matmul %175, %317, %cst_214 {dimension_numbers = #tpu.dot_dimension_numbers<[1], [1], [0], [0], [0, 0, 1, 0], [], []>} : vector<32x32xf32>, vector<8x32xf32>, vector<32x8xf32> -> vector<32x8xf32>
    %321 = vector.broadcast %319 : vector<1x8xf32> to vector<32x8xf32>
    %322 = arith.addf %320, %321 : vector<32x8xf32>
    %323 = vector.shape_cast %308 : vector<32x8xf32> to vector<4x8x8xf32>
    %324 = vector.shape_cast %315 : vector<32x8xf32> to vector<4x8x8xf32>
    %325 = vector.shape_cast %322 : vector<32x8xf32> to vector<4x8x8xf32>
    %cst_215 = arith.constant dense<0.000000e+00> : vector<4x8x8xf32>
    %326 = tpu.matmul %323, %324, %cst_215 {dimension_numbers = #tpu.dot_dimension_numbers<[2], [2], [1], [1], [0, 0, 0, 1, 1, 1], [0], [0]>} : vector<4x8x8xf32>, vector<4x8x8xf32>, vector<4x8x8xf32> -> vector<4x8x8xf32>
    %cst_216 = arith.constant dense<0xFF800000> : vector<4x8xf32>
    %327 = vector.multi_reduction <maximumf>, %326, %cst_216 [2] : vector<4x8x8xf32> to vector<4x8xf32>
    %328 = vector.shape_cast %327 : vector<4x8xf32> to vector<4x8x1xf32>
    %329 = vector.broadcast %328 : vector<4x8x1xf32> to vector<4x8x8xf32>
    %330 = arith.subf %326, %329 : vector<4x8x8xf32>
    %331 = math.exp %330 : vector<4x8x8xf32>
    %cst_217 = arith.constant dense<0.000000e+00> : vector<4x8xf32>
    %332 = vector.multi_reduction <add>, %331, %cst_217 [2] : vector<4x8x8xf32> to vector<4x8xf32>
    %333 = vector.shape_cast %332 : vector<4x8xf32> to vector<4x8x1xf32>
    %334 = tpu.reciprocal %333 {approx = true} : vector<4x8x1xf32> -> vector<4x8x1xf32>
    %335 = vector.broadcast %334 : vector<4x8x1xf32> to vector<4x8x8xf32>
    %336 = arith.mulf %331, %335 : vector<4x8x8xf32>
    %cst_218 = arith.constant dense<0.000000e+00> : vector<4x8x8xf32>
    %337 = tpu.matmul %336, %325, %cst_218 {dimension_numbers = #tpu.dot_dimension_numbers<[2], [1], [1], [2], [0, 0, 0, 1, 1, 2], [0], [0]>} : vector<4x8x8xf32>, vector<4x8x8xf32>, vector<4x8x8xf32> -> vector<4x8x8xf32>
    %338 = vector.shape_cast %337 : vector<4x8x8xf32> to vector<32x8xf32>
    %c7_219 = arith.constant 7 : index
    %c0_220 = arith.constant 0 : index
    %c0_221 = arith.constant 0 : index
    %339 = vector.load %arg7[%c7_219, %c0_220, %c0_221] : memref<8x32x8xf32, #tpu.memory_space<vmem>>, vector<1x32x8xf32>
    %340 = vector.shape_cast %339 : vector<1x32x8xf32> to vector<32x8xf32>
    %cst_222 = arith.constant dense<0.000000e+00> : vector<32x32xf32>
    %341 = tpu.matmul %338, %340, %cst_222 {dimension_numbers = #tpu.dot_dimension_numbers<[1], [1], [0], [0], [0, 0, 1, 0], [], []>} : vector<32x8xf32>, vector<32x8xf32>, vector<32x32xf32> -> vector<32x32xf32>
    %342 = arith.addf %301, %341 : vector<32x32xf32>
    %c1_223 = arith.constant 1 : index
    %c0_224 = arith.constant 0 : index
    %c0_225 = arith.constant 0 : index
    %343 = vector.load %arg3[%c1_223, %c0_224, %c0_225] : memref<2x32x16xf32, #tpu.memory_space<vmem>>, vector<1x32x16xf32>
    %344 = vector.shape_cast %343 : vector<1x32x16xf32> to vector<32x16xf32>
    %c1_226 = arith.constant 1 : index
    %c0_227 = arith.constant 0 : index
    %c0_228 = arith.constant 0 : index
    %345 = vector.load %arg4[%c1_226, %c0_227, %c0_228] : memref<2x1x32xf32, #tpu.memory_space<vmem>>, vector<1x1x32xf32>
    %346 = vector.shape_cast %345 : vector<1x1x32xf32> to vector<1x32xf32>
    %cst_229 = arith.constant dense<0.000000e+00> : vector<32x32xf32>
    %347 = tpu.matmul %1, %344, %cst_229 {dimension_numbers = #tpu.dot_dimension_numbers<[1], [1], [0], [0], [0, 0, 1, 0], [], []>} : vector<32x16xf32>, vector<32x16xf32>, vector<32x32xf32> -> vector<32x32xf32>
    %348 = vector.broadcast %346 : vector<1x32xf32> to vector<32x32xf32>
    %349 = arith.addf %347, %348 : vector<32x32xf32>
    %350 = arith.addf %342, %349 : vector<32x32xf32>
    %cst_230 = arith.constant 0.000000e+00 : f32
    %351 = vector.broadcast %cst_230 : f32 to vector<32x32xf32>
    %352 = arith.maximumf %350, %351 : vector<32x32xf32>
    %353 = vector.shape_cast %352 : vector<32x32xf32> to vector<4x8x32xf32>
    %cst_231 = arith.constant 1.000000e+00 : f32
    %354 = vector.broadcast %cst_231 : f32 to vector<1x8xf32>
    %c0_232 = arith.constant 0 : index
    %c0_233 = arith.constant 0 : index
    %355 = vector.load %arg9[%c0_232, %c0_233] : memref<8x32xf32, #tpu.memory_space<vmem>>, vector<8x32xf32>
    %356 = vector.shape_cast %355 : vector<8x32xf32> to vector<1x8x32xf32>
    %357 = vector.broadcast %356 : vector<1x8x32xf32> to vector<4x8x32xf32>
    %358 = arith.mulf %353, %357 : vector<4x8x32xf32>
    %cst_234 = arith.constant dense<0.000000e+00> : vector<4x8xf32>
    %359 = vector.multi_reduction <add>, %358, %cst_234 [2] : vector<4x8x32xf32> to vector<4x8xf32>
    %cst_235 = arith.constant dense<0.000000e+00> : vector<1x4xf32>
    %360 = tpu.matmul %354, %359, %cst_235 {dimension_numbers = #tpu.dot_dimension_numbers<[1], [1], [0], [0], [0, 0, 1, 0], [], []>} : vector<1x8xf32>, vector<4x8xf32>, vector<1x4xf32> -> vector<1x4xf32>
    %c0_236 = arith.constant 0 : index
    %c0_237 = arith.constant 0 : index
    %361 = vector.load %arg2[%c0_236, %c0_237] : memref<4x8xf32, #tpu.memory_space<vmem>>, vector<4x8xf32>
    %cst_238 = arith.constant dense<0.000000e+00> : vector<1x4xf32>
    %362 = tpu.matmul %354, %361, %cst_238 {dimension_numbers = #tpu.dot_dimension_numbers<[1], [1], [0], [0], [0, 0, 1, 0], [], []>} : vector<1x8xf32>, vector<4x8xf32>, vector<1x4xf32> -> vector<1x4xf32>
    %c0_239 = arith.constant 0 : index
    %c0_240 = arith.constant 0 : index
    %363 = vector.load %arg11[%c0_239, %c0_240] : memref<1x64xf32, #tpu.memory_space<vmem>>, vector<1x64xf32>
    %c0_241 = arith.constant 0 : index
    %c0_242 = arith.constant 0 : index
    %c0_243 = arith.constant 0 : index
    %364 = vector.load %arg1[%c0_241, %c0_242, %c0_243] : memref<4x8x16xf32, #tpu.memory_space<vmem>>, vector<4x1x16xf32>
    %365 = vector.shape_cast %364 : vector<4x1x16xf32> to vector<4x16xf32>
    %c0_244 = arith.constant 0 : index
    %c0_245 = arith.constant 0 : index
    %c0_246 = arith.constant 0 : index
    %366 = vector.load %arg10[%c0_244, %c0_245, %c0_246] : memref<8x64x16xf32, #tpu.memory_space<vmem>>, vector<1x64x16xf32>
    %367 = vector.shape_cast %366 : vector<1x64x16xf32> to vector<64x16xf32>
    %cst_247 = arith.constant dense<0.000000e+00> : vector<4x64xf32>
    %368 = tpu.matmul %365, %367, %cst_247 {dimension_numbers = #tpu.dot_dimension_numbers<[1], [1], [0], [0], [0, 0, 1, 0], [], []>} : vector<4x16xf32>, vector<64x16xf32>, vector<4x64xf32> -> vector<4x64xf32>
    %369 = vector.broadcast %363 : vector<1x64xf32> to vector<4x64xf32>
    %370 = arith.addf %369, %368 : vector<4x64xf32>
    %c0_248 = arith.constant 0 : index
    %c1_249 = arith.constant 1 : index
    %c0_250 = arith.constant 0 : index
    %371 = vector.load %arg1[%c0_248, %c1_249, %c0_250] : memref<4x8x16xf32, #tpu.memory_space<vmem>>, vector<4x1x16xf32>
    %372 = vector.shape_cast %371 : vector<4x1x16xf32> to vector<4x16xf32>
    %c1_251 = arith.constant 1 : index
    %c0_252 = arith.constant 0 : index
    %c0_253 = arith.constant 0 : index
    %373 = vector.load %arg10[%c1_251, %c0_252, %c0_253] : memref<8x64x16xf32, #tpu.memory_space<vmem>>, vector<1x64x16xf32>
    %374 = vector.shape_cast %373 : vector<1x64x16xf32> to vector<64x16xf32>
    %cst_254 = arith.constant dense<0.000000e+00> : vector<4x64xf32>
    %375 = tpu.matmul %372, %374, %cst_254 {dimension_numbers = #tpu.dot_dimension_numbers<[1], [1], [0], [0], [0, 0, 1, 0], [], []>} : vector<4x16xf32>, vector<64x16xf32>, vector<4x64xf32> -> vector<4x64xf32>
    %376 = arith.addf %370, %375 : vector<4x64xf32>
    %c0_255 = arith.constant 0 : index
    %c2_256 = arith.constant 2 : index
    %c0_257 = arith.constant 0 : index
    %377 = vector.load %arg1[%c0_255, %c2_256, %c0_257] : memref<4x8x16xf32, #tpu.memory_space<vmem>>, vector<4x1x16xf32>
    %378 = vector.shape_cast %377 : vector<4x1x16xf32> to vector<4x16xf32>
    %c2_258 = arith.constant 2 : index
    %c0_259 = arith.constant 0 : index
    %c0_260 = arith.constant 0 : index
    %379 = vector.load %arg10[%c2_258, %c0_259, %c0_260] : memref<8x64x16xf32, #tpu.memory_space<vmem>>, vector<1x64x16xf32>
    %380 = vector.shape_cast %379 : vector<1x64x16xf32> to vector<64x16xf32>
    %cst_261 = arith.constant dense<0.000000e+00> : vector<4x64xf32>
    %381 = tpu.matmul %378, %380, %cst_261 {dimension_numbers = #tpu.dot_dimension_numbers<[1], [1], [0], [0], [0, 0, 1, 0], [], []>} : vector<4x16xf32>, vector<64x16xf32>, vector<4x64xf32> -> vector<4x64xf32>
    %382 = arith.addf %376, %381 : vector<4x64xf32>
    %c0_262 = arith.constant 0 : index
    %c3_263 = arith.constant 3 : index
    %c0_264 = arith.constant 0 : index
    %383 = vector.load %arg1[%c0_262, %c3_263, %c0_264] : memref<4x8x16xf32, #tpu.memory_space<vmem>>, vector<4x1x16xf32>
    %384 = vector.shape_cast %383 : vector<4x1x16xf32> to vector<4x16xf32>
    %c3_265 = arith.constant 3 : index
    %c0_266 = arith.constant 0 : index
    %c0_267 = arith.constant 0 : index
    %385 = vector.load %arg10[%c3_265, %c0_266, %c0_267] : memref<8x64x16xf32, #tpu.memory_space<vmem>>, vector<1x64x16xf32>
    %386 = vector.shape_cast %385 : vector<1x64x16xf32> to vector<64x16xf32>
    %cst_268 = arith.constant dense<0.000000e+00> : vector<4x64xf32>
    %387 = tpu.matmul %384, %386, %cst_268 {dimension_numbers = #tpu.dot_dimension_numbers<[1], [1], [0], [0], [0, 0, 1, 0], [], []>} : vector<4x16xf32>, vector<64x16xf32>, vector<4x64xf32> -> vector<4x64xf32>
    %388 = arith.addf %382, %387 : vector<4x64xf32>
    %c0_269 = arith.constant 0 : index
    %c4_270 = arith.constant 4 : index
    %c0_271 = arith.constant 0 : index
    %389 = vector.load %arg1[%c0_269, %c4_270, %c0_271] : memref<4x8x16xf32, #tpu.memory_space<vmem>>, vector<4x1x16xf32>
    %390 = vector.shape_cast %389 : vector<4x1x16xf32> to vector<4x16xf32>
    %c4_272 = arith.constant 4 : index
    %c0_273 = arith.constant 0 : index
    %c0_274 = arith.constant 0 : index
    %391 = vector.load %arg10[%c4_272, %c0_273, %c0_274] : memref<8x64x16xf32, #tpu.memory_space<vmem>>, vector<1x64x16xf32>
    %392 = vector.shape_cast %391 : vector<1x64x16xf32> to vector<64x16xf32>
    %cst_275 = arith.constant dense<0.000000e+00> : vector<4x64xf32>
    %393 = tpu.matmul %390, %392, %cst_275 {dimension_numbers = #tpu.dot_dimension_numbers<[1], [1], [0], [0], [0, 0, 1, 0], [], []>} : vector<4x16xf32>, vector<64x16xf32>, vector<4x64xf32> -> vector<4x64xf32>
    %394 = arith.addf %388, %393 : vector<4x64xf32>
    %c0_276 = arith.constant 0 : index
    %c5_277 = arith.constant 5 : index
    %c0_278 = arith.constant 0 : index
    %395 = vector.load %arg1[%c0_276, %c5_277, %c0_278] : memref<4x8x16xf32, #tpu.memory_space<vmem>>, vector<4x1x16xf32>
    %396 = vector.shape_cast %395 : vector<4x1x16xf32> to vector<4x16xf32>
    %c5_279 = arith.constant 5 : index
    %c0_280 = arith.constant 0 : index
    %c0_281 = arith.constant 0 : index
    %397 = vector.load %arg10[%c5_279, %c0_280, %c0_281] : memref<8x64x16xf32, #tpu.memory_space<vmem>>, vector<1x64x16xf32>
    %398 = vector.shape_cast %397 : vector<1x64x16xf32> to vector<64x16xf32>
    %cst_282 = arith.constant dense<0.000000e+00> : vector<4x64xf32>
    %399 = tpu.matmul %396, %398, %cst_282 {dimension_numbers = #tpu.dot_dimension_numbers<[1], [1], [0], [0], [0, 0, 1, 0], [], []>} : vector<4x16xf32>, vector<64x16xf32>, vector<4x64xf32> -> vector<4x64xf32>
    %400 = arith.addf %394, %399 : vector<4x64xf32>
    %c0_283 = arith.constant 0 : index
    %c6_284 = arith.constant 6 : index
    %c0_285 = arith.constant 0 : index
    %401 = vector.load %arg1[%c0_283, %c6_284, %c0_285] : memref<4x8x16xf32, #tpu.memory_space<vmem>>, vector<4x1x16xf32>
    %402 = vector.shape_cast %401 : vector<4x1x16xf32> to vector<4x16xf32>
    %c6_286 = arith.constant 6 : index
    %c0_287 = arith.constant 0 : index
    %c0_288 = arith.constant 0 : index
    %403 = vector.load %arg10[%c6_286, %c0_287, %c0_288] : memref<8x64x16xf32, #tpu.memory_space<vmem>>, vector<1x64x16xf32>
    %404 = vector.shape_cast %403 : vector<1x64x16xf32> to vector<64x16xf32>
    %cst_289 = arith.constant dense<0.000000e+00> : vector<4x64xf32>
    %405 = tpu.matmul %402, %404, %cst_289 {dimension_numbers = #tpu.dot_dimension_numbers<[1], [1], [0], [0], [0, 0, 1, 0], [], []>} : vector<4x16xf32>, vector<64x16xf32>, vector<4x64xf32> -> vector<4x64xf32>
    %406 = arith.addf %400, %405 : vector<4x64xf32>
    %c0_290 = arith.constant 0 : index
    %c7_291 = arith.constant 7 : index
    %c0_292 = arith.constant 0 : index
    %407 = vector.load %arg1[%c0_290, %c7_291, %c0_292] : memref<4x8x16xf32, #tpu.memory_space<vmem>>, vector<4x1x16xf32>
    %408 = vector.shape_cast %407 : vector<4x1x16xf32> to vector<4x16xf32>
    %c7_293 = arith.constant 7 : index
    %c0_294 = arith.constant 0 : index
    %c0_295 = arith.constant 0 : index
    %409 = vector.load %arg10[%c7_293, %c0_294, %c0_295] : memref<8x64x16xf32, #tpu.memory_space<vmem>>, vector<1x64x16xf32>
    %410 = vector.shape_cast %409 : vector<1x64x16xf32> to vector<64x16xf32>
    %cst_296 = arith.constant dense<0.000000e+00> : vector<4x64xf32>
    %411 = tpu.matmul %408, %410, %cst_296 {dimension_numbers = #tpu.dot_dimension_numbers<[1], [1], [0], [0], [0, 0, 1, 0], [], []>} : vector<4x16xf32>, vector<64x16xf32>, vector<4x64xf32> -> vector<4x64xf32>
    %412 = arith.addf %406, %411 : vector<4x64xf32>
    %cst_297 = arith.constant 0.000000e+00 : f32
    %413 = vector.broadcast %cst_297 : f32 to vector<4x64xf32>
    %414 = arith.maximumf %412, %413 : vector<4x64xf32>
    %c0_298 = arith.constant 0 : index
    %c0_299 = arith.constant 0 : index
    %415 = vector.load %arg12[%c0_298, %c0_299] : memref<32x64xf32, #tpu.memory_space<vmem>>, vector<32x64xf32>
    %c0_300 = arith.constant 0 : index
    %c0_301 = arith.constant 0 : index
    %416 = vector.load %arg13[%c0_300, %c0_301] : memref<1x32xf32, #tpu.memory_space<vmem>>, vector<1x32xf32>
    %cst_302 = arith.constant dense<0.000000e+00> : vector<4x32xf32>
    %417 = tpu.matmul %414, %415, %cst_302 {dimension_numbers = #tpu.dot_dimension_numbers<[1], [1], [0], [0], [0, 0, 1, 0], [], []>} : vector<4x64xf32>, vector<32x64xf32>, vector<4x32xf32> -> vector<4x32xf32>
    %418 = vector.broadcast %416 : vector<1x32xf32> to vector<4x32xf32>
    %419 = arith.addf %417, %418 : vector<4x32xf32>
    %cst_303 = arith.constant 0.000000e+00 : f32
    %420 = vector.broadcast %cst_303 : f32 to vector<4x32xf32>
    %421 = arith.maximumf %419, %420 : vector<4x32xf32>
    %c0_304 = arith.constant 0 : index
    %c0_305 = arith.constant 0 : index
    %422 = vector.load %arg14[%c0_304, %c0_305] : memref<1x32xf32, #tpu.memory_space<vmem>>, vector<1x32xf32>
    %cst_306 = arith.constant dense<0.000000e+00> : vector<1x4xf32>
    %423 = tpu.matmul %422, %421, %cst_306 {dimension_numbers = #tpu.dot_dimension_numbers<[1], [1], [0], [0], [0, 0, 1, 0], [], []>} : vector<1x32xf32>, vector<4x32xf32>, vector<1x4xf32> -> vector<1x4xf32>
    %424 = arith.addf %362, %360 : vector<1x4xf32>
    %425 = arith.addf %424, %423 : vector<1x4xf32>
    %c0_307 = arith.constant 0 : index
    %c0_308 = arith.constant 0 : index
    %426 = vector.load %arg15[%c0_307, %c0_308] : memref<1x1xf32, #tpu.memory_space<vmem>>, vector<1x1xf32>
    %427 = vector.broadcast %426 : vector<1x1xf32> to vector<1x4xf32>
    %428 = arith.addf %425, %427 : vector<1x4xf32>
    %429 = math.absf %428 : vector<1x4xf32>
    %cst_309 = arith.constant 0.000000e+00 : f32
    %430 = vector.broadcast %cst_309 : f32 to vector<1x4xf32>
    %431 = arith.subf %430, %429 : vector<1x4xf32>
    %432 = math.exp %431 : vector<1x4xf32>
    %cst_310 = arith.constant 1.000000e+00 : f32
    %433 = vector.broadcast %cst_310 : f32 to vector<1x4xf32>
    %434 = arith.addf %433, %432 : vector<1x4xf32>
    %cst_311 = arith.constant 1.000000e+00 : f32
    %435 = vector.broadcast %cst_311 : f32 to vector<1x4xf32>
    %436 = arith.divf %435, %434 : vector<1x4xf32>
    %cst_312 = arith.constant 0.000000e+00 : f32
    %437 = vector.broadcast %cst_312 : f32 to vector<1x4xf32>
    %438 = arith.cmpf oge, %428, %437 : vector<1x4xf32>
    %cst_313 = arith.constant 1.000000e+00 : f32
    %439 = vector.broadcast %cst_313 : f32 to vector<1x4xf32>
    %440 = arith.subf %439, %436 : vector<1x4xf32>
    %441 = arith.select %438, %436, %440 : vector<1x4xi1>, vector<1x4xf32>
    %c0_314 = arith.constant 0 : index
    %c0_315 = arith.constant 0 : index
    %c0_316 = arith.constant 0 : index
    %442 = vector.load %arg16[%c0_314, %c0_315, %c0_316] : memref<1x1x4xf32, #tpu.memory_space<vmem>>, vector<1x1x4xf32>
    %443 = vector.shape_cast %442 : vector<1x1x4xf32> to vector<1x4xf32>
    %444 = vector.shape_cast %441 : vector<1x4xf32> to vector<1x1x4xf32>
    tpu.vector_store %arg16[%c0_314, %c0_315, %c0_316], %444 {strides = array<i32>} : memref<1x1x4xf32, #tpu.memory_space<vmem>>, vector<1x1x4xf32>,
    return
  }
  func.func @transform_0(%arg0: i32) -> (i32, i32, i32) {
    %c0_i32 = arith.constant 0 : i32
    %c0_i32_0 = arith.constant 0 : i32
    %c0_i32_1 = arith.constant 0 : i32
    return %arg0, %c0_i32, %c0_i32_0 : i32, i32, i32
  }
  func.func @transform_1(%arg0: i32) -> (i32, i32) {
    %c0_i32 = arith.constant 0 : i32
    %c0_i32_0 = arith.constant 0 : i32
    return %arg0, %c0_i32 : i32, i32
  }
  func.func @transform_2(%arg0: i32) -> (i32, i32, i32) {
    %c0_i32 = arith.constant 0 : i32
    %c0_i32_0 = arith.constant 0 : i32
    %c0_i32_1 = arith.constant 0 : i32
    %c0_i32_2 = arith.constant 0 : i32
    return %c0_i32, %c0_i32_0, %c0_i32_1 : i32, i32, i32
  }
  func.func @transform_3(%arg0: i32) -> (i32, i32, i32) {
    %c0_i32 = arith.constant 0 : i32
    %c0_i32_0 = arith.constant 0 : i32
    %c0_i32_1 = arith.constant 0 : i32
    %c0_i32_2 = arith.constant 0 : i32
    return %c0_i32, %c0_i32_0, %c0_i32_1 : i32, i32, i32
  }
  func.func @transform_4(%arg0: i32) -> (i32, i32, i32) {
    %c0_i32 = arith.constant 0 : i32
    %c0_i32_0 = arith.constant 0 : i32
    %c0_i32_1 = arith.constant 0 : i32
    %c0_i32_2 = arith.constant 0 : i32
    return %c0_i32, %c0_i32_0, %c0_i32_1 : i32, i32, i32
  }
  func.func @transform_5(%arg0: i32) -> (i32, i32, i32) {
    %c0_i32 = arith.constant 0 : i32
    %c0_i32_0 = arith.constant 0 : i32
    %c0_i32_1 = arith.constant 0 : i32
    %c0_i32_2 = arith.constant 0 : i32
    return %c0_i32, %c0_i32_0, %c0_i32_1 : i32, i32, i32
  }
  func.func @transform_6(%arg0: i32) -> (i32, i32, i32) {
    %c0_i32 = arith.constant 0 : i32
    %c0_i32_0 = arith.constant 0 : i32
    %c0_i32_1 = arith.constant 0 : i32
    %c0_i32_2 = arith.constant 0 : i32
    return %c0_i32, %c0_i32_0, %c0_i32_1 : i32, i32, i32
  }
  func.func @transform_7(%arg0: i32) -> (i32, i32, i32) {
    %c0_i32 = arith.constant 0 : i32
    %c0_i32_0 = arith.constant 0 : i32
    %c0_i32_1 = arith.constant 0 : i32
    %c0_i32_2 = arith.constant 0 : i32
    return %c0_i32, %c0_i32_0, %c0_i32_1 : i32, i32, i32
  }
  func.func @transform_8(%arg0: i32) -> (i32, i32) {
    %c0_i32 = arith.constant 0 : i32
    %c0_i32_0 = arith.constant 0 : i32
    %c0_i32_1 = arith.constant 0 : i32
    return %c0_i32, %c0_i32_0 : i32, i32
  }
  func.func @transform_9(%arg0: i32) -> (i32, i32, i32) {
    %c0_i32 = arith.constant 0 : i32
    %c0_i32_0 = arith.constant 0 : i32
    %c0_i32_1 = arith.constant 0 : i32
    %c0_i32_2 = arith.constant 0 : i32
    return %c0_i32, %c0_i32_0, %c0_i32_1 : i32, i32, i32
  }
  func.func @transform_10(%arg0: i32) -> (i32, i32) {
    %c0_i32 = arith.constant 0 : i32
    %c0_i32_0 = arith.constant 0 : i32
    %c0_i32_1 = arith.constant 0 : i32
    return %c0_i32, %c0_i32_0 : i32, i32
  }
  func.func @transform_11(%arg0: i32) -> (i32, i32) {
    %c0_i32 = arith.constant 0 : i32
    %c0_i32_0 = arith.constant 0 : i32
    %c0_i32_1 = arith.constant 0 : i32
    return %c0_i32, %c0_i32_0 : i32, i32
  }
  func.func @transform_12(%arg0: i32) -> (i32, i32) {
    %c0_i32 = arith.constant 0 : i32
    %c0_i32_0 = arith.constant 0 : i32
    %c0_i32_1 = arith.constant 0 : i32
    return %c0_i32, %c0_i32_0 : i32, i32
  }
  func.func @transform_13(%arg0: i32) -> (i32, i32) {
    %c0_i32 = arith.constant 0 : i32
    %c0_i32_0 = arith.constant 0 : i32
    %c0_i32_1 = arith.constant 0 : i32
    return %c0_i32, %c0_i32_0 : i32, i32
  }
  func.func @transform_14(%arg0: i32) -> (i32, i32) {
    %c0_i32 = arith.constant 0 : i32
    %c0_i32_0 = arith.constant 0 : i32
    %c0_i32_1 = arith.constant 0 : i32
    return %c0_i32, %c0_i32_0 : i32, i32
  }
  func.func @transform_15(%arg0: i32) -> (i32, i32, i32) {
    %c0_i32 = arith.constant 0 : i32
    %c0_i32_0 = arith.constant 0 : i32
    %c0_i32_1 = arith.constant 0 : i32
    return %arg0, %c0_i32, %c0_i32_0 : i32, i32, i32
  }
}

</mosaic_0001>

<llo_original>
// kernel: tpu_custom_call.1
$region0: #{tpu_custom_call.1}
  #allocation0 [shape = 'u32[]', space=smem, size = 0x4, offset = 0x4, fixed_abs, tag = 'smem constant byte address 0x4 - core index']
  #allocation1 [shape = 'u32[72,128]{1,0:T(1,128)}', space=vmem, size = 0x9000, scoped, tag = 'internal scratch']
  #allocation2 [shape = 'f32[1,1]{1,0:T(1,128)S(1)}', space=vmem, size = 0x200, scoped, tag = 'scoped memory for tpu_custom_call.1']
  %s0 = inlined_call_operand.vmem [shape: f32[4,8,16], index: 0, kind: input, shape index: {}]
  %s1 = inlined_call_operand.vmem [shape: f32[4,8], index: 1, kind: input, shape index: {}]
  %s2 = inlined_call_operand.vmem [shape: f32[2,32,16], index: 2, kind: input, shape index: {}]
  %s3 = inlined_call_operand.vmem [shape: f32[2,1,32], index: 3, kind: input, shape index: {}]
  %s4 = inlined_call_operand.vmem [shape: f32[24,8,32], index: 4, kind: input, shape index: {}]
  %s5 = inlined_call_operand.vmem [shape: f32[24,1,8], index: 5, kind: input, shape index: {}]
  %s6 = inlined_call_operand.vmem [shape: f32[8,32,8], index: 6, kind: input, shape index: {}]
  %s7 = inlined_call_operand.vmem [shape: f32[2,1,32], index: 7, kind: input, shape index: {}]
  %s8 = inlined_call_operand.vmem [shape: f32[8,32], index: 8, kind: input, shape index: {}]
  %s9 = inlined_call_operand.vmem [shape: f32[8,64,16], index: 9, kind: input, shape index: {}]
  %s10 = inlined_call_operand.vmem [shape: f32[1,64], index: 10, kind: input, shape index: {}]
  %s11 = inlined_call_operand.vmem [shape: f32[32,64], index: 11, kind: input, shape index: {}]
  %s12 = inlined_call_operand.vmem [shape: f32[1,32], index: 12, kind: input, shape index: {}]
  %s13 = inlined_call_operand.vmem [shape: f32[1,32], index: 13, kind: input, shape index: {}]
  %s14 = inlined_call_operand.<no memory space> [shape: f32[1,1], index: 14, kind: input, shape index: {}]
  %s15 = inlined_call_operand.hbm [shape: f32[1,1,4], index: 15, kind: output, shape index: {}]
  %s16 = sld [smem:[#allocation0]]
  $region70: #{tpu_custom_call.1} parent=0
    _
  %s18 = ssub.s32 1, %s16
  %s19 = scalar_select 0, %s18, %s16
  %v20 = vstv %s14
  %21 = vst [vmem:[#allocation2] sm:$0x1] %v20
  $region1: #{tpu_custom_call.1} parent=0
    #allocation3 [shape = 'u8[512]{0}', space=vmem, size = 0x400, scoped, tag = 'output window, operand 0, single buffered']
    #allocation4 [shape = 's32[1]{0}', space=sflag, size = 0x4, scoped, tag = 'scoped memory for tpu_custom_call.1']
    %22 = vsyncpa [#allocation4], 0
    // Predicated region
    $region2: #{tpu_custom_call.1} parent=1 // pred_check
      _
    $region3: #{tpu_custom_call.1} parent=1 // pred_check_branch
      %24 = sbr.rel (0) target = $region5
    $region4: #{tpu_custom_call.1} parent=1 // pred_region
      _
    $region5: #{tpu_custom_call.1} parent=1 // pred_fallthru
      _
    // Predicated region
    $region6: #{tpu_custom_call.1} parent=1 // pred_check
      _
    $region7: #{tpu_custom_call.1} parent=1 // pred_check_branch
      %26 = sbr.rel (0) target = $region9
    $region8: #{tpu_custom_call.1} parent=1 // pred_region
      _
    $region9: #{tpu_custom_call.1} parent=1 // pred_fallthru
      _
    // Predicated region
    $region10: #{tpu_custom_call.1} parent=1 // pred_check
      _
    $region11: #{tpu_custom_call.1} parent=1 // pred_check_branch
      %28 = sbr.rel (0) target = $region13
    $region12: #{tpu_custom_call.1} parent=1 // pred_region
      _
    $region13: #{tpu_custom_call.1} parent=1 // pred_fallthru
      _
    // Predicated region
    $region14: #{tpu_custom_call.1} parent=1 // pred_check
      _
    $region15: #{tpu_custom_call.1} parent=1 // pred_check_branch
      %30 = sbr.rel (0) target = $region17
    $region16: #{tpu_custom_call.1} parent=1 // pred_region
      _
    $region17: #{tpu_custom_call.1} parent=1 // pred_fallthru
      _
    // Predicated region
    $region18: #{tpu_custom_call.1} parent=1 // pred_check
      _
    $region19: #{tpu_custom_call.1} parent=1 // pred_check_branch
      %32 = sbr.rel (0) target = $region21
    $region20: #{tpu_custom_call.1} parent=1 // pred_region
      _
    $region21: #{tpu_custom_call.1} parent=1 // pred_fallthru
      _
    // Predicated region
    $region22: #{tpu_custom_call.1} parent=1 // pred_check
      _
    $region23: #{tpu_custom_call.1} parent=1 // pred_check_branch
      %34 = sbr.rel (0) target = $region25
    $region24: #{tpu_custom_call.1} parent=1 // pred_region
      _
    $region25: #{tpu_custom_call.1} parent=1 // pred_fallthru
      _
    // Predicated region
    $region26: #{tpu_custom_call.1} parent=1 // pred_check
      _
    $region27: #{tpu_custom_call.1} parent=1 // pred_check_branch
      %36 = sbr.rel (0) target = $region29
    $region28: #{tpu_custom_call.1} parent=1 // pred_region
      _
    $region29: #{tpu_custom_call.1} parent=1 // pred_fallthru
      _
    // Predicated region
    $region30: #{tpu_custom_call.1} parent=1 // pred_check
      _
    $region31: #{tpu_custom_call.1} parent=1 // pred_check_branch
      %38 = sbr.rel (0) target = $region33
    $region32: #{tpu_custom_call.1} parent=1 // pred_region
      _
    $region33: #{tpu_custom_call.1} parent=1 // pred_fallthru
      _
    // Predicated region
    $region34: #{tpu_custom_call.1} parent=1 // pred_check
      _
    $region35: #{tpu_custom_call.1} parent=1 // pred_check_branch
      %40 = sbr.rel (0) target = $region37
    $region36: #{tpu_custom_call.1} parent=1 // pred_region
      _
    $region37: #{tpu_custom_call.1} parent=1 // pred_fallthru
      _
    // Predicated region
    $region38: #{tpu_custom_call.1} parent=1 // pred_check
      _
    $region39: #{tpu_custom_call.1} parent=1 // pred_check_branch
      %42 = sbr.rel (0) target = $region41
    $region40: #{tpu_custom_call.1} parent=1 // pred_region
      _
    $region41: #{tpu_custom_call.1} parent=1 // pred_fallthru
      _
    // Predicated region
    $region42: #{tpu_custom_call.1} parent=1 // pred_check
      _
    $region43: #{tpu_custom_call.1} parent=1 // pred_check_branch
      %44 = sbr.rel (0) target = $region45
    $region44: #{tpu_custom_call.1} parent=1 // pred_region
      _
    $region45: #{tpu_custom_call.1} parent=1 // pred_fallthru
      _
    // Predicated region
    $region46: #{tpu_custom_call.1} parent=1 // pred_check
      _
    $region47: #{tpu_custom_call.1} parent=1 // pred_check_branch
      %46 = sbr.rel (0) target = $region49
    $region48: #{tpu_custom_call.1} parent=1 // pred_region
      _
    $region49: #{tpu_custom_call.1} parent=1 // pred_fallthru
      _
    // Predicated region
    $region50: #{tpu_custom_call.1} parent=1 // pred_check
      _
    $region51: #{tpu_custom_call.1} parent=1 // pred_check_branch
      %48 = sbr.rel (0) target = $region53
    $region52: #{tpu_custom_call.1} parent=1 // pred_region
      _
    $region53: #{tpu_custom_call.1} parent=1 // pred_fallthru
      _
    // Predicated region
    $region54: #{tpu_custom_call.1} parent=1 // pred_check
      _
    $region55: #{tpu_custom_call.1} parent=1 // pred_check_branch
      %50 = sbr.rel (0) target = $region57
    $region56: #{tpu_custom_call.1} parent=1 // pred_region
      _
    $region57: #{tpu_custom_call.1} parent=1 // pred_fallthru
      _
    // Predicated region
    $region58: #{tpu_custom_call.1} parent=1 // pred_check
      _
    $region59: #{tpu_custom_call.1} parent=1 // pred_check_branch
      %52 = sbr.rel (0) target = $region61
    $region60: #{tpu_custom_call.1} parent=1 // pred_region
      _
    $region61: #{tpu_custom_call.1} parent=1 // pred_fallthru
      _
    %v53 = vld [vmem:[%s0] sm:$0xff]
    %v54 = vld [vmem:[%s0 + $0x8] sm:$0xff]
    %v55 = vld [vmem:[%s0 + $0x10] sm:$0xff]
    %v56 = vld [vmem:[%s0 + $0x18] sm:$0xff]
    %v57 = vld [vmem:[%s2] sm:$0xff]
    %v58 = vld [vmem:[%s2 + $0x8] sm:$0xff]
    %v59 = vld [vmem:[%s2 + $0x10] sm:$0xff]
    %v60 = vld [vmem:[%s2 + $0x18] sm:$0xff]
    %v61 = vld [vmem:[%s3] sm:$0x1]
    %v63 = vperm.slane %v61, 0
    %vm65 = vcmask 130048
    %v67 = vsel %vm65, %v53, 0
    %v70 = vsel %vm65, %v54, 0
    %v73 = vsel %vm65, %v55, 0
    %v76 = vsel %vm65, %v56, 0
    %v79 = vsel %vm65, %v57, 0
    %v82 = vsel %vm65, %v58, 0
    %v85 = vsel %vm65, %v59, 0
    %v88 = vsel %vm65, %v60, 0
    %90 = vmatpush.xpose.msra.mxu0 0.0
    %91 = vmatpush.xpose.msra.mxu0 0.0
    %92 = vmatpush.xpose.msra.mxu0 0.0
    %93 = vmatpush.xpose.msra.mxu0 0.0
    %94 = vmatpush.xpose.msra.mxu0 0.0
    %95 = vmatpush.xpose.msra.mxu0 0.0
    %96 = vmatpush.xpose.msra.mxu0 0.0
    %97 = vmatpush.xpose.msra.mxu0 0.0
    %98 = vmatpush.xpose.msra.mxu0 0.0
    %99 = vmatpush.xpose.msra.mxu0 0.0
    %100 = vmatpush.xpose.msra.mxu0 0.0
    %101 = vmatpush.xpose.msra.mxu0 0.0
    %102 = vmatpush.xpose.msra.mxu0 %v88
    %103 = vmatpush.xpose.msra.mxu0 %v85
    %104 = vmatpush.xpose.msra.mxu0 %v82
    %105 = vmatpush.xpose.msra.mxu0 %v79
    %106 = vmatmul.f32.gmra.mxu0 %v67
    %v107 = vpop.f32.mrf.mxu0
    %v108 = vadd.f32 %v63, %v107
    %109 = vmatmul.f32.gmra.mxu0 %v70
    %v110 = vpop.f32.mrf.mxu0
    %v111 = vadd.f32 %v63, %v110
    %112 = vmatmul.f32.gmra.mxu0 %v73
    %v113 = vpop.f32.mrf.mxu0
    %v114 = vadd.f32 %v63, %v113
    %115 = vmatmul.f32.gmra.mxu0 %v76
    %v116 = vpop.f32.mrf.mxu0
    %v117 = vadd.f32 %v63, %v116
    %118 = vdwg.mxu0
    %v119 = vld [vmem:[%s7] sm:$0x1]
    %v120 = vld [vmem:[%s4] sm:$0xff]
    %v121 = vld [vmem:[%s5] sm:$0x1]
    %v123 = vperm.slane %v121, 0
    %vm125 = vcmask 261120
    %v127 = vsel %vm125, %v108, 0
    %v130 = vsel %vm125, %v111, 0
    %v133 = vsel %vm125, %v114, 0
    %v136 = vsel %vm125, %v117, 0
    %v139 = vsel %vm125, %v120, 0
    %141 = vmatpush.xpose.msra.mxu0 0.0
    %142 = vmatpush.xpose.msra.mxu0 0.0
    %143 = vmatpush.xpose.msra.mxu0 0.0
    %144 = vmatpush.xpose.msra.mxu0 0.0
    %145 = vmatpush.xpose.msra.mxu0 0.0
    %146 = vmatpush.xpose.msra.mxu0 0.0
    %147 = vmatpush.xpose.msra.mxu0 0.0
    %148 = vmatpush.xpose.msra.mxu0 0.0
    %149 = vmatpush.xpose.msra.mxu0 0.0
    %150 = vmatpush.xpose.msra.mxu0 0.0
    %151 = vmatpush.xpose.msra.mxu0 0.0
    %152 = vmatpush.xpose.msra.mxu0 0.0
    %153 = vmatpush.xpose.msra.mxu0 0.0
    %154 = vmatpush.xpose.msra.mxu0 0.0
    %155 = vmatpush.xpose.msra.mxu0 0.0
    %156 = vmatpush.xpose.msra.mxu0 %v139
    %157 = vmatmul.f32.gmra.mxu0 %v127
    %v158 = vpop.f32.mrf.mxu0
    %v159 = vadd.f32 %v123, %v158
    %160 = vmatmul.f32.gmra.mxu0 %v130
    %v161 = vpop.f32.mrf.mxu0
    %v162 = vadd.f32 %v123, %v161
    %163 = vmatmul.f32.gmra.mxu0 %v133
    %v164 = vpop.f32.mrf.mxu0
    %v165 = vadd.f32 %v123, %v164
    %166 = vmatmul.f32.gmra.mxu0 %v136
    %v167 = vpop.f32.mrf.mxu0
    %v168 = vadd.f32 %v123, %v167
    %169 = vdwg.mxu0
    %s170 = scalar_lea.vmem %s4, 32
    %v171 = vld [vmem:[%s170] sm:$0xff]
    %s172 = scalar_lea.vmem %s5, 4
    %v173 = vld [vmem:[%s172] sm:$0x1]
    %v175 = vperm.slane %v173, 0
    %v178 = vsel %vm125, %v171, 0
    %180 = vmatpush.xpose.msra.mxu0 0.0
    %181 = vmatpush.xpose.msra.mxu0 0.0
    %182 = vmatpush.xpose.msra.mxu0 0.0
    %183 = vmatpush.xpose.msra.mxu0 0.0
    %184 = vmatpush.xpose.msra.mxu0 0.0
    %185 = vmatpush.xpose.msra.mxu0 0.0
    %186 = vmatpush.xpose.msra.mxu0 0.0
    %187 = vmatpush.xpose.msra.mxu0 0.0
    %188 = vmatpush.xpose.msra.mxu0 0.0
    %189 = vmatpush.xpose.msra.mxu0 0.0
    %190 = vmatpush.xpose.msra.mxu0 0.0
    %191 = vmatpush.xpose.msra.mxu0 0.0
    %192 = vmatpush.xpose.msra.mxu0 0.0
    %193 = vmatpush.xpose.msra.mxu0 0.0
    %194 = vmatpush.xpose.msra.mxu0 0.0
    %195 = vmatpush.xpose.msra.mxu0 %v178
    %196 = vmatmul.f32.gmra.mxu0 %v127
    %v197 = vpop.f32.mrf.mxu0
    %v198 = vadd.f32 %v175, %v197
    %199 = vmatmul.f32.gmra.mxu0 %v130
    %v200 = vpop.f32.mrf.mxu0
    %v201 = vadd.f32 %v175, %v200
    %202 = vmatmul.f32.gmra.mxu0 %v133
    %v203 = vpop.f32.mrf.mxu0
    %v204 = vadd.f32 %v175, %v203
    %205 = vmatmul.f32.gmra.mxu0 %v136
    %v206 = vpop.f32.mrf.mxu0
    %v207 = vadd.f32 %v175, %v206
    %208 = vdwg.mxu0
    %s209 = scalar_lea.vmem %s4, 64
    %v210 = vld [vmem:[%s209] sm:$0xff]
    %s211 = scalar_lea.vmem %s5, 8
    %v212 = vld [vmem:[%s211] sm:$0x1]
    %v214 = vperm.slane %v212, 0
    %v217 = vsel %vm125, %v210, 0
    %219 = vmatpush.xpose.msra.mxu0 0.0
    %220 = vmatpush.xpose.msra.mxu0 0.0
    %221 = vmatpush.xpose.msra.mxu0 0.0
    %222 = vmatpush.xpose.msra.mxu0 0.0
    %223 = vmatpush.xpose.msra.mxu0 0.0
    %224 = vmatpush.xpose.msra.mxu0 0.0
    %225 = vmatpush.xpose.msra.mxu0 0.0
    %226 = vmatpush.xpose.msra.mxu0 0.0
    %227 = vmatpush.xpose.msra.mxu0 0.0
    %228 = vmatpush.xpose.msra.mxu0 0.0
    %229 = vmatpush.xpose.msra.mxu0 0.0
    %230 = vmatpush.xpose.msra.mxu0 0.0
    %231 = vmatpush.xpose.msra.mxu0 0.0
    %232 = vmatpush.xpose.msra.mxu0 0.0
    %233 = vmatpush.xpose.msra.mxu0 0.0
    %234 = vmatpush.xpose.msra.mxu0 %v217
    %235 = vmatmul.f32.gmra.mxu0 %v127
    %v236 = vpop.f32.mrf.mxu0
    %v237 = vadd.f32 %v214, %v236
    %238 = vmatmul.f32.gmra.mxu0 %v130
    %v239 = vpop.f32.mrf.mxu0
    %v240 = vadd.f32 %v214, %v239
    %241 = vmatmul.f32.gmra.mxu0 %v133
    %v242 = vpop.f32.mrf.mxu0
    %v243 = vadd.f32 %v214, %v242
    %244 = vmatmul.f32.gmra.mxu0 %v136
    %v245 = vpop.f32.mrf.mxu0
    %v246 = vadd.f32 %v214, %v245
    %247 = vdwg.mxu0
    %vm248 = vcmask 64512
    %v250 = vsel %vm248, %v159, 0
    %v253 = vsel %vm248, %v198, 0
    %255 = vmatpush.xpose.msra.mxu0 0.0
    %256 = vmatpush.xpose.msra.mxu0 0.0
    %257 = vmatpush.xpose.msra.mxu0 0.0
    %258 = vmatpush.xpose.msra.mxu0 0.0
    %259 = vmatpush.xpose.msra.mxu0 0.0
    %260 = vmatpush.xpose.msra.mxu0 0.0
    %261 = vmatpush.xpose.msra.mxu0 0.0
    %262 = vmatpush.xpose.msra.mxu0 0.0
    %263 = vmatpush.xpose.msra.mxu0 0.0
    %264 = vmatpush.xpose.msra.mxu0 0.0
    %265 = vmatpush.xpose.msra.mxu0 0.0
    %266 = vmatpush.xpose.msra.mxu0 0.0
    %267 = vmatpush.xpose.msra.mxu0 0.0
    %268 = vmatpush.xpose.msra.mxu0 0.0
    %269 = vmatpush.xpose.msra.mxu0 0.0
    %270 = vmatpush.xpose.msra.mxu0 %v253
    %271 = vmatmul.f32.gmra.mxu0 %v250
    %v272 = vpop.f32.mrf.mxu0
    %v273 = vadd.f32 0.0, %v272
    %274 = vdwg.mxu0
    %v276 = vsel %vm248, %v162, 0
    %v279 = vsel %vm248, %v201, 0
    %281 = vmatpush.xpose.msra.mxu0 0.0
    %282 = vmatpush.xpose.msra.mxu0 0.0
    %283 = vmatpush.xpose.msra.mxu0 0.0
    %284 = vmatpush.xpose.msra.mxu0 0.0
    %285 = vmatpush.xpose.msra.mxu0 0.0
    %286 = vmatpush.xpose.msra.mxu0 0.0
    %287 = vmatpush.xpose.msra.mxu0 0.0
    %288 = vmatpush.xpose.msra.mxu0 0.0
    %289 = vmatpush.xpose.msra.mxu0 0.0
    %290 = vmatpush.xpose.msra.mxu0 0.0
    %291 = vmatpush.xpose.msra.mxu0 0.0
    %292 = vmatpush.xpose.msra.mxu0 0.0
    %293 = vmatpush.xpose.msra.mxu0 0.0
    %294 = vmatpush.xpose.msra.mxu0 0.0
    %295 = vmatpush.xpose.msra.mxu0 0.0
    %296 = vmatpush.xpose.msra.mxu0 %v279
    %297 = vmatmul.f32.gmra.mxu0 %v276
    %v298 = vpop.f32.mrf.mxu0
    %v299 = vadd.f32 0.0, %v298
    %300 = vdwg.mxu0
    %v302 = vsel %vm248, %v165, 0
    %v305 = vsel %vm248, %v204, 0
    %307 = vmatpush.xpose.msra.mxu0 0.0
    %308 = vmatpush.xpose.msra.mxu0 0.0
    %309 = vmatpush.xpose.msra.mxu0 0.0
    %310 = vmatpush.xpose.msra.mxu0 0.0
    %311 = vmatpush.xpose.msra.mxu0 0.0
    %312 = vmatpush.xpose.msra.mxu0 0.0
    %313 = vmatpush.xpose.msra.mxu0 0.0
    %314 = vmatpush.xpose.msra.mxu0 0.0
    %315 = vmatpush.xpose.msra.mxu0 0.0
    %316 = vmatpush.xpose.msra.mxu0 0.0
    %317 = vmatpush.xpose.msra.mxu0 0.0
    %318 = vmatpush.xpose.msra.mxu0 0.0
    %319 = vmatpush.xpose.msra.mxu0 0.0
    %320 = vmatpush.xpose.msra.mxu0 0.0
    %321 = vmatpush.xpose.msra.mxu0 0.0
    %322 = vmatpush.xpose.msra.mxu0 %v305
    %323 = vmatmul.f32.gmra.mxu0 %v302
    %v324 = vpop.f32.mrf.mxu0
    %v325 = vadd.f32 0.0, %v324
    %326 = vdwg.mxu0
    %v328 = vsel %vm248, %v168, 0
    %v331 = vsel %vm248, %v207, 0
    %333 = vmatpush.xpose.msra.mxu0 0.0
    %334 = vmatpush.xpose.msra.mxu0 0.0
    %335 = vmatpush.xpose.msra.mxu0 0.0
    %336 = vmatpush.xpose.msra.mxu0 0.0
    %337 = vmatpush.xpose.msra.mxu0 0.0
    %338 = vmatpush.xpose.msra.mxu0 0.0
    %339 = vmatpush.xpose.msra.mxu0 0.0
    %340 = vmatpush.xpose.msra.mxu0 0.0
    %341 = vmatpush.xpose.msra.mxu0 0.0
    %342 = vmatpush.xpose.msra.mxu0 0.0
    %343 = vmatpush.xpose.msra.mxu0 0.0
    %344 = vmatpush.xpose.msra.mxu0 0.0
    %345 = vmatpush.xpose.msra.mxu0 0.0
    %346 = vmatpush.xpose.msra.mxu0 0.0
    %347 = vmatpush.xpose.msra.mxu0 0.0
    %348 = vmatpush.xpose.msra.mxu0 %v331
    %349 = vmatmul.f32.gmra.mxu0 %v328
    %v350 = vpop.f32.mrf.mxu0
    %v351 = vadd.f32 0.0, %v350
    %352 = vdwg.mxu0
    %v353 = vsel %vm248, %v273, -inf
    %354 = vmax.xlane.f32.xlu0 %v353
    %v355 = vpop.xlane.xlu0 %354
    %v356 = vsel %vm248, %v299, -inf
    %357 = vmax.xlane.f32.xlu0 %v356
    %v358 = vpop.xlane.xlu0 %357
    %v359 = vsel %vm248, %v325, -inf
    %360 = vmax.xlane.f32.xlu0 %v359
    %v361 = vpop.xlane.xlu0 %360
    %v362 = vsel %vm248, %v351, -inf
    %363 = vmax.xlane.f32.xlu0 %v362
    %v364 = vpop.xlane.xlu0 %363
    %v365 = vsub.f32 %v273, %v355
    %v366 = vsub.f32 %v299, %v358
    %v367 = vsub.f32 %v325, %v361
    %v368 = vsub.f32 %v351, %v364
    %v369 = vmul.f32 %v365, 1.442695
    %v370 = vpow.pop %v369
    %v371 = vmul.f32 %v366, 1.442695
    %v372 = vpow.pop %v371
    %v373 = vmul.f32 %v367, 1.442695
    %v374 = vpow.pop %v373
    %v375 = vmul.f32 %v368, 1.442695
    %v376 = vpow.pop %v375
    %v377 = vsel %vm248, %v370, 0.0
    %378 = vadd.xlane.f32.xlu0 %v377
    %v379 = vpop.xlane.xlu0 %378
    %v380 = vsel %vm248, %v372, 0.0
    %381 = vadd.xlane.f32.xlu0 %v380
    %v382 = vpop.xlane.xlu0 %381
    %v383 = vsel %vm248, %v374, 0.0
    %384 = vadd.xlane.f32.xlu0 %v383
    %v385 = vpop.xlane.xlu0 %384
    %v386 = vsel %vm248, %v376, 0.0
    %387 = vadd.xlane.f32.xlu0 %v386
    %v388 = vpop.xlane.xlu0 %387
    %v389 = vrcp.pop %v379
    %v390 = vrcp.pop %v382
    %v391 = vrcp.pop %v385
    %v392 = vrcp.pop %v388
    %v393 = vmul.f32 %v370, %v389
    %v394 = vmul.f32 %v372, %v390
    %v395 = vmul.f32 %v374, %v391
    %v396 = vmul.f32 %v376, %v392
    %v398 = vsel %vm248, %v393, 0
    %400 = vmatpush.msra.mxu0 0.0
    %401 = vmatpush.msra.mxu0 0.0
    %402 = vmatpush.msra.mxu0 0.0
    %403 = vmatpush.msra.mxu0 0.0
    %404 = vmatpush.msra.mxu0 0.0
    %405 = vmatpush.msra.mxu0 0.0
    %406 = vmatpush.msra.mxu0 0.0
    %407 = vmatpush.msra.mxu0 0.0
    %408 = vmatpush.msra.mxu0 0.0
    %409 = vmatpush.msra.mxu0 0.0
    %410 = vmatpush.msra.mxu0 0.0
    %411 = vmatpush.msra.mxu0 0.0
    %412 = vmatpush.msra.mxu0 0.0
    %413 = vmatpush.msra.mxu0 0.0
    %414 = vmatpush.msra.mxu0 0.0
    %415 = vmatpush.msra.mxu0 %v237
    %416 = vmatmul.f32.gmra.mxu0 %v398
    %v417 = vpop.f32.mrf.mxu0
    %v418 = vadd.f32 0.0, %v417
    %419 = vdwg.mxu0
    %v421 = vsel %vm248, %v394, 0
    %423 = vmatpush.msra.mxu0 0.0
    %424 = vmatpush.msra.mxu0 0.0
    %425 = vmatpush.msra.mxu0 0.0
    %426 = vmatpush.msra.mxu0 0.0
    %427 = vmatpush.msra.mxu0 0.0
    %428 = vmatpush.msra.mxu0 0.0
    %429 = vmatpush.msra.mxu0 0.0
    %430 = vmatpush.msra.mxu0 0.0
    %431 = vmatpush.msra.mxu0 0.0
    %432 = vmatpush.msra.mxu0 0.0
    %433 = vmatpush.msra.mxu0 0.0
    %434 = vmatpush.msra.mxu0 0.0
    %435 = vmatpush.msra.mxu0 0.0
    %436 = vmatpush.msra.mxu0 0.0
    %437 = vmatpush.msra.mxu0 0.0
    %438 = vmatpush.msra.mxu0 %v240
    %439 = vmatmul.f32.gmra.mxu0 %v421
    %v440 = vpop.f32.mrf.mxu0
    %v441 = vadd.f32 0.0, %v440
    %442 = vdwg.mxu0
    %v444 = vsel %vm248, %v395, 0
    %446 = vmatpush.msra.mxu0 0.0
    %447 = vmatpush.msra.mxu0 0.0
    %448 = vmatpush.msra.mxu0 0.0
    %449 = vmatpush.msra.mxu0 0.0
    %450 = vmatpush.msra.mxu0 0.0
    %451 = vmatpush.msra.mxu0 0.0
    %452 = vmatpush.msra.mxu0 0.0
    %453 = vmatpush.msra.mxu0 0.0
    %454 = vmatpush.msra.mxu0 0.0
    %455 = vmatpush.msra.mxu0 0.0
    %456 = vmatpush.msra.mxu0 0.0
    %457 = vmatpush.msra.mxu0 0.0
    %458 = vmatpush.msra.mxu0 0.0
    %459 = vmatpush.msra.mxu0 0.0
    %460 = vmatpush.msra.mxu0 0.0
    %461 = vmatpush.msra.mxu0 %v243
    %462 = vmatmul.f32.gmra.mxu0 %v444
    %v463 = vpop.f32.mrf.mxu0
    %v464 = vadd.f32 0.0, %v463
    %465 = vdwg.mxu0
    %v467 = vsel %vm248, %v396, 0
    %469 = vmatpush.msra.mxu0 0.0
    %470 = vmatpush.msra.mxu0 0.0
    %471 = vmatpush.msra.mxu0 0.0
    %472 = vmatpush.msra.mxu0 0.0
    %473 = vmatpush.msra.mxu0 0.0
    %474 = vmatpush.msra.mxu0 0.0
    %475 = vmatpush.msra.mxu0 0.0
    %476 = vmatpush.msra.mxu0 0.0
    %477 = vmatpush.msra.mxu0 0.0
    %478 = vmatpush.msra.mxu0 0.0
    %479 = vmatpush.msra.mxu0 0.0
    %480 = vmatpush.msra.mxu0 0.0
    %481 = vmatpush.msra.mxu0 0.0
    %482 = vmatpush.msra.mxu0 0.0
    %483 = vmatpush.msra.mxu0 0.0
    %484 = vmatpush.msra.mxu0 %v246
    %485 = vmatmul.f32.gmra.mxu0 %v467
    %v486 = vpop.f32.mrf.mxu0
    %v487 = vadd.f32 0.0, %v486
    %488 = vdwg.mxu0
    %v489 = vld [vmem:[%s6] sm:$0xff]
    %v490 = vld [vmem:[%s6 + $0x8] sm:$0xff]
    %v491 = vld [vmem:[%s6 + $0x10] sm:$0xff]
    %v492 = vld [vmem:[%s6 + $0x18] sm:$0xff]
    %v494 = vsel %vm248, %v418, 0
    %v497 = vsel %vm248, %v441, 0
    %v500 = vsel %vm248, %v464, 0
    %v503 = vsel %vm248, %v487, 0
    %v506 = vsel %vm248, %v489, 0
    %v509 = vsel %vm248, %v490, 0
    %v512 = vsel %vm248, %v491, 0
    %v515 = vsel %vm248, %v492, 0
    %517 = vmatpush.xpose.msra.mxu0 0.0
    %518 = vmatpush.xpose.msra.mxu0 0.0
    %519 = vmatpush.xpose.msra.mxu0 0.0
    %520 = vmatpush.xpose.msra.mxu0 0.0
    %521 = vmatpush.xpose.msra.mxu0 0.0
    %522 = vmatpush.xpose.msra.mxu0 0.0
    %523 = vmatpush.xpose.msra.mxu0 0.0
    %524 = vmatpush.xpose.msra.mxu0 0.0
    %525 = vmatpush.xpose.msra.mxu0 0.0
    %526 = vmatpush.xpose.msra.mxu0 0.0
    %527 = vmatpush.xpose.msra.mxu0 0.0
    %528 = vmatpush.xpose.msra.mxu0 0.0
    %529 = vmatpush.xpose.msra.mxu0 %v515
    %530 = vmatpush.xpose.msra.mxu0 %v512
    %531 = vmatpush.xpose.msra.mxu0 %v509
    %532 = vmatpush.xpose.msra.mxu0 %v506
    %533 = vmatmul.f32.gmra.mxu0 %v494
    %v534 = vpop.f32.mrf.mxu0
    %v535 = vadd.f32 0.0, %v534
    %536 = vmatmul.f32.gmra.mxu0 %v497
    %v537 = vpop.f32.mrf.mxu0
    %v538 = vadd.f32 0.0, %v537
    %539 = vmatmul.f32.gmra.mxu0 %v500
    %v540 = vpop.f32.mrf.mxu0
    %v541 = vadd.f32 0.0, %v540
    %542 = vmatmul.f32.gmra.mxu0 %v503
    %v543 = vpop.f32.mrf.mxu0
    %v544 = vadd.f32 0.0, %v543
    %545 = vdwg.mxu0
    %v547 = vperm.slane %v119, 0
    %v549 = vadd.f32 %v547, %v535
    %v550 = vadd.f32 %v547, %v538
    %v551 = vadd.f32 %v547, %v541
    %v552 = vadd.f32 %v547, %v544
    %s553 = scalar_lea.vmem %s4, 8
    %v554 = vld [vmem:[%s553] sm:$0xff]
    %s555 = scalar_lea.vmem %s5, 1
    %v556 = vld [vmem:[%s555] sm:$0x1]
    %v558 = vperm.slane %v556, 0
    %v561 = vsel %vm125, %v554, 0
    %563 = vmatpush.xpose.msra.mxu0 0.0
    %564 = vmatpush.xpose.msra.mxu0 0.0
    %565 = vmatpush.xpose.msra.mxu0 0.0
    %566 = vmatpush.xpose.msra.mxu0 0.0
    %567 = vmatpush.xpose.msra.mxu0 0.0
    %568 = vmatpush.xpose.msra.mxu0 0.0
    %569 = vmatpush.xpose.msra.mxu0 0.0
    %570 = vmatpush.xpose.msra.mxu0 0.0
    %571 = vmatpush.xpose.msra.mxu0 0.0
    %572 = vmatpush.xpose.msra.mxu0 0.0
    %573 = vmatpush.xpose.msra.mxu0 0.0
    %574 = vmatpush.xpose.msra.mxu0 0.0
    %575 = vmatpush.xpose.msra.mxu0 0.0
    %576 = vmatpush.xpose.msra.mxu0 0.0
    %577 = vmatpush.xpose.msra.mxu0 0.0
    %578 = vmatpush.xpose.msra.mxu0 %v561
    %579 = vmatmul.f32.gmra.mxu0 %v127
    %v580 = vpop.f32.mrf.mxu0
    %v581 = vadd.f32 %v558, %v580
    %582 = vmatmul.f32.gmra.mxu0 %v130
    %v583 = vpop.f32.mrf.mxu0
    %v584 = vadd.f32 %v558, %v583
    %585 = vmatmul.f32.gmra.mxu0 %v133
    %v586 = vpop.f32.mrf.mxu0
    %v587 = vadd.f32 %v558, %v586
    %588 = vmatmul.f32.gmra.mxu0 %v136
    %v589 = vpop.f32.mrf.mxu0
    %v590 = vadd.f32 %v558, %v589
    %591 = vdwg.mxu0
    %s592 = scalar_lea.vmem %s4, 40
    %v593 = vld [vmem:[%s592] sm:$0xff]
    %s594 = scalar_lea.vmem %s5, 5
    %v595 = vld [vmem:[%s594] sm:$0x1]
    %v597 = vperm.slane %v595, 0
    %v600 = vsel %vm125, %v593, 0
    %602 = vmatpush.xpose.msra.mxu0 0.0
    %603 = vmatpush.xpose.msra.mxu0 0.0
    %604 = vmatpush.xpose.msra.mxu0 0.0
    %605 = vmatpush.xpose.msra.mxu0 0.0
    %606 = vmatpush.xpose.msra.mxu0 0.0
    %607 = vmatpush.xpose.msra.mxu0 0.0
    %608 = vmatpush.xpose.msra.mxu0 0.0
    %609 = vmatpush.xpose.msra.mxu0 0.0
    %610 = vmatpush.xpose.msra.mxu0 0.0
    %611 = vmatpush.xpose.msra.mxu0 0.0
    %612 = vmatpush.xpose.msra.mxu0 0.0
    %613 = vmatpush.xpose.msra.mxu0 0.0
    %614 = vmatpush.xpose.msra.mxu0 0.0
    %615 = vmatpush.xpose.msra.mxu0 0.0
    %616 = vmatpush.xpose.msra.mxu0 0.0
    %617 = vmatpush.xpose.msra.mxu0 %v600
    %618 = vmatmul.f32.gmra.mxu0 %v127
    %v619 = vpop.f32.mrf.mxu0
    %v620 = vadd.f32 %v597, %v619
    %621 = vmatmul.f32.gmra.mxu0 %v130
    %v622 = vpop.f32.mrf.mxu0
    %v623 = vadd.f32 %v597, %v622
    %624 = vmatmul.f32.gmra.mxu0 %v133
    %v625 = vpop.f32.mrf.mxu0
    %v626 = vadd.f32 %v597, %v625
    %627 = vmatmul.f32.gmra.mxu0 %v136
    %v628 = vpop.f32.mrf.mxu0
    %v629 = vadd.f32 %v597, %v628
    %630 = vdwg.mxu0
    %s631 = scalar_lea.vmem %s4, 72
    %v632 = vld [vmem:[%s631] sm:$0xff]
    %s633 = scalar_lea.vmem %s5, 9
    %v634 = vld [vmem:[%s633] sm:$0x1]
    %v636 = vperm.slane %v634, 0
    %v639 = vsel %vm125, %v632, 0
    %641 = vmatpush.xpose.msra.mxu0 0.0
    %642 = vmatpush.xpose.msra.mxu0 0.0
    %643 = vmatpush.xpose.msra.mxu0 0.0
    %644 = vmatpush.xpose.msra.mxu0 0.0
    %645 = vmatpush.xpose.msra.mxu0 0.0
    %646 = vmatpush.xpose.msra.mxu0 0.0
    %647 = vmatpush.xpose.msra.mxu0 0.0
    %648 = vmatpush.xpose.msra.mxu0 0.0
    %649 = vmatpush.xpose.msra.mxu0 0.0
    %650 = vmatpush.xpose.msra.mxu0 0.0
    %651 = vmatpush.xpose.msra.mxu0 0.0
    %652 = vmatpush.xpose.msra.mxu0 0.0
    %653 = vmatpush.xpose.msra.mxu0 0.0
    %654 = vmatpush.xpose.msra.mxu0 0.0
    %655 = vmatpush.xpose.msra.mxu0 0.0
    %656 = vmatpush.xpose.msra.mxu0 %v639
    %657 = vmatmul.f32.gmra.mxu0 %v127
    %v658 = vpop.f32.mrf.mxu0
    %v659 = vadd.f32 %v636, %v658
    %660 = vmatmul.f32.gmra.mxu0 %v130
    %v661 = vpop.f32.mrf.mxu0
    %v662 = vadd.f32 %v636, %v661
    %663 = vmatmul.f32.gmra.mxu0 %v133
    %v664 = vpop.f32.mrf.mxu0
    %v665 = vadd.f32 %v636, %v664
    %666 = vmatmul.f32.gmra.mxu0 %v136
    %v667 = vpop.f32.mrf.mxu0
    %v668 = vadd.f32 %v636, %v667
    %669 = vdwg.mxu0
    %v671 = vsel %vm248, %v581, 0
    %v674 = vsel %vm248, %v620, 0
    %676 = vmatpush.xpose.msra.mxu0 0.0
    %677 = vmatpush.xpose.msra.mxu0 0.0
    %678 = vmatpush.xpose.msra.mxu0 0.0
    %679 = vmatpush.xpose.msra.mxu0 0.0
    %680 = vmatpush.xpose.msra.mxu0 0.0
    %681 = vmatpush.xpose.msra.mxu0 0.0
    %682 = vmatpush.xpose.msra.mxu0 0.0
    %683 = vmatpush.xpose.msra.mxu0 0.0
    %684 = vmatpush.xpose.msra.mxu0 0.0
    %685 = vmatpush.xpose.msra.mxu0 0.0
    %686 = vmatpush.xpose.msra.mxu0 0.0
    %687 = vmatpush.xpose.msra.mxu0 0.0
    %688 = vmatpush.xpose.msra.mxu0 0.0
    %689 = vmatpush.xpose.msra.mxu0 0.0
    %690 = vmatpush.xpose.msra.mxu0 0.0
    %691 = vmatpush.xpose.msra.mxu0 %v674
    %692 = vmatmul.f32.gmra.mxu0 %v671
    %v693 = vpop.f32.mrf.mxu0
    %v694 = vadd.f32 0.0, %v693
    %695 = vdwg.mxu0
    %v697 = vsel %vm248, %v584, 0
    %v700 = vsel %vm248, %v623, 0
    %702 = vmatpush.xpose.msra.mxu0 0.0
    %703 = vmatpush.xpose.msra.mxu0 0.0
    %704 = vmatpush.xpose.msra.mxu0 0.0
    %705 = vmatpush.xpose.msra.mxu0 0.0
    %706 = vmatpush.xpose.msra.mxu0 0.0
    %707 = vmatpush.xpose.msra.mxu0 0.0
    %708 = vmatpush.xpose.msra.mxu0 0.0
    %709 = vmatpush.xpose.msra.mxu0 0.0
    %710 = vmatpush.xpose.msra.mxu0 0.0
    %711 = vmatpush.xpose.msra.mxu0 0.0
    %712 = vmatpush.xpose.msra.mxu0 0.0
    %713 = vmatpush.xpose.msra.mxu0 0.0
    %714 = vmatpush.xpose.msra.mxu0 0.0
    %715 = vmatpush.xpose.msra.mxu0 0.0
    %716 = vmatpush.xpose.msra.mxu0 0.0
    %717 = vmatpush.xpose.msra.mxu0 %v700
    %718 = vmatmul.f32.gmra.mxu0 %v697
    %v719 = vpop.f32.mrf.mxu0
    %v720 = vadd.f32 0.0, %v719
    %721 = vdwg.mxu0
    %v723 = vsel %vm248, %v587, 0
    %v726 = vsel %vm248, %v626, 0
    %728 = vmatpush.xpose.msra.mxu0 0.0
    %729 = vmatpush.xpose.msra.mxu0 0.0
    %730 = vmatpush.xpose.msra.mxu0 0.0
    %731 = vmatpush.xpose.msra.mxu0 0.0
    %732 = vmatpush.xpose.msra.mxu0 0.0
    %733 = vmatpush.xpose.msra.mxu0 0.0
    %734 = vmatpush.xpose.msra.mxu0 0.0
    %735 = vmatpush.xpose.msra.mxu0 0.0
    %736 = vmatpush.xpose.msra.mxu0 0.0
    %737 = vmatpush.xpose.msra.mxu0 0.0
    %738 = vmatpush.xpose.msra.mxu0 0.0
    %739 = vmatpush.xpose.msra.mxu0 0.0
    %740 = vmatpush.xpose.msra.mxu0 0.0
    %741 = vmatpush.xpose.msra.mxu0 0.0
    %742 = vmatpush.xpose.msra.mxu0 0.0
    %743 = vmatpush.xpose.msra.mxu0 %v726
    %744 = vmatmul.f32.gmra.mxu0 %v723
    %v745 = vpop.f32.mrf.mxu0
    %v746 = vadd.f32 0.0, %v745
    %747 = vdwg.mxu0
    %v749 = vsel %vm248, %v590, 0
    %v752 = vsel %vm248, %v629, 0
    %754 = vmatpush.xpose.msra.mxu0 0.0
    %755 = vmatpush.xpose.msra.mxu0 0.0
    %756 = vmatpush.xpose.msra.mxu0 0.0
    %757 = vmatpush.xpose.msra.mxu0 0.0
    %758 = vmatpush.xpose.msra.mxu0 0.0
    %759 = vmatpush.xpose.msra.mxu0 0.0
    %760 = vmatpush.xpose.msra.mxu0 0.0
    %761 = vmatpush.xpose.msra.mxu0 0.0
    %762 = vmatpush.xpose.msra.mxu0 0.0
    %763 = vmatpush.xpose.msra.mxu0 0.0
    %764 = vmatpush.xpose.msra.mxu0 0.0
    %765 = vmatpush.xpose.msra.mxu0 0.0
    %766 = vmatpush.xpose.msra.mxu0 0.0
    %767 = vmatpush.xpose.msra.mxu0 0.0
    %768 = vmatpush.xpose.msra.mxu0 0.0
    %769 = vmatpush.xpose.msra.mxu0 %v752
    %770 = vmatmul.f32.gmra.mxu0 %v749
    %v771 = vpop.f32.mrf.mxu0
    %v772 = vadd.f32 0.0, %v771
    %773 = vdwg.mxu0
    %v774 = vsel %vm248, %v694, -inf
    %775 = vmax.xlane.f32.xlu0 %v774
    %v776 = vpop.xlane.xlu0 %775
    %v777 = vsel %vm248, %v720, -inf
    %778 = vmax.xlane.f32.xlu0 %v777
    %v779 = vpop.xlane.xlu0 %778
    %v780 = vsel %vm248, %v746, -inf
    %781 = vmax.xlane.f32.xlu0 %v780
    %v782 = vpop.xlane.xlu0 %781
    %v783 = vsel %vm248, %v772, -inf
    %784 = vmax.xlane.f32.xlu0 %v783
    %v785 = vpop.xlane.xlu0 %784
    %v786 = vsub.f32 %v694, %v776
    %v787 = vsub.f32 %v720, %v779
    %v788 = vsub.f32 %v746, %v782
    %v789 = vsub.f32 %v772, %v785
    %v790 = vmul.f32 %v786, 1.442695
    %v791 = vpow.pop %v790
    %v792 = vmul.f32 %v787, 1.442695
    %v793 = vpow.pop %v792
    %v794 = vmul.f32 %v788, 1.442695
    %v795 = vpow.pop %v794
    %v796 = vmul.f32 %v789, 1.442695
    %v797 = vpow.pop %v796
    %v798 = vsel %vm248, %v791, 0.0
    %799 = vadd.xlane.f32.xlu0 %v798
    %v800 = vpop.xlane.xlu0 %799
    %v801 = vsel %vm248, %v793, 0.0
    %802 = vadd.xlane.f32.xlu0 %v801
    %v803 = vpop.xlane.xlu0 %802
    %v804 = vsel %vm248, %v795, 0.0
    %805 = vadd.xlane.f32.xlu0 %v804
    %v806 = vpop.xlane.xlu0 %805
    %v807 = vsel %vm248, %v797, 0.0
    %808 = vadd.xlane.f32.xlu0 %v807
    %v809 = vpop.xlane.xlu0 %808
    %v810 = vrcp.pop %v800
    %v811 = vrcp.pop %v803
    %v812 = vrcp.pop %v806
    %v813 = vrcp.pop %v809
    %v814 = vmul.f32 %v791, %v810
    %v815 = vmul.f32 %v793, %v811
    %v816 = vmul.f32 %v795, %v812
    %v817 = vmul.f32 %v797, %v813
    %v819 = vsel %vm248, %v814, 0
    %821 = vmatpush.msra.mxu0 0.0
    %822 = vmatpush.msra.mxu0 0.0
    %823 = vmatpush.msra.mxu0 0.0
    %824 = vmatpush.msra.mxu0 0.0
    %825 = vmatpush.msra.mxu0 0.0
    %826 = vmatpush.msra.mxu0 0.0
    %827 = vmatpush.msra.mxu0 0.0
    %828 = vmatpush.msra.mxu0 0.0
    %829 = vmatpush.msra.mxu0 0.0
    %830 = vmatpush.msra.mxu0 0.0
    %831 = vmatpush.msra.mxu0 0.0
    %832 = vmatpush.msra.mxu0 0.0
    %833 = vmatpush.msra.mxu0 0.0
    %834 = vmatpush.msra.mxu0 0.0
    %835 = vmatpush.msra.mxu0 0.0
    %836 = vmatpush.msra.mxu0 %v659
    %837 = vmatmul.f32.gmra.mxu0 %v819
    %v838 = vpop.f32.mrf.mxu0
    %v839 = vadd.f32 0.0, %v838
    %840 = vdwg.mxu0
    %v842 = vsel %vm248, %v815, 0
    %844 = vmatpush.msra.mxu0 0.0
    %845 = vmatpush.msra.mxu0 0.0
    %846 = vmatpush.msra.mxu0 0.0
    %847 = vmatpush.msra.mxu0 0.0
    %848 = vmatpush.msra.mxu0 0.0
    %849 = vmatpush.msra.mxu0 0.0
    %850 = vmatpush.msra.mxu0 0.0
    %851 = vmatpush.msra.mxu0 0.0
    %852 = vmatpush.msra.mxu0 0.0
    %853 = vmatpush.msra.mxu0 0.0
    %854 = vmatpush.msra.mxu0 0.0
    %855 = vmatpush.msra.mxu0 0.0
    %856 = vmatpush.msra.mxu0 0.0
    %857 = vmatpush.msra.mxu0 0.0
    %858 = vmatpush.msra.mxu0 0.0
    %859 = vmatpush.msra.mxu0 %v662
    %860 = vmatmul.f32.gmra.mxu0 %v842
    %v861 = vpop.f32.mrf.mxu0
    %v862 = vadd.f32 0.0, %v861
    %863 = vdwg.mxu0
    %v865 = vsel %vm248, %v816, 0
    %867 = vmatpush.msra.mxu0 0.0
    %868 = vmatpush.msra.mxu0 0.0
    %869 = vmatpush.msra.mxu0 0.0
    %870 = vmatpush.msra.mxu0 0.0
    %871 = vmatpush.msra.mxu0 0.0
    %872 = vmatpush.msra.mxu0 0.0
    %873 = vmatpush.msra.mxu0 0.0
    %874 = vmatpush.msra.mxu0 0.0
    %875 = vmatpush.msra.mxu0 0.0
    %876 = vmatpush.msra.mxu0 0.0
    %877 = vmatpush.msra.mxu0 0.0
    %878 = vmatpush.msra.mxu0 0.0
    %879 = vmatpush.msra.mxu0 0.0
    %880 = vmatpush.msra.mxu0 0.0
    %881 = vmatpush.msra.mxu0 0.0
    %882 = vmatpush.msra.mxu0 %v665
    %883 = vmatmul.f32.gmra.mxu0 %v865
    %v884 = vpop.f32.mrf.mxu0
    %v885 = vadd.f32 0.0, %v884
    %886 = vdwg.mxu0
    %v888 = vsel %vm248, %v817, 0
    %890 = vmatpush.msra.mxu0 0.0
    %891 = vmatpush.msra.mxu0 0.0
    %892 = vmatpush.msra.mxu0 0.0
    %893 = vmatpush.msra.mxu0 0.0
    %894 = vmatpush.msra.mxu0 0.0
    %895 = vmatpush.msra.mxu0 0.0
    %896 = vmatpush.msra.mxu0 0.0
    %897 = vmatpush.msra.mxu0 0.0
    %898 = vmatpush.msra.mxu0 0.0
    %899 = vmatpush.msra.mxu0 0.0
    %900 = vmatpush.msra.mxu0 0.0
    %901 = vmatpush.msra.mxu0 0.0
    %902 = vmatpush.msra.mxu0 0.0
    %903 = vmatpush.msra.mxu0 0.0
    %904 = vmatpush.msra.mxu0 0.0
    %905 = vmatpush.msra.mxu0 %v668
    %906 = vmatmul.f32.gmra.mxu0 %v888
    %v907 = vpop.f32.mrf.mxu0
    %v908 = vadd.f32 0.0, %v907
    %909 = vdwg.mxu0
    %s910 = scalar_lea.vmem %s6, 32
    %v911 = vld [vmem:[%s910] sm:$0xff]
    %v912 = vld [vmem:[%s910 + $0x8] sm:$0xff]
    %v913 = vld [vmem:[%s910 + $0x10] sm:$0xff]
    %v914 = vld [vmem:[%s910 + $0x18] sm:$0xff]
    %v916 = vsel %vm248, %v839, 0
    %v919 = vsel %vm248, %v862, 0
    %v922 = vsel %vm248, %v885, 0
    %v925 = vsel %vm248, %v908, 0
    %v928 = vsel %vm248, %v911, 0
    %v931 = vsel %vm248, %v912, 0
    %v934 = vsel %vm248, %v913, 0
    %v937 = vsel %vm248, %v914, 0
    %939 = vmatpush.xpose.msra.mxu0 0.0
    %940 = vmatpush.xpose.msra.mxu0 0.0
    %941 = vmatpush.xpose.msra.mxu0 0.0
    %942 = vmatpush.xpose.msra.mxu0 0.0
    %943 = vmatpush.xpose.msra.mxu0 0.0
    %944 = vmatpush.xpose.msra.mxu0 0.0
    %945 = vmatpush.xpose.msra.mxu0 0.0
    %946 = vmatpush.xpose.msra.mxu0 0.0
    %947 = vmatpush.xpose.msra.mxu0 0.0
    %948 = vmatpush.xpose.msra.mxu0 0.0
    %949 = vmatpush.xpose.msra.mxu0 0.0
    %950 = vmatpush.xpose.msra.mxu0 0.0
    %951 = vmatpush.xpose.msra.mxu0 %v937
    %952 = vmatpush.xpose.msra.mxu0 %v934
    %953 = vmatpush.xpose.msra.mxu0 %v931
    %954 = vmatpush.xpose.msra.mxu0 %v928
    %955 = vmatmul.f32.gmra.mxu0 %v916
    %v956 = vpop.f32.mrf.mxu0
    %v957 = vadd.f32 0.0, %v956
    %958 = vmatmul.f32.gmra.mxu0 %v919
    %v959 = vpop.f32.mrf.mxu0
    %v960 = vadd.f32 0.0, %v959
    %961 = vmatmul.f32.gmra.mxu0 %v922
    %v962 = vpop.f32.mrf.mxu0
    %v963 = vadd.f32 0.0, %v962
    %964 = vmatmul.f32.gmra.mxu0 %v925
    %v965 = vpop.f32.mrf.mxu0
    %v966 = vadd.f32 0.0, %v965
    %967 = vdwg.mxu0
    %v968 = vadd.f32 %v549, %v957
    %v969 = vadd.f32 %v550, %v960
    %v970 = vadd.f32 %v551, %v963
    %v971 = vadd.f32 %v552, %v966
    %s972 = scalar_lea.vmem %s4, 16
    %v973 = vld [vmem:[%s972] sm:$0xff]
    %s974 = scalar_lea.vmem %s5, 2
    %v975 = vld [vmem:[%s974] sm:$0x1]
    %v977 = vperm.slane %v975, 0
    %v980 = vsel %vm125, %v973, 0
    %982 = vmatpush.xpose.msra.mxu0 0.0
    %983 = vmatpush.xpose.msra.mxu0 0.0
    %984 = vmatpush.xpose.msra.mxu0 0.0
    %985 = vmatpush.xpose.msra.mxu0 0.0
    %986 = vmatpush.xpose.msra.mxu0 0.0
    %987 = vmatpush.xpose.msra.mxu0 0.0
    %988 = vmatpush.xpose.msra.mxu0 0.0
    %989 = vmatpush.xpose.msra.mxu0 0.0
    %990 = vmatpush.xpose.msra.mxu0 0.0
    %991 = vmatpush.xpose.msra.mxu0 0.0
    %992 = vmatpush.xpose.msra.mxu0 0.0
    %993 = vmatpush.xpose.msra.mxu0 0.0
    %994 = vmatpush.xpose.msra.mxu0 0.0
    %995 = vmatpush.xpose.msra.mxu0 0.0
    %996 = vmatpush.xpose.msra.mxu0 0.0
    %997 = vmatpush.xpose.msra.mxu0 %v980
    %998 = vmatmul.f32.gmra.mxu0 %v127
    %v999 = vpop.f32.mrf.mxu0
    %v1000 = vadd.f32 %v977, %v999
    %1001 = vmatmul.f32.gmra.mxu0 %v130
    %v1002 = vpop.f32.mrf.mxu0
    %v1003 = vadd.f32 %v977, %v1002
    %1004 = vmatmul.f32.gmra.mxu0 %v133
    %v1005 = vpop.f32.mrf.mxu0
    %v1006 = vadd.f32 %v977, %v1005
    %1007 = vmatmul.f32.gmra.mxu0 %v136
    %v1008 = vpop.f32.mrf.mxu0
    %v1009 = vadd.f32 %v977, %v1008
    %1010 = vdwg.mxu0
    %s1011 = scalar_lea.vmem %s4, 48
    %v1012 = vld [vmem:[%s1011] sm:$0xff]
    %s1013 = scalar_lea.vmem %s5, 6
    %v1014 = vld [vmem:[%s1013] sm:$0x1]
    %v1016 = vperm.slane %v1014, 0
    %v1019 = vsel %vm125, %v1012, 0
    %1021 = vmatpush.xpose.msra.mxu0 0.0
    %1022 = vmatpush.xpose.msra.mxu0 0.0
    %1023 = vmatpush.xpose.msra.mxu0 0.0
    %1024 = vmatpush.xpose.msra.mxu0 0.0
    %1025 = vmatpush.xpose.msra.mxu0 0.0
    %1026 = vmatpush.xpose.msra.mxu0 0.0
    %1027 = vmatpush.xpose.msra.mxu0 0.0
    %1028 = vmatpush.xpose.msra.mxu0 0.0
    %1029 = vmatpush.xpose.msra.mxu0 0.0
    %1030 = vmatpush.xpose.msra.mxu0 0.0
    %1031 = vmatpush.xpose.msra.mxu0 0.0
    %1032 = vmatpush.xpose.msra.mxu0 0.0
    %1033 = vmatpush.xpose.msra.mxu0 0.0
    %1034 = vmatpush.xpose.msra.mxu0 0.0
    %1035 = vmatpush.xpose.msra.mxu0 0.0
    %1036 = vmatpush.xpose.msra.mxu0 %v1019
    %1037 = vmatmul.f32.gmra.mxu0 %v127
    %v1038 = vpop.f32.mrf.mxu0
    %v1039 = vadd.f32 %v1016, %v1038
    %1040 = vmatmul.f32.gmra.mxu0 %v130
    %v1041 = vpop.f32.mrf.mxu0
    %v1042 = vadd.f32 %v1016, %v1041
    %1043 = vmatmul.f32.gmra.mxu0 %v133
    %v1044 = vpop.f32.mrf.mxu0
    %v1045 = vadd.f32 %v1016, %v1044
    %1046 = vmatmul.f32.gmra.mxu0 %v136
    %v1047 = vpop.f32.mrf.mxu0
    %v1048 = vadd.f32 %v1016, %v1047
    %1049 = vdwg.mxu0
    %s1050 = scalar_lea.vmem %s4, 80
    %v1051 = vld [vmem:[%s1050] sm:$0xff]
    %s1052 = scalar_lea.vmem %s5, 10
    %v1053 = vld [vmem:[%s1052] sm:$0x1]
    %v1055 = vperm.slane %v1053, 0
    %v1058 = vsel %vm125, %v1051, 0
    %1060 = vmatpush.xpose.msra.mxu0 0.0
    %1061 = vmatpush.xpose.msra.mxu0 0.0
    %1062 = vmatpush.xpose.msra.mxu0 0.0
    %1063 = vmatpush.xpose.msra.mxu0 0.0
    %1064 = vmatpush.xpose.msra.mxu0 0.0
    %1065 = vmatpush.xpose.msra.mxu0 0.0
    %1066 = vmatpush.xpose.msra.mxu0 0.0
    %1067 = vmatpush.xpose.msra.mxu0 0.0
    %1068 = vmatpush.xpose.msra.mxu0 0.0
    %1069 = vmatpush.xpose.msra.mxu0 0.0
    %1070 = vmatpush.xpose.msra.mxu0 0.0
    %1071 = vmatpush.xpose.msra.mxu0 0.0
    %1072 = vmatpush.xpose.msra.mxu0 0.0
    %1073 = vmatpush.xpose.msra.mxu0 0.0
    %1074 = vmatpush.xpose.msra.mxu0 0.0
    %1075 = vmatpush.xpose.msra.mxu0 %v1058
    %1076 = vmatmul.f32.gmra.mxu0 %v127
    %v1077 = vpop.f32.mrf.mxu0
    %v1078 = vadd.f32 %v1055, %v1077
    %1079 = vmatmul.f32.gmra.mxu0 %v130
    %v1080 = vpop.f32.mrf.mxu0
    %v1081 = vadd.f32 %v1055, %v1080
    %1082 = vmatmul.f32.gmra.mxu0 %v133
    %v1083 = vpop.f32.mrf.mxu0
    %v1084 = vadd.f32 %v1055, %v1083
    %1085 = vmatmul.f32.gmra.mxu0 %v136
    %v1086 = vpop.f32.mrf.mxu0
    %v1087 = vadd.f32 %v1055, %v1086
    %1088 = vdwg.mxu0
    %v1090 = vsel %vm248, %v1000, 0
    %v1093 = vsel %vm248, %v1039, 0
    %1095 = vmatpush.xpose.msra.mxu0 0.0
    %1096 = vmatpush.xpose.msra.mxu0 0.0
    %1097 = vmatpush.xpose.msra.mxu0 0.0
    %1098 = vmatpush.xpose.msra.mxu0 0.0
    %1099 = vmatpush.xpose.msra.mxu0 0.0
    %1100 = vmatpush.xpose.msra.mxu0 0.0
    %1101 = vmatpush.xpose.msra.mxu0 0.0
    %1102 = vmatpush.xpose.msra.mxu0 0.0
    %1103 = vmatpush.xpose.msra.mxu0 0.0
    %1104 = vmatpush.xpose.msra.mxu0 0.0
    %1105 = vmatpush.xpose.msra.mxu0 0.0
    %1106 = vmatpush.xpose.msra.mxu0 0.0
    %1107 = vmatpush.xpose.msra.mxu0 0.0
    %1108 = vmatpush.xpose.msra.mxu0 0.0
    %1109 = vmatpush.xpose.msra.mxu0 0.0
    %1110 = vmatpush.xpose.msra.mxu0 %v1093
    %1111 = vmatmul.f32.gmra.mxu0 %v1090
    %v1112 = vpop.f32.mrf.mxu0
    %v1113 = vadd.f32 0.0, %v1112
    %1114 = vdwg.mxu0
    %v1116 = vsel %vm248, %v1003, 0
    %v1119 = vsel %vm248, %v1042, 0
    %1121 = vmatpush.xpose.msra.mxu0 0.0
    %1122 = vmatpush.xpose.msra.mxu0 0.0
    %1123 = vmatpush.xpose.msra.mxu0 0.0
    %1124 = vmatpush.xpose.msra.mxu0 0.0
    %1125 = vmatpush.xpose.msra.mxu0 0.0
    %1126 = vmatpush.xpose.msra.mxu0 0.0
    %1127 = vmatpush.xpose.msra.mxu0 0.0
    %1128 = vmatpush.xpose.msra.mxu0 0.0
    %1129 = vmatpush.xpose.msra.mxu0 0.0
    %1130 = vmatpush.xpose.msra.mxu0 0.0
    %1131 = vmatpush.xpose.msra.mxu0 0.0
    %1132 = vmatpush.xpose.msra.mxu0 0.0
    %1133 = vmatpush.xpose.msra.mxu0 0.0
    %1134 = vmatpush.xpose.msra.mxu0 0.0
    %1135 = vmatpush.xpose.msra.mxu0 0.0
    %1136 = vmatpush.xpose.msra.mxu0 %v1119
    %1137 = vmatmul.f32.gmra.mxu0 %v1116
    %v1138 = vpop.f32.mrf.mxu0
    %v1139 = vadd.f32 0.0, %v1138
    %1140 = vdwg.mxu0
    %v1142 = vsel %vm248, %v1006, 0
    %v1145 = vsel %vm248, %v1045, 0
    %1147 = vmatpush.xpose.msra.mxu0 0.0
    %1148 = vmatpush.xpose.msra.mxu0 0.0
    %1149 = vmatpush.xpose.msra.mxu0 0.0
    %1150 = vmatpush.xpose.msra.mxu0 0.0
    %1151 = vmatpush.xpose.msra.mxu0 0.0
    %1152 = vmatpush.xpose.msra.mxu0 0.0
    %1153 = vmatpush.xpose.msra.mxu0 0.0
    %1154 = vmatpush.xpose.msra.mxu0 0.0
    %1155 = vmatpush.xpose.msra.mxu0 0.0
    %1156 = vmatpush.xpose.msra.mxu0 0.0
    %1157 = vmatpush.xpose.msra.mxu0 0.0
    %1158 = vmatpush.xpose.msra.mxu0 0.0
    %1159 = vmatpush.xpose.msra.mxu0 0.0
    %1160 = vmatpush.xpose.msra.mxu0 0.0
    %1161 = vmatpush.xpose.msra.mxu0 0.0
    %1162 = vmatpush.xpose.msra.mxu0 %v1145
    %1163 = vmatmul.f32.gmra.mxu0 %v1142
    %v1164 = vpop.f32.mrf.mxu0
    %v1165 = vadd.f32 0.0, %v1164
    %1166 = vdwg.mxu0
    %v1168 = vsel %vm248, %v1009, 0
    %v1171 = vsel %vm248, %v1048, 0
    %1173 = vmatpush.xpose.msra.mxu0 0.0
    %1174 = vmatpush.xpose.msra.mxu0 0.0
    %1175 = vmatpush.xpose.msra.mxu0 0.0
    %1176 = vmatpush.xpose.msra.mxu0 0.0
    %1177 = vmatpush.xpose.msra.mxu0 0.0
    %1178 = vmatpush.xpose.msra.mxu0 0.0
    %1179 = vmatpush.xpose.msra.mxu0 0.0
    %1180 = vmatpush.xpose.msra.mxu0 0.0
    %1181 = vmatpush.xpose.msra.mxu0 0.0
    %1182 = vmatpush.xpose.msra.mxu0 0.0
    %1183 = vmatpush.xpose.msra.mxu0 0.0
    %1184 = vmatpush.xpose.msra.mxu0 0.0
    %1185 = vmatpush.xpose.msra.mxu0 0.0
    %1186 = vmatpush.xpose.msra.mxu0 0.0
    %1187 = vmatpush.xpose.msra.mxu0 0.0
    %1188 = vmatpush.xpose.msra.mxu0 %v1171
    %1189 = vmatmul.f32.gmra.mxu0 %v1168
    %v1190 = vpop.f32.mrf.mxu0
    %v1191 = vadd.f32 0.0, %v1190
    %1192 = vdwg.mxu0
    %v1193 = vsel %vm248, %v1113, -inf
    %1194 = vmax.xlane.f32.xlu0 %v1193
    %v1195 = vpop.xlane.xlu0 %1194
    %v1196 = vsel %vm248, %v1139, -inf
    %1197 = vmax.xlane.f32.xlu0 %v1196
    %v1198 = vpop.xlane.xlu0 %1197
    %v1199 = vsel %vm248, %v1165, -inf
    %1200 = vmax.xlane.f32.xlu0 %v1199
    %v1201 = vpop.xlane.xlu0 %1200
    %v1202 = vsel %vm248, %v1191, -inf
    %1203 = vmax.xlane.f32.xlu0 %v1202
    %v1204 = vpop.xlane.xlu0 %1203
    %v1205 = vsub.f32 %v1113, %v1195
    %v1206 = vsub.f32 %v1139, %v1198
    %v1207 = vsub.f32 %v1165, %v1201
    %v1208 = vsub.f32 %v1191, %v1204
    %v1209 = vmul.f32 %v1205, 1.442695
    %v1210 = vpow.pop %v1209
    %v1211 = vmul.f32 %v1206, 1.442695
    %v1212 = vpow.pop %v1211
    %v1213 = vmul.f32 %v1207, 1.442695
    %v1214 = vpow.pop %v1213
    %v1215 = vmul.f32 %v1208, 1.442695
    %v1216 = vpow.pop %v1215
    %v1217 = vsel %vm248, %v1210, 0.0
    %1218 = vadd.xlane.f32.xlu0 %v1217
    %v1219 = vpop.xlane.xlu0 %1218
    %v1220 = vsel %vm248, %v1212, 0.0
    %1221 = vadd.xlane.f32.xlu0 %v1220
    %v1222 = vpop.xlane.xlu0 %1221
    %v1223 = vsel %vm248, %v1214, 0.0
    %1224 = vadd.xlane.f32.xlu0 %v1223
    %v1225 = vpop.xlane.xlu0 %1224
    %v1226 = vsel %vm248, %v1216, 0.0
    %1227 = vadd.xlane.f32.xlu0 %v1226
    %v1228 = vpop.xlane.xlu0 %1227
    %v1229 = vrcp.pop %v1219
    %v1230 = vrcp.pop %v1222
    %v1231 = vrcp.pop %v1225
    %v1232 = vrcp.pop %v1228
    %v1233 = vmul.f32 %v1210, %v1229
    %v1234 = vmul.f32 %v1212, %v1230
    %v1235 = vmul.f32 %v1214, %v1231
    %v1236 = vmul.f32 %v1216, %v1232
    %v1238 = vsel %vm248, %v1233, 0
    %1240 = vmatpush.msra.mxu0 0.0
    %1241 = vmatpush.msra.mxu0 0.0
    %1242 = vmatpush.msra.mxu0 0.0
    %1243 = vmatpush.msra.mxu0 0.0
    %1244 = vmatpush.msra.mxu0 0.0
    %1245 = vmatpush.msra.mxu0 0.0
    %1246 = vmatpush.msra.mxu0 0.0
    %1247 = vmatpush.msra.mxu0 0.0
    %1248 = vmatpush.msra.mxu0 0.0
    %1249 = vmatpush.msra.mxu0 0.0
    %1250 = vmatpush.msra.mxu0 0.0
    %1251 = vmatpush.msra.mxu0 0.0
    %1252 = vmatpush.msra.mxu0 0.0
    %1253 = vmatpush.msra.mxu0 0.0
    %1254 = vmatpush.msra.mxu0 0.0
    %1255 = vmatpush.msra.mxu0 %v1078
    %1256 = vmatmul.f32.gmra.mxu0 %v1238
    %v1257 = vpop.f32.mrf.mxu0
    %v1258 = vadd.f32 0.0, %v1257
    %1259 = vdwg.mxu0
    %v1261 = vsel %vm248, %v1234, 0
    %1263 = vmatpush.msra.mxu0 0.0
    %1264 = vmatpush.msra.mxu0 0.0
    %1265 = vmatpush.msra.mxu0 0.0
    %1266 = vmatpush.msra.mxu0 0.0
    %1267 = vmatpush.msra.mxu0 0.0
    %1268 = vmatpush.msra.mxu0 0.0
    %1269 = vmatpush.msra.mxu0 0.0
    %1270 = vmatpush.msra.mxu0 0.0
    %1271 = vmatpush.msra.mxu0 0.0
    %1272 = vmatpush.msra.mxu0 0.0
    %1273 = vmatpush.msra.mxu0 0.0
    %1274 = vmatpush.msra.mxu0 0.0
    %1275 = vmatpush.msra.mxu0 0.0
    %1276 = vmatpush.msra.mxu0 0.0
    %1277 = vmatpush.msra.mxu0 0.0
    %1278 = vmatpush.msra.mxu0 %v1081
    %1279 = vmatmul.f32.gmra.mxu0 %v1261
    %v1280 = vpop.f32.mrf.mxu0
    %v1281 = vadd.f32 0.0, %v1280
    %1282 = vdwg.mxu0
    %v1284 = vsel %vm248, %v1235, 0
    %1286 = vmatpush.msra.mxu0 0.0
    %1287 = vmatpush.msra.mxu0 0.0
    %1288 = vmatpush.msra.mxu0 0.0
    %1289 = vmatpush.msra.mxu0 0.0
    %1290 = vmatpush.msra.mxu0 0.0
    %1291 = vmatpush.msra.mxu0 0.0
    %1292 = vmatpush.msra.mxu0 0.0
    %1293 = vmatpush.msra.mxu0 0.0
    %1294 = vmatpush.msra.mxu0 0.0
    %1295 = vmatpush.msra.mxu0 0.0
    %1296 = vmatpush.msra.mxu0 0.0
    %1297 = vmatpush.msra.mxu0 0.0
    %1298 = vmatpush.msra.mxu0 0.0
    %1299 = vmatpush.msra.mxu0 0.0
    %1300 = vmatpush.msra.mxu0 0.0
    %1301 = vmatpush.msra.mxu0 %v1084
    %1302 = vmatmul.f32.gmra.mxu0 %v1284
    %v1303 = vpop.f32.mrf.mxu0
    %v1304 = vadd.f32 0.0, %v1303
    %1305 = vdwg.mxu0
    %v1307 = vsel %vm248, %v1236, 0
    %1309 = vmatpush.msra.mxu0 0.0
    %1310 = vmatpush.msra.mxu0 0.0
    %1311 = vmatpush.msra.mxu0 0.0
    %1312 = vmatpush.msra.mxu0 0.0
    %1313 = vmatpush.msra.mxu0 0.0
    %1314 = vmatpush.msra.mxu0 0.0
    %1315 = vmatpush.msra.mxu0 0.0
    %1316 = vmatpush.msra.mxu0 0.0
    %1317 = vmatpush.msra.mxu0 0.0
    %1318 = vmatpush.msra.mxu0 0.0
    %1319 = vmatpush.msra.mxu0 0.0
    %1320 = vmatpush.msra.mxu0 0.0
    %1321 = vmatpush.msra.mxu0 0.0
    %1322 = vmatpush.msra.mxu0 0.0
    %1323 = vmatpush.msra.mxu0 0.0
    %1324 = vmatpush.msra.mxu0 %v1087
    %1325 = vmatmul.f32.gmra.mxu0 %v1307
    %v1326 = vpop.f32.mrf.mxu0
    %v1327 = vadd.f32 0.0, %v1326
    %1328 = vdwg.mxu0
    %s1329 = scalar_lea.vmem %s6, 64
    %v1330 = vld [vmem:[%s1329] sm:$0xff]
    %v1331 = vld [vmem:[%s1329 + $0x8] sm:$0xff]
    %v1332 = vld [vmem:[%s1329 + $0x10] sm:$0xff]
    %v1333 = vld [vmem:[%s1329 + $0x18] sm:$0xff]
    %v1335 = vsel %vm248, %v1258, 0
    %v1338 = vsel %vm248, %v1281, 0
    %v1341 = vsel %vm248, %v1304, 0
    %v1344 = vsel %vm248, %v1327, 0
    %v1347 = vsel %vm248, %v1330, 0
    %v1350 = vsel %vm248, %v1331, 0
    %v1353 = vsel %vm248, %v1332, 0
    %v1356 = vsel %vm248, %v1333, 0
    %1358 = vmatpush.xpose.msra.mxu0 0.0
    %1359 = vmatpush.xpose.msra.mxu0 0.0
    %1360 = vmatpush.xpose.msra.mxu0 0.0
    %1361 = vmatpush.xpose.msra.mxu0 0.0
    %1362 = vmatpush.xpose.msra.mxu0 0.0
    %1363 = vmatpush.xpose.msra.mxu0 0.0
    %1364 = vmatpush.xpose.msra.mxu0 0.0
    %1365 = vmatpush.xpose.msra.mxu0 0.0
    %1366 = vmatpush.xpose.msra.mxu0 0.0
    %1367 = vmatpush.xpose.msra.mxu0 0.0
    %1368 = vmatpush.xpose.msra.mxu0 0.0
    %1369 = vmatpush.xpose.msra.mxu0 0.0
    %1370 = vmatpush.xpose.msra.mxu0 %v1356
    %1371 = vmatpush.xpose.msra.mxu0 %v1353
    %1372 = vmatpush.xpose.msra.mxu0 %v1350
    %1373 = vmatpush.xpose.msra.mxu0 %v1347
    %1374 = vmatmul.f32.gmra.mxu0 %v1335
    %v1375 = vpop.f32.mrf.mxu0
    %v1376 = vadd.f32 0.0, %v1375
    %1377 = vmatmul.f32.gmra.mxu0 %v1338
    %v1378 = vpop.f32.mrf.mxu0
    %v1379 = vadd.f32 0.0, %v1378
    %1380 = vmatmul.f32.gmra.mxu0 %v1341
    %v1381 = vpop.f32.mrf.mxu0
    %v1382 = vadd.f32 0.0, %v1381
    %1383 = vmatmul.f32.gmra.mxu0 %v1344
    %v1384 = vpop.f32.mrf.mxu0
    %v1385 = vadd.f32 0.0, %v1384
    %1386 = vdwg.mxu0
    %v1387 = vadd.f32 %v968, %v1376
    %v1388 = vadd.f32 %v969, %v1379
    %v1389 = vadd.f32 %v970, %v1382
    %v1390 = vadd.f32 %v971, %v1385
    %s1391 = scalar_lea.vmem %s4, 24
    %v1392 = vld [vmem:[%s1391] sm:$0xff]
    %s1393 = scalar_lea.vmem %s5, 3
    %v1394 = vld [vmem:[%s1393] sm:$0x1]
    %v1396 = vperm.slane %v1394, 0
    %v1399 = vsel %vm125, %v1392, 0
    %1401 = vmatpush.xpose.msra.mxu0 0.0
    %1402 = vmatpush.xpose.msra.mxu0 0.0
    %1403 = vmatpush.xpose.msra.mxu0 0.0
    %1404 = vmatpush.xpose.msra.mxu0 0.0
    %1405 = vmatpush.xpose.msra.mxu0 0.0
    %1406 = vmatpush.xpose.msra.mxu0 0.0
    %1407 = vmatpush.xpose.msra.mxu0 0.0
    %1408 = vmatpush.xpose.msra.mxu0 0.0
    %1409 = vmatpush.xpose.msra.mxu0 0.0
    %1410 = vmatpush.xpose.msra.mxu0 0.0
    %1411 = vmatpush.xpose.msra.mxu0 0.0
    %1412 = vmatpush.xpose.msra.mxu0 0.0
    %1413 = vmatpush.xpose.msra.mxu0 0.0
    %1414 = vmatpush.xpose.msra.mxu0 0.0
    %1415 = vmatpush.xpose.msra.mxu0 0.0
    %1416 = vmatpush.xpose.msra.mxu0 %v1399
    %1417 = vmatmul.f32.gmra.mxu0 %v127
    %v1418 = vpop.f32.mrf.mxu0
    %v1419 = vadd.f32 %v1396, %v1418
    %1420 = vmatmul.f32.gmra.mxu0 %v130
    %v1421 = vpop.f32.mrf.mxu0
    %v1422 = vadd.f32 %v1396, %v1421
    %1423 = vmatmul.f32.gmra.mxu0 %v133
    %v1424 = vpop.f32.mrf.mxu0
    %v1425 = vadd.f32 %v1396, %v1424
    %1426 = vmatmul.f32.gmra.mxu0 %v136
    %v1427 = vpop.f32.mrf.mxu0
    %v1428 = vadd.f32 %v1396, %v1427
    %1429 = vdwg.mxu0
    %s1430 = scalar_lea.vmem %s4, 56
    %v1431 = vld [vmem:[%s1430] sm:$0xff]
    %s1432 = scalar_lea.vmem %s5, 7
    %v1433 = vld [vmem:[%s1432] sm:$0x1]
    %v1435 = vperm.slane %v1433, 0
    %v1438 = vsel %vm125, %v1431, 0
    %1440 = vmatpush.xpose.msra.mxu0 0.0
    %1441 = vmatpush.xpose.msra.mxu0 0.0
    %1442 = vmatpush.xpose.msra.mxu0 0.0
    %1443 = vmatpush.xpose.msra.mxu0 0.0
    %1444 = vmatpush.xpose.msra.mxu0 0.0
    %1445 = vmatpush.xpose.msra.mxu0 0.0
    %1446 = vmatpush.xpose.msra.mxu0 0.0
    %1447 = vmatpush.xpose.msra.mxu0 0.0
    %1448 = vmatpush.xpose.msra.mxu0 0.0
    %1449 = vmatpush.xpose.msra.mxu0 0.0
    %1450 = vmatpush.xpose.msra.mxu0 0.0
    %1451 = vmatpush.xpose.msra.mxu0 0.0
    %1452 = vmatpush.xpose.msra.mxu0 0.0
    %1453 = vmatpush.xpose.msra.mxu0 0.0
    %1454 = vmatpush.xpose.msra.mxu0 0.0
    %1455 = vmatpush.xpose.msra.mxu0 %v1438
    %1456 = vmatmul.f32.gmra.mxu0 %v127
    %v1457 = vpop.f32.mrf.mxu0
    %v1458 = vadd.f32 %v1435, %v1457
    %1459 = vmatmul.f32.gmra.mxu0 %v130
    %v1460 = vpop.f32.mrf.mxu0
    %v1461 = vadd.f32 %v1435, %v1460
    %1462 = vmatmul.f32.gmra.mxu0 %v133
    %v1463 = vpop.f32.mrf.mxu0
    %v1464 = vadd.f32 %v1435, %v1463
    %1465 = vmatmul.f32.gmra.mxu0 %v136
    %v1466 = vpop.f32.mrf.mxu0
    %v1467 = vadd.f32 %v1435, %v1466
    %1468 = vdwg.mxu0
    %s1469 = scalar_lea.vmem %s4, 88
    %v1470 = vld [vmem:[%s1469] sm:$0xff]
    %s1471 = scalar_lea.vmem %s5, 11
    %v1472 = vld [vmem:[%s1471] sm:$0x1]
    %v1474 = vperm.slane %v1472, 0
    %v1477 = vsel %vm125, %v1470, 0
    %1479 = vmatpush.xpose.msra.mxu0 0.0
    %1480 = vmatpush.xpose.msra.mxu0 0.0
    %1481 = vmatpush.xpose.msra.mxu0 0.0
    %1482 = vmatpush.xpose.msra.mxu0 0.0
    %1483 = vmatpush.xpose.msra.mxu0 0.0
    %1484 = vmatpush.xpose.msra.mxu0 0.0
    %1485 = vmatpush.xpose.msra.mxu0 0.0
    %1486 = vmatpush.xpose.msra.mxu0 0.0
    %1487 = vmatpush.xpose.msra.mxu0 0.0
    %1488 = vmatpush.xpose.msra.mxu0 0.0
    %1489 = vmatpush.xpose.msra.mxu0 0.0
    %1490 = vmatpush.xpose.msra.mxu0 0.0
    %1491 = vmatpush.xpose.msra.mxu0 0.0
    %1492 = vmatpush.xpose.msra.mxu0 0.0
    %1493 = vmatpush.xpose.msra.mxu0 0.0
    %1494 = vmatpush.xpose.msra.mxu0 %v1477
    %1495 = vmatmul.f32.gmra.mxu0 %v127
    %v1496 = vpop.f32.mrf.mxu0
    %v1497 = vadd.f32 %v1474, %v1496
    %1498 = vmatmul.f32.gmra.mxu0 %v130
    %v1499 = vpop.f32.mrf.mxu0
    %v1500 = vadd.f32 %v1474, %v1499
    %1501 = vmatmul.f32.gmra.mxu0 %v133
    %v1502 = vpop.f32.mrf.mxu0
    %v1503 = vadd.f32 %v1474, %v1502
    %1504 = vmatmul.f32.gmra.mxu0 %v136
    %v1505 = vpop.f32.mrf.mxu0
    %v1506 = vadd.f32 %v1474, %v1505
    %1507 = vdwg.mxu0
    %v1509 = vsel %vm248, %v1419, 0
    %v1512 = vsel %vm248, %v1458, 0
    %1514 = vmatpush.xpose.msra.mxu0 0.0
    %1515 = vmatpush.xpose.msra.mxu0 0.0
    %1516 = vmatpush.xpose.msra.mxu0 0.0
    %1517 = vmatpush.xpose.msra.mxu0 0.0
    %1518 = vmatpush.xpose.msra.mxu0 0.0
    %1519 = vmatpush.xpose.msra.mxu0 0.0
    %1520 = vmatpush.xpose.msra.mxu0 0.0
    %1521 = vmatpush.xpose.msra.mxu0 0.0
    %1522 = vmatpush.xpose.msra.mxu0 0.0
    %1523 = vmatpush.xpose.msra.mxu0 0.0
    %1524 = vmatpush.xpose.msra.mxu0 0.0
    %1525 = vmatpush.xpose.msra.mxu0 0.0
    %1526 = vmatpush.xpose.msra.mxu0 0.0
    %1527 = vmatpush.xpose.msra.mxu0 0.0
    %1528 = vmatpush.xpose.msra.mxu0 0.0
    %1529 = vmatpush.xpose.msra.mxu0 %v1512
    %1530 = vmatmul.f32.gmra.mxu0 %v1509
    %v1531 = vpop.f32.mrf.mxu0
    %v1532 = vadd.f32 0.0, %v1531
    %1533 = vdwg.mxu0
    %v1535 = vsel %vm248, %v1422, 0
    %v1538 = vsel %vm248, %v1461, 0
    %1540 = vmatpush.xpose.msra.mxu0 0.0
    %1541 = vmatpush.xpose.msra.mxu0 0.0
    %1542 = vmatpush.xpose.msra.mxu0 0.0
    %1543 = vmatpush.xpose.msra.mxu0 0.0
    %1544 = vmatpush.xpose.msra.mxu0 0.0
    %1545 = vmatpush.xpose.msra.mxu0 0.0
    %1546 = vmatpush.xpose.msra.mxu0 0.0
    %1547 = vmatpush.xpose.msra.mxu0 0.0
    %1548 = vmatpush.xpose.msra.mxu0 0.0
    %1549 = vmatpush.xpose.msra.mxu0 0.0
    %1550 = vmatpush.xpose.msra.mxu0 0.0
    %1551 = vmatpush.xpose.msra.mxu0 0.0
    %1552 = vmatpush.xpose.msra.mxu0 0.0
    %1553 = vmatpush.xpose.msra.mxu0 0.0
    %1554 = vmatpush.xpose.msra.mxu0 0.0
    %1555 = vmatpush.xpose.msra.mxu0 %v1538
    %1556 = vmatmul.f32.gmra.mxu0 %v1535
    %v1557 = vpop.f32.mrf.mxu0
    %v1558 = vadd.f32 0.0, %v1557
    %1559 = vdwg.mxu0
    %v1561 = vsel %vm248, %v1425, 0
    %v1564 = vsel %vm248, %v1464, 0
    %1566 = vmatpush.xpose.msra.mxu0 0.0
    %1567 = vmatpush.xpose.msra.mxu0 0.0
    %1568 = vmatpush.xpose.msra.mxu0 0.0
    %1569 = vmatpush.xpose.msra.mxu0 0.0
    %1570 = vmatpush.xpose.msra.mxu0 0.0
    %1571 = vmatpush.xpose.msra.mxu0 0.0
    %1572 = vmatpush.xpose.msra.mxu0 0.0
    %1573 = vmatpush.xpose.msra.mxu0 0.0
    %1574 = vmatpush.xpose.msra.mxu0 0.0
    %1575 = vmatpush.xpose.msra.mxu0 0.0
    %1576 = vmatpush.xpose.msra.mxu0 0.0
    %1577 = vmatpush.xpose.msra.mxu0 0.0
    %1578 = vmatpush.xpose.msra.mxu0 0.0
    %1579 = vmatpush.xpose.msra.mxu0 0.0
    %1580 = vmatpush.xpose.msra.mxu0 0.0
    %1581 = vmatpush.xpose.msra.mxu0 %v1564
    %1582 = vmatmul.f32.gmra.mxu0 %v1561
    %v1583 = vpop.f32.mrf.mxu0
    %v1584 = vadd.f32 0.0, %v1583
    %1585 = vdwg.mxu0
    %v1587 = vsel %vm248, %v1428, 0
    %v1590 = vsel %vm248, %v1467, 0
    %1592 = vmatpush.xpose.msra.mxu0 0.0
    %1593 = vmatpush.xpose.msra.mxu0 0.0
    %1594 = vmatpush.xpose.msra.mxu0 0.0
    %1595 = vmatpush.xpose.msra.mxu0 0.0
    %1596 = vmatpush.xpose.msra.mxu0 0.0
    %1597 = vmatpush.xpose.msra.mxu0 0.0
    %1598 = vmatpush.xpose.msra.mxu0 0.0
    %1599 = vmatpush.xpose.msra.mxu0 0.0
    %1600 = vmatpush.xpose.msra.mxu0 0.0
    %1601 = vmatpush.xpose.msra.mxu0 0.0
    %1602 = vmatpush.xpose.msra.mxu0 0.0
    %1603 = vmatpush.xpose.msra.mxu0 0.0
    %1604 = vmatpush.xpose.msra.mxu0 0.0
    %1605 = vmatpush.xpose.msra.mxu0 0.0
    %1606 = vmatpush.xpose.msra.mxu0 0.0
    %1607 = vmatpush.xpose.msra.mxu0 %v1590
    %1608 = vmatmul.f32.gmra.mxu0 %v1587
    %v1609 = vpop.f32.mrf.mxu0
    %v1610 = vadd.f32 0.0, %v1609
    %1611 = vdwg.mxu0
    %v1612 = vsel %vm248, %v1532, -inf
    %1613 = vmax.xlane.f32.xlu0 %v1612
    %v1614 = vpop.xlane.xlu0 %1613
    %v1615 = vsel %vm248, %v1558, -inf
    %1616 = vmax.xlane.f32.xlu0 %v1615
    %v1617 = vpop.xlane.xlu0 %1616
    %v1618 = vsel %vm248, %v1584, -inf
    %1619 = vmax.xlane.f32.xlu0 %v1618
    %v1620 = vpop.xlane.xlu0 %1619
    %v1621 = vsel %vm248, %v1610, -inf
    %1622 = vmax.xlane.f32.xlu0 %v1621
    %v1623 = vpop.xlane.xlu0 %1622
    %v1624 = vsub.f32 %v1532, %v1614
    %v1625 = vsub.f32 %v1558, %v1617
    %v1626 = vsub.f32 %v1584, %v1620
    %v1627 = vsub.f32 %v1610, %v1623
    %v1628 = vmul.f32 %v1624, 1.442695
    %v1629 = vpow.pop %v1628
    %v1630 = vmul.f32 %v1625, 1.442695
    %v1631 = vpow.pop %v1630
    %v1632 = vmul.f32 %v1626, 1.442695
    %v1633 = vpow.pop %v1632
    %v1634 = vmul.f32 %v1627, 1.442695
    %v1635 = vpow.pop %v1634
    %v1636 = vsel %vm248, %v1629, 0.0
    %1637 = vadd.xlane.f32.xlu0 %v1636
    %v1638 = vpop.xlane.xlu0 %1637
    %v1639 = vsel %vm248, %v1631, 0.0
    %1640 = vadd.xlane.f32.xlu0 %v1639
    %v1641 = vpop.xlane.xlu0 %1640
    %v1642 = vsel %vm248, %v1633, 0.0
    %1643 = vadd.xlane.f32.xlu0 %v1642
    %v1644 = vpop.xlane.xlu0 %1643
    %v1645 = vsel %vm248, %v1635, 0.0
    %1646 = vadd.xlane.f32.xlu0 %v1645
    %v1647 = vpop.xlane.xlu0 %1646
    %v1648 = vrcp.pop %v1638
    %v1649 = vrcp.pop %v1641
    %v1650 = vrcp.pop %v1644
    %v1651 = vrcp.pop %v1647
    %v1652 = vmul.f32 %v1629, %v1648
    %v1653 = vmul.f32 %v1631, %v1649
    %v1654 = vmul.f32 %v1633, %v1650
    %v1655 = vmul.f32 %v1635, %v1651
    %v1657 = vsel %vm248, %v1652, 0
    %1659 = vmatpush.msra.mxu0 0.0
    %1660 = vmatpush.msra.mxu0 0.0
    %1661 = vmatpush.msra.mxu0 0.0
    %1662 = vmatpush.msra.mxu0 0.0
    %1663 = vmatpush.msra.mxu0 0.0
    %1664 = vmatpush.msra.mxu0 0.0
    %1665 = vmatpush.msra.mxu0 0.0
    %1666 = vmatpush.msra.mxu0 0.0
    %1667 = vmatpush.msra.mxu0 0.0
    %1668 = vmatpush.msra.mxu0 0.0
    %1669 = vmatpush.msra.mxu0 0.0
    %1670 = vmatpush.msra.mxu0 0.0
    %1671 = vmatpush.msra.mxu0 0.0
    %1672 = vmatpush.msra.mxu0 0.0
    %1673 = vmatpush.msra.mxu0 0.0
    %1674 = vmatpush.msra.mxu0 %v1497
    %1675 = vmatmul.f32.gmra.mxu0 %v1657
    %v1676 = vpop.f32.mrf.mxu0
    %v1677 = vadd.f32 0.0, %v1676
    %1678 = vdwg.mxu0
    %v1680 = vsel %vm248, %v1653, 0
    %1682 = vmatpush.msra.mxu0 0.0
    %1683 = vmatpush.msra.mxu0 0.0
    %1684 = vmatpush.msra.mxu0 0.0
    %1685 = vmatpush.msra.mxu0 0.0
    %1686 = vmatpush.msra.mxu0 0.0
    %1687 = vmatpush.msra.mxu0 0.0
    %1688 = vmatpush.msra.mxu0 0.0
    %1689 = vmatpush.msra.mxu0 0.0
    %1690 = vmatpush.msra.mxu0 0.0
    %1691 = vmatpush.msra.mxu0 0.0
    %1692 = vmatpush.msra.mxu0 0.0
    %1693 = vmatpush.msra.mxu0 0.0
    %1694 = vmatpush.msra.mxu0 0.0
    %1695 = vmatpush.msra.mxu0 0.0
    %1696 = vmatpush.msra.mxu0 0.0
    %1697 = vmatpush.msra.mxu0 %v1500
    %1698 = vmatmul.f32.gmra.mxu0 %v1680
    %v1699 = vpop.f32.mrf.mxu0
    %v1700 = vadd.f32 0.0, %v1699
    %1701 = vdwg.mxu0
    %v1703 = vsel %vm248, %v1654, 0
    %1705 = vmatpush.msra.mxu0 0.0
    %1706 = vmatpush.msra.mxu0 0.0
    %1707 = vmatpush.msra.mxu0 0.0
    %1708 = vmatpush.msra.mxu0 0.0
    %1709 = vmatpush.msra.mxu0 0.0
    %1710 = vmatpush.msra.mxu0 0.0
    %1711 = vmatpush.msra.mxu0 0.0
    %1712 = vmatpush.msra.mxu0 0.0
    %1713 = vmatpush.msra.mxu0 0.0
    %1714 = vmatpush.msra.mxu0 0.0
    %1715 = vmatpush.msra.mxu0 0.0
    %1716 = vmatpush.msra.mxu0 0.0
    %1717 = vmatpush.msra.mxu0 0.0
    %1718 = vmatpush.msra.mxu0 0.0
    %1719 = vmatpush.msra.mxu0 0.0
    %1720 = vmatpush.msra.mxu0 %v1503
    %1721 = vmatmul.f32.gmra.mxu0 %v1703
    %v1722 = vpop.f32.mrf.mxu0
    %v1723 = vadd.f32 0.0, %v1722
    %1724 = vdwg.mxu0
    %v1726 = vsel %vm248, %v1655, 0
    %1728 = vmatpush.msra.mxu0 0.0
    %1729 = vmatpush.msra.mxu0 0.0
    %1730 = vmatpush.msra.mxu0 0.0
    %1731 = vmatpush.msra.mxu0 0.0
    %1732 = vmatpush.msra.mxu0 0.0
    %1733 = vmatpush.msra.mxu0 0.0
    %1734 = vmatpush.msra.mxu0 0.0
    %1735 = vmatpush.msra.mxu0 0.0
    %1736 = vmatpush.msra.mxu0 0.0
    %1737 = vmatpush.msra.mxu0 0.0
    %1738 = vmatpush.msra.mxu0 0.0
    %1739 = vmatpush.msra.mxu0 0.0
    %1740 = vmatpush.msra.mxu0 0.0
    %1741 = vmatpush.msra.mxu0 0.0
    %1742 = vmatpush.msra.mxu0 0.0
    %1743 = vmatpush.msra.mxu0 %v1506
    %1744 = vmatmul.f32.gmra.mxu0 %v1726
    %v1745 = vpop.f32.mrf.mxu0
    %v1746 = vadd.f32 0.0, %v1745
    %1747 = vdwg.mxu0
    %s1748 = scalar_lea.vmem %s6, 96
    %v1749 = vld [vmem:[%s1748] sm:$0xff]
    %v1750 = vld [vmem:[%s1748 + $0x8] sm:$0xff]
    %v1751 = vld [vmem:[%s1748 + $0x10] sm:$0xff]
    %v1752 = vld [vmem:[%s1748 + $0x18] sm:$0xff]
    %v1754 = vsel %vm248, %v1677, 0
    %v1757 = vsel %vm248, %v1700, 0
    %v1760 = vsel %vm248, %v1723, 0
    %v1763 = vsel %vm248, %v1746, 0
    %v1766 = vsel %vm248, %v1749, 0
    %v1769 = vsel %vm248, %v1750, 0
    %v1772 = vsel %vm248, %v1751, 0
    %v1775 = vsel %vm248, %v1752, 0
    %1777 = vmatpush.xpose.msra.mxu0 0.0
    %1778 = vmatpush.xpose.msra.mxu0 0.0
    %1779 = vmatpush.xpose.msra.mxu0 0.0
    %1780 = vmatpush.xpose.msra.mxu0 0.0
    %1781 = vmatpush.xpose.msra.mxu0 0.0
    %1782 = vmatpush.xpose.msra.mxu0 0.0
    %1783 = vmatpush.xpose.msra.mxu0 0.0
    %1784 = vmatpush.xpose.msra.mxu0 0.0
    %1785 = vmatpush.xpose.msra.mxu0 0.0
    %1786 = vmatpush.xpose.msra.mxu0 0.0
    %1787 = vmatpush.xpose.msra.mxu0 0.0
    %1788 = vmatpush.xpose.msra.mxu0 0.0
    %1789 = vmatpush.xpose.msra.mxu0 %v1775
    %1790 = vmatpush.xpose.msra.mxu0 %v1772
    %1791 = vmatpush.xpose.msra.mxu0 %v1769
    %1792 = vmatpush.xpose.msra.mxu0 %v1766
    %1793 = vmatmul.f32.gmra.mxu0 %v1754
    %v1794 = vpop.f32.mrf.mxu0
    %v1795 = vadd.f32 0.0, %v1794
    %1796 = vmatmul.f32.gmra.mxu0 %v1757
    %v1797 = vpop.f32.mrf.mxu0
    %v1798 = vadd.f32 0.0, %v1797
    %1799 = vmatmul.f32.gmra.mxu0 %v1760
    %v1800 = vpop.f32.mrf.mxu0
    %v1801 = vadd.f32 0.0, %v1800
    %1802 = vmatmul.f32.gmra.mxu0 %v1763
    %v1803 = vpop.f32.mrf.mxu0
    %v1804 = vadd.f32 0.0, %v1803
    %1805 = vdwg.mxu0
    %v1806 = vadd.f32 %v1387, %v1795
    %v1807 = vadd.f32 %v1388, %v1798
    %v1808 = vadd.f32 %v1389, %v1801
    %v1809 = vadd.f32 %v1390, %v1804
    %s1810 = scalar_lea.vmem %s7, 1
    %v1811 = vld [vmem:[%s1810] sm:$0x1]
    %s1812 = scalar_lea.vmem %s4, 96
    %v1813 = vld [vmem:[%s1812] sm:$0xff]
    %s1814 = scalar_lea.vmem %s5, 12
    %v1815 = vld [vmem:[%s1814] sm:$0x1]
    %v1817 = vperm.slane %v1815, 0
    %v1820 = vsel %vm125, %v1806, 0
    %v1823 = vsel %vm125, %v1807, 0
    %v1826 = vsel %vm125, %v1808, 0
    %v1829 = vsel %vm125, %v1809, 0
    %v1832 = vsel %vm125, %v1813, 0
    %1834 = vmatpush.xpose.msra.mxu0 0.0
    %1835 = vmatpush.xpose.msra.mxu0 0.0
    %1836 = vmatpush.xpose.msra.mxu0 0.0
    %1837 = vmatpush.xpose.msra.mxu0 0.0
    %1838 = vmatpush.xpose.msra.mxu0 0.0
    %1839 = vmatpush.xpose.msra.mxu0 0.0
    %1840 = vmatpush.xpose.msra.mxu0 0.0
    %1841 = vmatpush.xpose.msra.mxu0 0.0
    %1842 = vmatpush.xpose.msra.mxu0 0.0
    %1843 = vmatpush.xpose.msra.mxu0 0.0
    %1844 = vmatpush.xpose.msra.mxu0 0.0
    %1845 = vmatpush.xpose.msra.mxu0 0.0
    %1846 = vmatpush.xpose.msra.mxu0 0.0
    %1847 = vmatpush.xpose.msra.mxu0 0.0
    %1848 = vmatpush.xpose.msra.mxu0 0.0
    %1849 = vmatpush.xpose.msra.mxu0 %v1832
    %1850 = vmatmul.f32.gmra.mxu0 %v1820
    %v1851 = vpop.f32.mrf.mxu0
    %v1852 = vadd.f32 %v1817, %v1851
    %1853 = vmatmul.f32.gmra.mxu0 %v1823
    %v1854 = vpop.f32.mrf.mxu0
    %v1855 = vadd.f32 %v1817, %v1854
    %1856 = vmatmul.f32.gmra.mxu0 %v1826
    %v1857 = vpop.f32.mrf.mxu0
    %v1858 = vadd.f32 %v1817, %v1857
    %1859 = vmatmul.f32.gmra.mxu0 %v1829
    %v1860 = vpop.f32.mrf.mxu0
    %v1861 = vadd.f32 %v1817, %v1860
    %1862 = vdwg.mxu0
    %s1863 = scalar_lea.vmem %s4, 128
    %v1864 = vld [vmem:[%s1863] sm:$0xff]
    %s1865 = scalar_lea.vmem %s5, 16
    %v1866 = vld [vmem:[%s1865] sm:$0x1]
    %v1868 = vperm.slane %v1866, 0
    %v1871 = vsel %vm125, %v1864, 0
    %1873 = vmatpush.xpose.msra.mxu0 0.0
    %1874 = vmatpush.xpose.msra.mxu0 0.0
    %1875 = vmatpush.xpose.msra.mxu0 0.0
    %1876 = vmatpush.xpose.msra.mxu0 0.0
    %1877 = vmatpush.xpose.msra.mxu0 0.0
    %1878 = vmatpush.xpose.msra.mxu0 0.0
    %1879 = vmatpush.xpose.msra.mxu0 0.0
    %1880 = vmatpush.xpose.msra.mxu0 0.0
    %1881 = vmatpush.xpose.msra.mxu0 0.0
    %1882 = vmatpush.xpose.msra.mxu0 0.0
    %1883 = vmatpush.xpose.msra.mxu0 0.0
    %1884 = vmatpush.xpose.msra.mxu0 0.0
    %1885 = vmatpush.xpose.msra.mxu0 0.0
    %1886 = vmatpush.xpose.msra.mxu0 0.0
    %1887 = vmatpush.xpose.msra.mxu0 0.0
    %1888 = vmatpush.xpose.msra.mxu0 %v1871
    %1889 = vmatmul.f32.gmra.mxu0 %v1820
    %v1890 = vpop.f32.mrf.mxu0
    %v1891 = vadd.f32 %v1868, %v1890
    %1892 = vmatmul.f32.gmra.mxu0 %v1823
    %v1893 = vpop.f32.mrf.mxu0
    %v1894 = vadd.f32 %v1868, %v1893
    %1895 = vmatmul.f32.gmra.mxu0 %v1826
    %v1896 = vpop.f32.mrf.mxu0
    %v1897 = vadd.f32 %v1868, %v1896
    %1898 = vmatmul.f32.gmra.mxu0 %v1829
    %v1899 = vpop.f32.mrf.mxu0
    %v1900 = vadd.f32 %v1868, %v1899
    %1901 = vdwg.mxu0
    %s1902 = scalar_lea.vmem %s4, 160
    %v1903 = vld [vmem:[%s1902] sm:$0xff]
    %s1904 = scalar_lea.vmem %s5, 20
    %v1905 = vld [vmem:[%s1904] sm:$0x1]
    %v1907 = vperm.slane %v1905, 0
    %v1910 = vsel %vm125, %v1903, 0
    %1912 = vmatpush.xpose.msra.mxu0 0.0
    %1913 = vmatpush.xpose.msra.mxu0 0.0
    %1914 = vmatpush.xpose.msra.mxu0 0.0
    %1915 = vmatpush.xpose.msra.mxu0 0.0
    %1916 = vmatpush.xpose.msra.mxu0 0.0
    %1917 = vmatpush.xpose.msra.mxu0 0.0
    %1918 = vmatpush.xpose.msra.mxu0 0.0
    %1919 = vmatpush.xpose.msra.mxu0 0.0
    %1920 = vmatpush.xpose.msra.mxu0 0.0
    %1921 = vmatpush.xpose.msra.mxu0 0.0
    %1922 = vmatpush.xpose.msra.mxu0 0.0
    %1923 = vmatpush.xpose.msra.mxu0 0.0
    %1924 = vmatpush.xpose.msra.mxu0 0.0
    %1925 = vmatpush.xpose.msra.mxu0 0.0
    %1926 = vmatpush.xpose.msra.mxu0 0.0
    %1927 = vmatpush.xpose.msra.mxu0 %v1910
    %1928 = vmatmul.f32.gmra.mxu0 %v1820
    %v1929 = vpop.f32.mrf.mxu0
    %v1930 = vadd.f32 %v1907, %v1929
    %1931 = vmatmul.f32.gmra.mxu0 %v1823
    %v1932 = vpop.f32.mrf.mxu0
    %v1933 = vadd.f32 %v1907, %v1932
    %1934 = vmatmul.f32.gmra.mxu0 %v1826
    %v1935 = vpop.f32.mrf.mxu0
    %v1936 = vadd.f32 %v1907, %v1935
    %1937 = vmatmul.f32.gmra.mxu0 %v1829
    %v1938 = vpop.f32.mrf.mxu0
    %v1939 = vadd.f32 %v1907, %v1938
    %1940 = vdwg.mxu0
    %v1942 = vsel %vm248, %v1852, 0
    %v1945 = vsel %vm248, %v1891, 0
    %1947 = vmatpush.xpose.msra.mxu0 0.0
    %1948 = vmatpush.xpose.msra.mxu0 0.0
    %1949 = vmatpush.xpose.msra.mxu0 0.0
    %1950 = vmatpush.xpose.msra.mxu0 0.0
    %1951 = vmatpush.xpose.msra.mxu0 0.0
    %1952 = vmatpush.xpose.msra.mxu0 0.0
    %1953 = vmatpush.xpose.msra.mxu0 0.0
    %1954 = vmatpush.xpose.msra.mxu0 0.0
    %1955 = vmatpush.xpose.msra.mxu0 0.0
    %1956 = vmatpush.xpose.msra.mxu0 0.0
    %1957 = vmatpush.xpose.msra.mxu0 0.0
    %1958 = vmatpush.xpose.msra.mxu0 0.0
    %1959 = vmatpush.xpose.msra.mxu0 0.0
    %1960 = vmatpush.xpose.msra.mxu0 0.0
    %1961 = vmatpush.xpose.msra.mxu0 0.0
    %1962 = vmatpush.xpose.msra.mxu0 %v1945
    %1963 = vmatmul.f32.gmra.mxu0 %v1942
    %v1964 = vpop.f32.mrf.mxu0
    %v1965 = vadd.f32 0.0, %v1964
    %1966 = vdwg.mxu0
    %v1968 = vsel %vm248, %v1855, 0
    %v1971 = vsel %vm248, %v1894, 0
    %1973 = vmatpush.xpose.msra.mxu0 0.0
    %1974 = vmatpush.xpose.msra.mxu0 0.0
    %1975 = vmatpush.xpose.msra.mxu0 0.0
    %1976 = vmatpush.xpose.msra.mxu0 0.0
    %1977 = vmatpush.xpose.msra.mxu0 0.0
    %1978 = vmatpush.xpose.msra.mxu0 0.0
    %1979 = vmatpush.xpose.msra.mxu0 0.0
    %1980 = vmatpush.xpose.msra.mxu0 0.0
    %1981 = vmatpush.xpose.msra.mxu0 0.0
    %1982 = vmatpush.xpose.msra.mxu0 0.0
    %1983 = vmatpush.xpose.msra.mxu0 0.0
    %1984 = vmatpush.xpose.msra.mxu0 0.0
    %1985 = vmatpush.xpose.msra.mxu0 0.0
    %1986 = vmatpush.xpose.msra.mxu0 0.0
    %1987 = vmatpush.xpose.msra.mxu0 0.0
    %1988 = vmatpush.xpose.msra.mxu0 %v1971
    %1989 = vmatmul.f32.gmra.mxu0 %v1968
    %v1990 = vpop.f32.mrf.mxu0
    %v1991 = vadd.f32 0.0, %v1990
    %1992 = vdwg.mxu0
    %v1994 = vsel %vm248, %v1858, 0
    %v1997 = vsel %vm248, %v1897, 0
    %1999 = vmatpush.xpose.msra.mxu0 0.0
    %2000 = vmatpush.xpose.msra.mxu0 0.0
    %2001 = vmatpush.xpose.msra.mxu0 0.0
    %2002 = vmatpush.xpose.msra.mxu0 0.0
    %2003 = vmatpush.xpose.msra.mxu0 0.0
    %2004 = vmatpush.xpose.msra.mxu0 0.0
    %2005 = vmatpush.xpose.msra.mxu0 0.0
    %2006 = vmatpush.xpose.msra.mxu0 0.0
    %2007 = vmatpush.xpose.msra.mxu0 0.0
    %2008 = vmatpush.xpose.msra.mxu0 0.0
    %2009 = vmatpush.xpose.msra.mxu0 0.0
    %2010 = vmatpush.xpose.msra.mxu0 0.0
    %2011 = vmatpush.xpose.msra.mxu0 0.0
    %2012 = vmatpush.xpose.msra.mxu0 0.0
    %2013 = vmatpush.xpose.msra.mxu0 0.0
    %2014 = vmatpush.xpose.msra.mxu0 %v1997
    %2015 = vmatmul.f32.gmra.mxu0 %v1994
    %v2016 = vpop.f32.mrf.mxu0
    %v2017 = vadd.f32 0.0, %v2016
    %2018 = vdwg.mxu0
    %v2020 = vsel %vm248, %v1861, 0
    %v2023 = vsel %vm248, %v1900, 0
    %2025 = vmatpush.xpose.msra.mxu0 0.0
    %2026 = vmatpush.xpose.msra.mxu0 0.0
    %2027 = vmatpush.xpose.msra.mxu0 0.0
    %2028 = vmatpush.xpose.msra.mxu0 0.0
    %2029 = vmatpush.xpose.msra.mxu0 0.0
    %2030 = vmatpush.xpose.msra.mxu0 0.0
    %2031 = vmatpush.xpose.msra.mxu0 0.0
    %2032 = vmatpush.xpose.msra.mxu0 0.0
    %2033 = vmatpush.xpose.msra.mxu0 0.0
    %2034 = vmatpush.xpose.msra.mxu0 0.0
    %2035 = vmatpush.xpose.msra.mxu0 0.0
    %2036 = vmatpush.xpose.msra.mxu0 0.0
    %2037 = vmatpush.xpose.msra.mxu0 0.0
    %2038 = vmatpush.xpose.msra.mxu0 0.0
    %2039 = vmatpush.xpose.msra.mxu0 0.0
    %2040 = vmatpush.xpose.msra.mxu0 %v2023
    %2041 = vmatmul.f32.gmra.mxu0 %v2020
    %v2042 = vpop.f32.mrf.mxu0
    %v2043 = vadd.f32 0.0, %v2042
    %2044 = vdwg.mxu0
    %v2045 = vsel %vm248, %v1965, -inf
    %2046 = vmax.xlane.f32.xlu0 %v2045
    %v2047 = vpop.xlane.xlu0 %2046
    %v2048 = vsel %vm248, %v1991, -inf
    %2049 = vmax.xlane.f32.xlu0 %v2048
    %v2050 = vpop.xlane.xlu0 %2049
    %v2051 = vsel %vm248, %v2017, -inf
    %2052 = vmax.xlane.f32.xlu0 %v2051
    %v2053 = vpop.xlane.xlu0 %2052
    %v2054 = vsel %vm248, %v2043, -inf
    %2055 = vmax.xlane.f32.xlu0 %v2054
    %v2056 = vpop.xlane.xlu0 %2055
    %v2057 = vsub.f32 %v1965, %v2047
    %v2058 = vsub.f32 %v1991, %v2050
    %v2059 = vsub.f32 %v2017, %v2053
    %v2060 = vsub.f32 %v2043, %v2056
    %v2061 = vmul.f32 %v2057, 1.442695
    %v2062 = vpow.pop %v2061
    %v2063 = vmul.f32 %v2058, 1.442695
    %v2064 = vpow.pop %v2063
    %v2065 = vmul.f32 %v2059, 1.442695
    %v2066 = vpow.pop %v2065
    %v2067 = vmul.f32 %v2060, 1.442695
    %v2068 = vpow.pop %v2067
    %v2069 = vsel %vm248, %v2062, 0.0
    %2070 = vadd.xlane.f32.xlu0 %v2069
    %v2071 = vpop.xlane.xlu0 %2070
    %v2072 = vsel %vm248, %v2064, 0.0
    %2073 = vadd.xlane.f32.xlu0 %v2072
    %v2074 = vpop.xlane.xlu0 %2073
    %v2075 = vsel %vm248, %v2066, 0.0
    %2076 = vadd.xlane.f32.xlu0 %v2075
    %v2077 = vpop.xlane.xlu0 %2076
    %v2078 = vsel %vm248, %v2068, 0.0
    %2079 = vadd.xlane.f32.xlu0 %v2078
    %v2080 = vpop.xlane.xlu0 %2079
    %v2081 = vrcp.pop %v2071
    %v2082 = vrcp.pop %v2074
    %v2083 = vrcp.pop %v2077
    %v2084 = vrcp.pop %v2080
    %v2085 = vmul.f32 %v2062, %v2081
    %v2086 = vmul.f32 %v2064, %v2082
    %v2087 = vmul.f32 %v2066, %v2083
    %v2088 = vmul.f32 %v2068, %v2084
    %v2090 = vsel %vm248, %v2085, 0
    %2092 = vmatpush.msra.mxu0 0.0
    %2093 = vmatpush.msra.mxu0 0.0
    %2094 = vmatpush.msra.mxu0 0.0
    %2095 = vmatpush.msra.mxu0 0.0
    %2096 = vmatpush.msra.mxu0 0.0
    %2097 = vmatpush.msra.mxu0 0.0
    %2098 = vmatpush.msra.mxu0 0.0
    %2099 = vmatpush.msra.mxu0 0.0
    %2100 = vmatpush.msra.mxu0 0.0
    %2101 = vmatpush.msra.mxu0 0.0
    %2102 = vmatpush.msra.mxu0 0.0
    %2103 = vmatpush.msra.mxu0 0.0
    %2104 = vmatpush.msra.mxu0 0.0
    %2105 = vmatpush.msra.mxu0 0.0
    %2106 = vmatpush.msra.mxu0 0.0
    %2107 = vmatpush.msra.mxu0 %v1930
    %2108 = vmatmul.f32.gmra.mxu0 %v2090
    %v2109 = vpop.f32.mrf.mxu0
    %v2110 = vadd.f32 0.0, %v2109
    %2111 = vdwg.mxu0
    %v2113 = vsel %vm248, %v2086, 0
    %2115 = vmatpush.msra.mxu0 0.0
    %2116 = vmatpush.msra.mxu0 0.0
    %2117 = vmatpush.msra.mxu0 0.0
    %2118 = vmatpush.msra.mxu0 0.0
    %2119 = vmatpush.msra.mxu0 0.0
    %2120 = vmatpush.msra.mxu0 0.0
    %2121 = vmatpush.msra.mxu0 0.0
    %2122 = vmatpush.msra.mxu0 0.0
    %2123 = vmatpush.msra.mxu0 0.0
    %2124 = vmatpush.msra.mxu0 0.0
    %2125 = vmatpush.msra.mxu0 0.0
    %2126 = vmatpush.msra.mxu0 0.0
    %2127 = vmatpush.msra.mxu0 0.0
    %2128 = vmatpush.msra.mxu0 0.0
    %2129 = vmatpush.msra.mxu0 0.0
    %2130 = vmatpush.msra.mxu0 %v1933
    %2131 = vmatmul.f32.gmra.mxu0 %v2113
    %v2132 = vpop.f32.mrf.mxu0
    %v2133 = vadd.f32 0.0, %v2132
    %2134 = vdwg.mxu0
    %v2136 = vsel %vm248, %v2087, 0
    %2138 = vmatpush.msra.mxu0 0.0
    %2139 = vmatpush.msra.mxu0 0.0
    %2140 = vmatpush.msra.mxu0 0.0
    %2141 = vmatpush.msra.mxu0 0.0
    %2142 = vmatpush.msra.mxu0 0.0
    %2143 = vmatpush.msra.mxu0 0.0
    %2144 = vmatpush.msra.mxu0 0.0
    %2145 = vmatpush.msra.mxu0 0.0
    %2146 = vmatpush.msra.mxu0 0.0
    %2147 = vmatpush.msra.mxu0 0.0
    %2148 = vmatpush.msra.mxu0 0.0
    %2149 = vmatpush.msra.mxu0 0.0
    %2150 = vmatpush.msra.mxu0 0.0
    %2151 = vmatpush.msra.mxu0 0.0
    %2152 = vmatpush.msra.mxu0 0.0
    %2153 = vmatpush.msra.mxu0 %v1936
    %2154 = vmatmul.f32.gmra.mxu0 %v2136
    %v2155 = vpop.f32.mrf.mxu0
    %v2156 = vadd.f32 0.0, %v2155
    %2157 = vdwg.mxu0
    %v2159 = vsel %vm248, %v2088, 0
    %2161 = vmatpush.msra.mxu0 0.0
    %2162 = vmatpush.msra.mxu0 0.0
    %2163 = vmatpush.msra.mxu0 0.0
    %2164 = vmatpush.msra.mxu0 0.0
    %2165 = vmatpush.msra.mxu0 0.0
    %2166 = vmatpush.msra.mxu0 0.0
    %2167 = vmatpush.msra.mxu0 0.0
    %2168 = vmatpush.msra.mxu0 0.0
    %2169 = vmatpush.msra.mxu0 0.0
    %2170 = vmatpush.msra.mxu0 0.0
    %2171 = vmatpush.msra.mxu0 0.0
    %2172 = vmatpush.msra.mxu0 0.0
    %2173 = vmatpush.msra.mxu0 0.0
    %2174 = vmatpush.msra.mxu0 0.0
    %2175 = vmatpush.msra.mxu0 0.0
    %2176 = vmatpush.msra.mxu0 %v1939
    %2177 = vmatmul.f32.gmra.mxu0 %v2159
    %v2178 = vpop.f32.mrf.mxu0
    %v2179 = vadd.f32 0.0, %v2178
    %2180 = vdwg.mxu0
    %s2181 = scalar_lea.vmem %s6, 128
    %v2182 = vld [vmem:[%s2181] sm:$0xff]
    %v2183 = vld [vmem:[%s2181 + $0x8] sm:$0xff]
    %v2184 = vld [vmem:[%s2181 + $0x10] sm:$0xff]
    %v2185 = vld [vmem:[%s2181 + $0x18] sm:$0xff]
    %v2187 = vsel %vm248, %v2110, 0
    %v2190 = vsel %vm248, %v2133, 0
    %v2193 = vsel %vm248, %v2156, 0
    %v2196 = vsel %vm248, %v2179, 0
    %v2199 = vsel %vm248, %v2182, 0
    %v2202 = vsel %vm248, %v2183, 0
    %v2205 = vsel %vm248, %v2184, 0
    %v2208 = vsel %vm248, %v2185, 0
    %2210 = vmatpush.xpose.msra.mxu0 0.0
    %2211 = vmatpush.xpose.msra.mxu0 0.0
    %2212 = vmatpush.xpose.msra.mxu0 0.0
    %2213 = vmatpush.xpose.msra.mxu0 0.0
    %2214 = vmatpush.xpose.msra.mxu0 0.0
    %2215 = vmatpush.xpose.msra.mxu0 0.0
    %2216 = vmatpush.xpose.msra.mxu0 0.0
    %2217 = vmatpush.xpose.msra.mxu0 0.0
    %2218 = vmatpush.xpose.msra.mxu0 0.0
    %2219 = vmatpush.xpose.msra.mxu0 0.0
    %2220 = vmatpush.xpose.msra.mxu0 0.0
    %2221 = vmatpush.xpose.msra.mxu0 0.0
    %2222 = vmatpush.xpose.msra.mxu0 %v2208
    %2223 = vmatpush.xpose.msra.mxu0 %v2205
    %2224 = vmatpush.xpose.msra.mxu0 %v2202
    %2225 = vmatpush.xpose.msra.mxu0 %v2199
    %2226 = vmatmul.f32.gmra.mxu0 %v2187
    %v2227 = vpop.f32.mrf.mxu0
    %v2228 = vadd.f32 0.0, %v2227
    %2229 = vmatmul.f32.gmra.mxu0 %v2190
    %v2230 = vpop.f32.mrf.mxu0
    %v2231 = vadd.f32 0.0, %v2230
    %2232 = vmatmul.f32.gmra.mxu0 %v2193
    %v2233 = vpop.f32.mrf.mxu0
    %v2234 = vadd.f32 0.0, %v2233
    %2235 = vmatmul.f32.gmra.mxu0 %v2196
    %v2236 = vpop.f32.mrf.mxu0
    %v2237 = vadd.f32 0.0, %v2236
    %2238 = vdwg.mxu0
    %v2240 = vperm.slane %v1811, 0
    %v2242 = vadd.f32 %v2240, %v2228
    %v2243 = vadd.f32 %v2240, %v2231
    %v2244 = vadd.f32 %v2240, %v2234
    %v2245 = vadd.f32 %v2240, %v2237
    %s2246 = scalar_lea.vmem %s4, 104
    %v2247 = vld [vmem:[%s2246] sm:$0xff]
    %s2248 = scalar_lea.vmem %s5, 13
    %v2249 = vld [vmem:[%s2248] sm:$0x1]
    %v2251 = vperm.slane %v2249, 0
    %v2254 = vsel %vm125, %v2247, 0
    %2256 = vmatpush.xpose.msra.mxu0 0.0
    %2257 = vmatpush.xpose.msra.mxu0 0.0
    %2258 = vmatpush.xpose.msra.mxu0 0.0
    %2259 = vmatpush.xpose.msra.mxu0 0.0
    %2260 = vmatpush.xpose.msra.mxu0 0.0
    %2261 = vmatpush.xpose.msra.mxu0 0.0
    %2262 = vmatpush.xpose.msra.mxu0 0.0
    %2263 = vmatpush.xpose.msra.mxu0 0.0
    %2264 = vmatpush.xpose.msra.mxu0 0.0
    %2265 = vmatpush.xpose.msra.mxu0 0.0
    %2266 = vmatpush.xpose.msra.mxu0 0.0
    %2267 = vmatpush.xpose.msra.mxu0 0.0
    %2268 = vmatpush.xpose.msra.mxu0 0.0
    %2269 = vmatpush.xpose.msra.mxu0 0.0
    %2270 = vmatpush.xpose.msra.mxu0 0.0
    %2271 = vmatpush.xpose.msra.mxu0 %v2254
    %2272 = vmatmul.f32.gmra.mxu0 %v1820
    %v2273 = vpop.f32.mrf.mxu0
    %v2274 = vadd.f32 %v2251, %v2273
    %2275 = vmatmul.f32.gmra.mxu0 %v1823
    %v2276 = vpop.f32.mrf.mxu0
    %v2277 = vadd.f32 %v2251, %v2276
    %2278 = vmatmul.f32.gmra.mxu0 %v1826
    %v2279 = vpop.f32.mrf.mxu0
    %v2280 = vadd.f32 %v2251, %v2279
    %2281 = vmatmul.f32.gmra.mxu0 %v1829
    %v2282 = vpop.f32.mrf.mxu0
    %v2283 = vadd.f32 %v2251, %v2282
    %2284 = vdwg.mxu0
    %s2285 = scalar_lea.vmem %s4, 136
    %v2286 = vld [vmem:[%s2285] sm:$0xff]
    %s2287 = scalar_lea.vmem %s5, 17
    %v2288 = vld [vmem:[%s2287] sm:$0x1]
    %v2290 = vperm.slane %v2288, 0
    %v2293 = vsel %vm125, %v2286, 0
    %2295 = vmatpush.xpose.msra.mxu0 0.0
    %2296 = vmatpush.xpose.msra.mxu0 0.0
    %2297 = vmatpush.xpose.msra.mxu0 0.0
    %2298 = vmatpush.xpose.msra.mxu0 0.0
    %2299 = vmatpush.xpose.msra.mxu0 0.0
    %2300 = vmatpush.xpose.msra.mxu0 0.0
    %2301 = vmatpush.xpose.msra.mxu0 0.0
    %2302 = vmatpush.xpose.msra.mxu0 0.0
    %2303 = vmatpush.xpose.msra.mxu0 0.0
    %2304 = vmatpush.xpose.msra.mxu0 0.0
    %2305 = vmatpush.xpose.msra.mxu0 0.0
    %2306 = vmatpush.xpose.msra.mxu0 0.0
    %2307 = vmatpush.xpose.msra.mxu0 0.0
    %2308 = vmatpush.xpose.msra.mxu0 0.0
    %2309 = vmatpush.xpose.msra.mxu0 0.0
    %2310 = vmatpush.xpose.msra.mxu0 %v2293
    %2311 = vmatmul.f32.gmra.mxu0 %v1820
    %v2312 = vpop.f32.mrf.mxu0
    %v2313 = vadd.f32 %v2290, %v2312
    %2314 = vmatmul.f32.gmra.mxu0 %v1823
    %v2315 = vpop.f32.mrf.mxu0
    %v2316 = vadd.f32 %v2290, %v2315
    %2317 = vmatmul.f32.gmra.mxu0 %v1826
    %v2318 = vpop.f32.mrf.mxu0
    %v2319 = vadd.f32 %v2290, %v2318
    %2320 = vmatmul.f32.gmra.mxu0 %v1829
    %v2321 = vpop.f32.mrf.mxu0
    %v2322 = vadd.f32 %v2290, %v2321
    %2323 = vdwg.mxu0
    %s2324 = scalar_lea.vmem %s4, 168
    %v2325 = vld [vmem:[%s2324] sm:$0xff]
    %s2326 = scalar_lea.vmem %s5, 21
    %v2327 = vld [vmem:[%s2326] sm:$0x1]
    %v2329 = vperm.slane %v2327, 0
    %v2332 = vsel %vm125, %v2325, 0
    %2334 = vmatpush.xpose.msra.mxu0 0.0
    %2335 = vmatpush.xpose.msra.mxu0 0.0
    %2336 = vmatpush.xpose.msra.mxu0 0.0
    %2337 = vmatpush.xpose.msra.mxu0 0.0
    %2338 = vmatpush.xpose.msra.mxu0 0.0
    %2339 = vmatpush.xpose.msra.mxu0 0.0
    %2340 = vmatpush.xpose.msra.mxu0 0.0
    %2341 = vmatpush.xpose.msra.mxu0 0.0
    %2342 = vmatpush.xpose.msra.mxu0 0.0
    %2343 = vmatpush.xpose.msra.mxu0 0.0
    %2344 = vmatpush.xpose.msra.mxu0 0.0
    %2345 = vmatpush.xpose.msra.mxu0 0.0
    %2346 = vmatpush.xpose.msra.mxu0 0.0
    %2347 = vmatpush.xpose.msra.mxu0 0.0
    %2348 = vmatpush.xpose.msra.mxu0 0.0
    %2349 = vmatpush.xpose.msra.mxu0 %v2332
    %2350 = vmatmul.f32.gmra.mxu0 %v1820
    %v2351 = vpop.f32.mrf.mxu0
    %v2352 = vadd.f32 %v2329, %v2351
    %2353 = vmatmul.f32.gmra.mxu0 %v1823
    %v2354 = vpop.f32.mrf.mxu0
    %v2355 = vadd.f32 %v2329, %v2354
    %2356 = vmatmul.f32.gmra.mxu0 %v1826
    %v2357 = vpop.f32.mrf.mxu0
    %v2358 = vadd.f32 %v2329, %v2357
    %2359 = vmatmul.f32.gmra.mxu0 %v1829
    %v2360 = vpop.f32.mrf.mxu0
    %v2361 = vadd.f32 %v2329, %v2360
    %2362 = vdwg.mxu0
    %v2364 = vsel %vm248, %v2274, 0
    %v2367 = vsel %vm248, %v2313, 0
    %2369 = vmatpush.xpose.msra.mxu0 0.0
    %2370 = vmatpush.xpose.msra.mxu0 0.0
    %2371 = vmatpush.xpose.msra.mxu0 0.0
    %2372 = vmatpush.xpose.msra.mxu0 0.0
    %2373 = vmatpush.xpose.msra.mxu0 0.0
    %2374 = vmatpush.xpose.msra.mxu0 0.0
    %2375 = vmatpush.xpose.msra.mxu0 0.0
    %2376 = vmatpush.xpose.msra.mxu0 0.0
    %2377 = vmatpush.xpose.msra.mxu0 0.0
    %2378 = vmatpush.xpose.msra.mxu0 0.0
    %2379 = vmatpush.xpose.msra.mxu0 0.0
    %2380 = vmatpush.xpose.msra.mxu0 0.0
    %2381 = vmatpush.xpose.msra.mxu0 0.0
    %2382 = vmatpush.xpose.msra.mxu0 0.0
    %2383 = vmatpush.xpose.msra.mxu0 0.0
    %2384 = vmatpush.xpose.msra.mxu0 %v2367
    %2385 = vmatmul.f32.gmra.mxu0 %v2364
    %v2386 = vpop.f32.mrf.mxu0
    %v2387 = vadd.f32 0.0, %v2386
    %2388 = vdwg.mxu0
    %v2390 = vsel %vm248, %v2277, 0
    %v2393 = vsel %vm248, %v2316, 0
    %2395 = vmatpush.xpose.msra.mxu0 0.0
    %2396 = vmatpush.xpose.msra.mxu0 0.0
    %2397 = vmatpush.xpose.msra.mxu0 0.0
    %2398 = vmatpush.xpose.msra.mxu0 0.0
    %2399 = vmatpush.xpose.msra.mxu0 0.0
    %2400 = vmatpush.xpose.msra.mxu0 0.0
    %2401 = vmatpush.xpose.msra.mxu0 0.0
    %2402 = vmatpush.xpose.msra.mxu0 0.0
    %2403 = vmatpush.xpose.msra.mxu0 0.0
    %2404 = vmatpush.xpose.msra.mxu0 0.0
    %2405 = vmatpush.xpose.msra.mxu0 0.0
    %2406 = vmatpush.xpose.msra.mxu0 0.0
    %2407 = vmatpush.xpose.msra.mxu0 0.0
    %2408 = vmatpush.xpose.msra.mxu0 0.0
    %2409 = vmatpush.xpose.msra.mxu0 0.0
    %2410 = vmatpush.xpose.msra.mxu0 %v2393
    %2411 = vmatmul.f32.gmra.mxu0 %v2390
    %v2412 = vpop.f32.mrf.mxu0
    %v2413 = vadd.f32 0.0, %v2412
    %2414 = vdwg.mxu0
    %v2416 = vsel %vm248, %v2280, 0
    %v2419 = vsel %vm248, %v2319, 0
    %2421 = vmatpush.xpose.msra.mxu0 0.0
    %2422 = vmatpush.xpose.msra.mxu0 0.0
    %2423 = vmatpush.xpose.msra.mxu0 0.0
    %2424 = vmatpush.xpose.msra.mxu0 0.0
    %2425 = vmatpush.xpose.msra.mxu0 0.0
    %2426 = vmatpush.xpose.msra.mxu0 0.0
    %2427 = vmatpush.xpose.msra.mxu0 0.0
    %2428 = vmatpush.xpose.msra.mxu0 0.0
    %2429 = vmatpush.xpose.msra.mxu0 0.0
    %2430 = vmatpush.xpose.msra.mxu0 0.0
    %2431 = vmatpush.xpose.msra.mxu0 0.0
    %2432 = vmatpush.xpose.msra.mxu0 0.0
    %2433 = vmatpush.xpose.msra.mxu0 0.0
    %2434 = vmatpush.xpose.msra.mxu0 0.0
    %2435 = vmatpush.xpose.msra.mxu0 0.0
    %2436 = vmatpush.xpose.msra.mxu0 %v2419
    %2437 = vmatmul.f32.gmra.mxu0 %v2416
    %v2438 = vpop.f32.mrf.mxu0
    %v2439 = vadd.f32 0.0, %v2438
    %2440 = vdwg.mxu0
    %v2442 = vsel %vm248, %v2283, 0
    %v2445 = vsel %vm248, %v2322, 0
    %2447 = vmatpush.xpose.msra.mxu0 0.0
    %2448 = vmatpush.xpose.msra.mxu0 0.0
    %2449 = vmatpush.xpose.msra.mxu0 0.0
    %2450 = vmatpush.xpose.msra.mxu0 0.0
    %2451 = vmatpush.xpose.msra.mxu0 0.0
    %2452 = vmatpush.xpose.msra.mxu0 0.0
    %2453 = vmatpush.xpose.msra.mxu0 0.0
    %2454 = vmatpush.xpose.msra.mxu0 0.0
    %2455 = vmatpush.xpose.msra.mxu0 0.0
    %2456 = vmatpush.xpose.msra.mxu0 0.0
    %2457 = vmatpush.xpose.msra.mxu0 0.0
    %2458 = vmatpush.xpose.msra.mxu0 0.0
    %2459 = vmatpush.xpose.msra.mxu0 0.0
    %2460 = vmatpush.xpose.msra.mxu0 0.0
    %2461 = vmatpush.xpose.msra.mxu0 0.0
    %2462 = vmatpush.xpose.msra.mxu0 %v2445
    %2463 = vmatmul.f32.gmra.mxu0 %v2442
    %v2464 = vpop.f32.mrf.mxu0
    %v2465 = vadd.f32 0.0, %v2464
    %2466 = vdwg.mxu0
    %v2467 = vsel %vm248, %v2387, -inf
    %2468 = vmax.xlane.f32.xlu0 %v2467
    %v2469 = vpop.xlane.xlu0 %2468
    %v2470 = vsel %vm248, %v2413, -inf
    %2471 = vmax.xlane.f32.xlu0 %v2470
    %v2472 = vpop.xlane.xlu0 %2471
    %v2473 = vsel %vm248, %v2439, -inf
    %2474 = vmax.xlane.f32.xlu0 %v2473
    %v2475 = vpop.xlane.xlu0 %2474
    %v2476 = vsel %vm248, %v2465, -inf
    %2477 = vmax.xlane.f32.xlu0 %v2476
    %v2478 = vpop.xlane.xlu0 %2477
    %v2479 = vsub.f32 %v2387, %v2469
    %v2480 = vsub.f32 %v2413, %v2472
    %v2481 = vsub.f32 %v2439, %v2475
    %v2482 = vsub.f32 %v2465, %v2478
    %v2483 = vmul.f32 %v2479, 1.442695
    %v2484 = vpow.pop %v2483
    %v2485 = vmul.f32 %v2480, 1.442695
    %v2486 = vpow.pop %v2485
    %v2487 = vmul.f32 %v2481, 1.442695
    %v2488 = vpow.pop %v2487
    %v2489 = vmul.f32 %v2482, 1.442695
    %v2490 = vpow.pop %v2489
    %v2491 = vsel %vm248, %v2484, 0.0
    %2492 = vadd.xlane.f32.xlu0 %v2491
    %v2493 = vpop.xlane.xlu0 %2492
    %v2494 = vsel %vm248, %v2486, 0.0
    %2495 = vadd.xlane.f32.xlu0 %v2494
    %v2496 = vpop.xlane.xlu0 %2495
    %v2497 = vsel %vm248, %v2488, 0.0
    %2498 = vadd.xlane.f32.xlu0 %v2497
    %v2499 = vpop.xlane.xlu0 %2498
    %v2500 = vsel %vm248, %v2490, 0.0
    %2501 = vadd.xlane.f32.xlu0 %v2500
    %v2502 = vpop.xlane.xlu0 %2501
    %v2503 = vrcp.pop %v2493
    %v2504 = vrcp.pop %v2496
    %v2505 = vrcp.pop %v2499
    %v2506 = vrcp.pop %v2502
    %v2507 = vmul.f32 %v2484, %v2503
    %v2508 = vmul.f32 %v2486, %v2504
    %v2509 = vmul.f32 %v2488, %v2505
    %v2510 = vmul.f32 %v2490, %v2506
    %v2512 = vsel %vm248, %v2507, 0
    %2514 = vmatpush.msra.mxu0 0.0
    %2515 = vmatpush.msra.mxu0 0.0
    %2516 = vmatpush.msra.mxu0 0.0
    %2517 = vmatpush.msra.mxu0 0.0
    %2518 = vmatpush.msra.mxu0 0.0
    %2519 = vmatpush.msra.mxu0 0.0
    %2520 = vmatpush.msra.mxu0 0.0
    %2521 = vmatpush.msra.mxu0 0.0
    %2522 = vmatpush.msra.mxu0 0.0
    %2523 = vmatpush.msra.mxu0 0.0
    %2524 = vmatpush.msra.mxu0 0.0
    %2525 = vmatpush.msra.mxu0 0.0
    %2526 = vmatpush.msra.mxu0 0.0
    %2527 = vmatpush.msra.mxu0 0.0
    %2528 = vmatpush.msra.mxu0 0.0
    %2529 = vmatpush.msra.mxu0 %v2352
    %2530 = vmatmul.f32.gmra.mxu0 %v2512
    %v2531 = vpop.f32.mrf.mxu0
    %v2532 = vadd.f32 0.0, %v2531
    %2533 = vdwg.mxu0
    %v2535 = vsel %vm248, %v2508, 0
    %2537 = vmatpush.msra.mxu0 0.0
    %2538 = vmatpush.msra.mxu0 0.0
    %2539 = vmatpush.msra.mxu0 0.0
    %2540 = vmatpush.msra.mxu0 0.0
    %2541 = vmatpush.msra.mxu0 0.0
    %2542 = vmatpush.msra.mxu0 0.0
    %2543 = vmatpush.msra.mxu0 0.0
    %2544 = vmatpush.msra.mxu0 0.0
    %2545 = vmatpush.msra.mxu0 0.0
    %2546 = vmatpush.msra.mxu0 0.0
    %2547 = vmatpush.msra.mxu0 0.0
    %2548 = vmatpush.msra.mxu0 0.0
    %2549 = vmatpush.msra.mxu0 0.0
    %2550 = vmatpush.msra.mxu0 0.0
    %2551 = vmatpush.msra.mxu0 0.0
    %2552 = vmatpush.msra.mxu0 %v2355
    %2553 = vmatmul.f32.gmra.mxu0 %v2535
    %v2554 = vpop.f32.mrf.mxu0
    %v2555 = vadd.f32 0.0, %v2554
    %2556 = vdwg.mxu0
    %v2558 = vsel %vm248, %v2509, 0
    %2560 = vmatpush.msra.mxu0 0.0
    %2561 = vmatpush.msra.mxu0 0.0
    %2562 = vmatpush.msra.mxu0 0.0
    %2563 = vmatpush.msra.mxu0 0.0
    %2564 = vmatpush.msra.mxu0 0.0
    %2565 = vmatpush.msra.mxu0 0.0
    %2566 = vmatpush.msra.mxu0 0.0
    %2567 = vmatpush.msra.mxu0 0.0
    %2568 = vmatpush.msra.mxu0 0.0
    %2569 = vmatpush.msra.mxu0 0.0
    %2570 = vmatpush.msra.mxu0 0.0
    %2571 = vmatpush.msra.mxu0 0.0
    %2572 = vmatpush.msra.mxu0 0.0
    %2573 = vmatpush.msra.mxu0 0.0
    %2574 = vmatpush.msra.mxu0 0.0
    %2575 = vmatpush.msra.mxu0 %v2358
    %2576 = vmatmul.f32.gmra.mxu0 %v2558
    %v2577 = vpop.f32.mrf.mxu0
    %v2578 = vadd.f32 0.0, %v2577
    %2579 = vdwg.mxu0
    %v2581 = vsel %vm248, %v2510, 0
    %2583 = vmatpush.msra.mxu0 0.0
    %2584 = vmatpush.msra.mxu0 0.0
    %2585 = vmatpush.msra.mxu0 0.0
    %2586 = vmatpush.msra.mxu0 0.0
    %2587 = vmatpush.msra.mxu0 0.0
    %2588 = vmatpush.msra.mxu0 0.0
    %2589 = vmatpush.msra.mxu0 0.0
    %2590 = vmatpush.msra.mxu0 0.0
    %2591 = vmatpush.msra.mxu0 0.0
    %2592 = vmatpush.msra.mxu0 0.0
    %2593 = vmatpush.msra.mxu0 0.0
    %2594 = vmatpush.msra.mxu0 0.0
    %2595 = vmatpush.msra.mxu0 0.0
    %2596 = vmatpush.msra.mxu0 0.0
    %2597 = vmatpush.msra.mxu0 0.0
    %2598 = vmatpush.msra.mxu0 %v2361
    %2599 = vmatmul.f32.gmra.mxu0 %v2581
    %v2600 = vpop.f32.mrf.mxu0
    %v2601 = vadd.f32 0.0, %v2600
    %2602 = vdwg.mxu0
    %s2603 = scalar_lea.vmem %s6, 160
    %v2604 = vld [vmem:[%s2603] sm:$0xff]
    %v2605 = vld [vmem:[%s2603 + $0x8] sm:$0xff]
    %v2606 = vld [vmem:[%s2603 + $0x10] sm:$0xff]
    %v2607 = vld [vmem:[%s2603 + $0x18] sm:$0xff]
    %v2609 = vsel %vm248, %v2532, 0
    %v2612 = vsel %vm248, %v2555, 0
    %v2615 = vsel %vm248, %v2578, 0
    %v2618 = vsel %vm248, %v2601, 0
    %v2621 = vsel %vm248, %v2604, 0
    %v2624 = vsel %vm248, %v2605, 0
    %v2627 = vsel %vm248, %v2606, 0
    %v2630 = vsel %vm248, %v2607, 0
    %2632 = vmatpush.xpose.msra.mxu0 0.0
    %2633 = vmatpush.xpose.msra.mxu0 0.0
    %2634 = vmatpush.xpose.msra.mxu0 0.0
    %2635 = vmatpush.xpose.msra.mxu0 0.0
    %2636 = vmatpush.xpose.msra.mxu0 0.0
    %2637 = vmatpush.xpose.msra.mxu0 0.0
    %2638 = vmatpush.xpose.msra.mxu0 0.0
    %2639 = vmatpush.xpose.msra.mxu0 0.0
    %2640 = vmatpush.xpose.msra.mxu0 0.0
    %2641 = vmatpush.xpose.msra.mxu0 0.0
    %2642 = vmatpush.xpose.msra.mxu0 0.0
    %2643 = vmatpush.xpose.msra.mxu0 0.0
    %2644 = vmatpush.xpose.msra.mxu0 %v2630
    %2645 = vmatpush.xpose.msra.mxu0 %v2627
    %2646 = vmatpush.xpose.msra.mxu0 %v2624
    %2647 = vmatpush.xpose.msra.mxu0 %v2621
    %2648 = vmatmul.f32.gmra.mxu0 %v2609
    %v2649 = vpop.f32.mrf.mxu0
    %v2650 = vadd.f32 0.0, %v2649
    %2651 = vmatmul.f32.gmra.mxu0 %v2612
    %v2652 = vpop.f32.mrf.mxu0
    %v2653 = vadd.f32 0.0, %v2652
    %2654 = vmatmul.f32.gmra.mxu0 %v2615
    %v2655 = vpop.f32.mrf.mxu0
    %v2656 = vadd.f32 0.0, %v2655
    %2657 = vmatmul.f32.gmra.mxu0 %v2618
    %v2658 = vpop.f32.mrf.mxu0
    %v2659 = vadd.f32 0.0, %v2658
    %2660 = vdwg.mxu0
    %v2661 = vadd.f32 %v2242, %v2650
    %v2662 = vadd.f32 %v2243, %v2653
    %v2663 = vadd.f32 %v2244, %v2656
    %v2664 = vadd.f32 %v2245, %v2659
    %s2665 = scalar_lea.vmem %s4, 112
    %v2666 = vld [vmem:[%s2665] sm:$0xff]
    %s2667 = scalar_lea.vmem %s5, 14
    %v2668 = vld [vmem:[%s2667] sm:$0x1]
    %v2670 = vperm.slane %v2668, 0
    %v2673 = vsel %vm125, %v2666, 0
    %2675 = vmatpush.xpose.msra.mxu0 0.0
    %2676 = vmatpush.xpose.msra.mxu0 0.0
    %2677 = vmatpush.xpose.msra.mxu0 0.0
    %2678 = vmatpush.xpose.msra.mxu0 0.0
    %2679 = vmatpush.xpose.msra.mxu0 0.0
    %2680 = vmatpush.xpose.msra.mxu0 0.0
    %2681 = vmatpush.xpose.msra.mxu0 0.0
    %2682 = vmatpush.xpose.msra.mxu0 0.0
    %2683 = vmatpush.xpose.msra.mxu0 0.0
    %2684 = vmatpush.xpose.msra.mxu0 0.0
    %2685 = vmatpush.xpose.msra.mxu0 0.0
    %2686 = vmatpush.xpose.msra.mxu0 0.0
    %2687 = vmatpush.xpose.msra.mxu0 0.0
    %2688 = vmatpush.xpose.msra.mxu0 0.0
    %2689 = vmatpush.xpose.msra.mxu0 0.0
    %2690 = vmatpush.xpose.msra.mxu0 %v2673
    %2691 = vmatmul.f32.gmra.mxu0 %v1820
    %v2692 = vpop.f32.mrf.mxu0
    %v2693 = vadd.f32 %v2670, %v2692
    %2694 = vmatmul.f32.gmra.mxu0 %v1823
    %v2695 = vpop.f32.mrf.mxu0
    %v2696 = vadd.f32 %v2670, %v2695
    %2697 = vmatmul.f32.gmra.mxu0 %v1826
    %v2698 = vpop.f32.mrf.mxu0
    %v2699 = vadd.f32 %v2670, %v2698
    %2700 = vmatmul.f32.gmra.mxu0 %v1829
    %v2701 = vpop.f32.mrf.mxu0
    %v2702 = vadd.f32 %v2670, %v2701
    %2703 = vdwg.mxu0
    %s2704 = scalar_lea.vmem %s4, 144
    %v2705 = vld [vmem:[%s2704] sm:$0xff]
    %s2706 = scalar_lea.vmem %s5, 18
    %v2707 = vld [vmem:[%s2706] sm:$0x1]
    %v2709 = vperm.slane %v2707, 0
    %v2712 = vsel %vm125, %v2705, 0
    %2714 = vmatpush.xpose.msra.mxu0 0.0
    %2715 = vmatpush.xpose.msra.mxu0 0.0
    %2716 = vmatpush.xpose.msra.mxu0 0.0
    %2717 = vmatpush.xpose.msra.mxu0 0.0
    %2718 = vmatpush.xpose.msra.mxu0 0.0
    %2719 = vmatpush.xpose.msra.mxu0 0.0
    %2720 = vmatpush.xpose.msra.mxu0 0.0
    %2721 = vmatpush.xpose.msra.mxu0 0.0
    %2722 = vmatpush.xpose.msra.mxu0 0.0
    %2723 = vmatpush.xpose.msra.mxu0 0.0
    %2724 = vmatpush.xpose.msra.mxu0 0.0
    %2725 = vmatpush.xpose.msra.mxu0 0.0
    %2726 = vmatpush.xpose.msra.mxu0 0.0
    %2727 = vmatpush.xpose.msra.mxu0 0.0
    %2728 = vmatpush.xpose.msra.mxu0 0.0
    %2729 = vmatpush.xpose.msra.mxu0 %v2712
    %2730 = vmatmul.f32.gmra.mxu0 %v1820
    %v2731 = vpop.f32.mrf.mxu0
    %v2732 = vadd.f32 %v2709, %v2731
    %2733 = vmatmul.f32.gmra.mxu0 %v1823
    %v2734 = vpop.f32.mrf.mxu0
    %v2735 = vadd.f32 %v2709, %v2734
    %2736 = vmatmul.f32.gmra.mxu0 %v1826
    %v2737 = vpop.f32.mrf.mxu0
    %v2738 = vadd.f32 %v2709, %v2737
    %2739 = vmatmul.f32.gmra.mxu0 %v1829
    %v2740 = vpop.f32.mrf.mxu0
    %v2741 = vadd.f32 %v2709, %v2740
    %2742 = vdwg.mxu0
    %s2743 = scalar_lea.vmem %s4, 176
    %v2744 = vld [vmem:[%s2743] sm:$0xff]
    %s2745 = scalar_lea.vmem %s5, 22
    %v2746 = vld [vmem:[%s2745] sm:$0x1]
    %v2748 = vperm.slane %v2746, 0
    %v2751 = vsel %vm125, %v2744, 0
    %2753 = vmatpush.xpose.msra.mxu0 0.0
    %2754 = vmatpush.xpose.msra.mxu0 0.0
    %2755 = vmatpush.xpose.msra.mxu0 0.0
    %2756 = vmatpush.xpose.msra.mxu0 0.0
    %2757 = vmatpush.xpose.msra.mxu0 0.0
    %2758 = vmatpush.xpose.msra.mxu0 0.0
    %2759 = vmatpush.xpose.msra.mxu0 0.0
    %2760 = vmatpush.xpose.msra.mxu0 0.0
    %2761 = vmatpush.xpose.msra.mxu0 0.0
    %2762 = vmatpush.xpose.msra.mxu0 0.0
    %2763 = vmatpush.xpose.msra.mxu0 0.0
    %2764 = vmatpush.xpose.msra.mxu0 0.0
    %2765 = vmatpush.xpose.msra.mxu0 0.0
    %2766 = vmatpush.xpose.msra.mxu0 0.0
    %2767 = vmatpush.xpose.msra.mxu0 0.0
    %2768 = vmatpush.xpose.msra.mxu0 %v2751
    %2769 = vmatmul.f32.gmra.mxu0 %v1820
    %v2770 = vpop.f32.mrf.mxu0
    %v2771 = vadd.f32 %v2748, %v2770
    %2772 = vmatmul.f32.gmra.mxu0 %v1823
    %v2773 = vpop.f32.mrf.mxu0
    %v2774 = vadd.f32 %v2748, %v2773
    %2775 = vmatmul.f32.gmra.mxu0 %v1826
    %v2776 = vpop.f32.mrf.mxu0
    %v2777 = vadd.f32 %v2748, %v2776
    %2778 = vmatmul.f32.gmra.mxu0 %v1829
    %v2779 = vpop.f32.mrf.mxu0
    %v2780 = vadd.f32 %v2748, %v2779
    %2781 = vdwg.mxu0
    %v2783 = vsel %vm248, %v2693, 0
    %v2786 = vsel %vm248, %v2732, 0
    %2788 = vmatpush.xpose.msra.mxu0 0.0
    %2789 = vmatpush.xpose.msra.mxu0 0.0
    %2790 = vmatpush.xpose.msra.mxu0 0.0
    %2791 = vmatpush.xpose.msra.mxu0 0.0
    %2792 = vmatpush.xpose.msra.mxu0 0.0
    %2793 = vmatpush.xpose.msra.mxu0 0.0
    %2794 = vmatpush.xpose.msra.mxu0 0.0
    %2795 = vmatpush.xpose.msra.mxu0 0.0
    %2796 = vmatpush.xpose.msra.mxu0 0.0
    %2797 = vmatpush.xpose.msra.mxu0 0.0
    %2798 = vmatpush.xpose.msra.mxu0 0.0
    %2799 = vmatpush.xpose.msra.mxu0 0.0
    %2800 = vmatpush.xpose.msra.mxu0 0.0
    %2801 = vmatpush.xpose.msra.mxu0 0.0
    %2802 = vmatpush.xpose.msra.mxu0 0.0
    %2803 = vmatpush.xpose.msra.mxu0 %v2786
    %2804 = vmatmul.f32.gmra.mxu0 %v2783
    %v2805 = vpop.f32.mrf.mxu0
    %v2806 = vadd.f32 0.0, %v2805
    %2807 = vdwg.mxu0
    %v2809 = vsel %vm248, %v2696, 0
    %v2812 = vsel %vm248, %v2735, 0
    %2814 = vmatpush.xpose.msra.mxu0 0.0
    %2815 = vmatpush.xpose.msra.mxu0 0.0
    %2816 = vmatpush.xpose.msra.mxu0 0.0
    %2817 = vmatpush.xpose.msra.mxu0 0.0
    %2818 = vmatpush.xpose.msra.mxu0 0.0
    %2819 = vmatpush.xpose.msra.mxu0 0.0
    %2820 = vmatpush.xpose.msra.mxu0 0.0
    %2821 = vmatpush.xpose.msra.mxu0 0.0
    %2822 = vmatpush.xpose.msra.mxu0 0.0
    %2823 = vmatpush.xpose.msra.mxu0 0.0
    %2824 = vmatpush.xpose.msra.mxu0 0.0
    %2825 = vmatpush.xpose.msra.mxu0 0.0
    %2826 = vmatpush.xpose.msra.mxu0 0.0
    %2827 = vmatpush.xpose.msra.mxu0 0.0
    %2828 = vmatpush.xpose.msra.mxu0 0.0
    %2829 = vmatpush.xpose.msra.mxu0 %v2812
    %2830 = vmatmul.f32.gmra.mxu0 %v2809
    %v2831 = vpop.f32.mrf.mxu0
    %v2832 = vadd.f32 0.0, %v2831
    %2833 = vdwg.mxu0
    %v2835 = vsel %vm248, %v2699, 0
    %v2838 = vsel %vm248, %v2738, 0
    %2840 = vmatpush.xpose.msra.mxu0 0.0
    %2841 = vmatpush.xpose.msra.mxu0 0.0
    %2842 = vmatpush.xpose.msra.mxu0 0.0
    %2843 = vmatpush.xpose.msra.mxu0 0.0
    %2844 = vmatpush.xpose.msra.mxu0 0.0
    %2845 = vmatpush.xpose.msra.mxu0 0.0
    %2846 = vmatpush.xpose.msra.mxu0 0.0
    %2847 = vmatpush.xpose.msra.mxu0 0.0
    %2848 = vmatpush.xpose.msra.mxu0 0.0
    %2849 = vmatpush.xpose.msra.mxu0 0.0
    %2850 = vmatpush.xpose.msra.mxu0 0.0
    %2851 = vmatpush.xpose.msra.mxu0 0.0
    %2852 = vmatpush.xpose.msra.mxu0 0.0
    %2853 = vmatpush.xpose.msra.mxu0 0.0
    %2854 = vmatpush.xpose.msra.mxu0 0.0
    %2855 = vmatpush.xpose.msra.mxu0 %v2838
    %2856 = vmatmul.f32.gmra.mxu0 %v2835
    %v2857 = vpop.f32.mrf.mxu0
    %v2858 = vadd.f32 0.0, %v2857
    %2859 = vdwg.mxu0
    %v2861 = vsel %vm248, %v2702, 0
    %v2864 = vsel %vm248, %v2741, 0
    %2866 = vmatpush.xpose.msra.mxu0 0.0
    %2867 = vmatpush.xpose.msra.mxu0 0.0
    %2868 = vmatpush.xpose.msra.mxu0 0.0
    %2869 = vmatpush.xpose.msra.mxu0 0.0
    %2870 = vmatpush.xpose.msra.mxu0 0.0
    %2871 = vmatpush.xpose.msra.mxu0 0.0
    %2872 = vmatpush.xpose.msra.mxu0 0.0
    %2873 = vmatpush.xpose.msra.mxu0 0.0
    %2874 = vmatpush.xpose.msra.mxu0 0.0
    %2875 = vmatpush.xpose.msra.mxu0 0.0
    %2876 = vmatpush.xpose.msra.mxu0 0.0
    %2877 = vmatpush.xpose.msra.mxu0 0.0
    %2878 = vmatpush.xpose.msra.mxu0 0.0
    %2879 = vmatpush.xpose.msra.mxu0 0.0
    %2880 = vmatpush.xpose.msra.mxu0 0.0
    %2881 = vmatpush.xpose.msra.mxu0 %v2864
    %2882 = vmatmul.f32.gmra.mxu0 %v2861
    %v2883 = vpop.f32.mrf.mxu0
    %v2884 = vadd.f32 0.0, %v2883
    %2885 = vdwg.mxu0
    %v2886 = vsel %vm248, %v2806, -inf
    %2887 = vmax.xlane.f32.xlu0 %v2886
    %v2888 = vpop.xlane.xlu0 %2887
    %v2889 = vsel %vm248, %v2832, -inf
    %2890 = vmax.xlane.f32.xlu0 %v2889
    %v2891 = vpop.xlane.xlu0 %2890
    %v2892 = vsel %vm248, %v2858, -inf
    %2893 = vmax.xlane.f32.xlu0 %v2892
    %v2894 = vpop.xlane.xlu0 %2893
    %v2895 = vsel %vm248, %v2884, -inf
    %2896 = vmax.xlane.f32.xlu0 %v2895
    %v2897 = vpop.xlane.xlu0 %2896
    %v2898 = vsub.f32 %v2806, %v2888
    %v2899 = vsub.f32 %v2832, %v2891
    %v2900 = vsub.f32 %v2858, %v2894
    %v2901 = vsub.f32 %v2884, %v2897
    %v2902 = vmul.f32 %v2898, 1.442695
    %v2903 = vpow.pop %v2902
    %v2904 = vmul.f32 %v2899, 1.442695
    %v2905 = vpow.pop %v2904
    %v2906 = vmul.f32 %v2900, 1.442695
    %v2907 = vpow.pop %v2906
    %v2908 = vmul.f32 %v2901, 1.442695
    %v2909 = vpow.pop %v2908
    %v2910 = vsel %vm248, %v2903, 0.0
    %2911 = vadd.xlane.f32.xlu0 %v2910
    %v2912 = vpop.xlane.xlu0 %2911
    %v2913 = vsel %vm248, %v2905, 0.0
    %2914 = vadd.xlane.f32.xlu0 %v2913
    %v2915 = vpop.xlane.xlu0 %2914
    %v2916 = vsel %vm248, %v2907, 0.0
    %2917 = vadd.xlane.f32.xlu0 %v2916
    %v2918 = vpop.xlane.xlu0 %2917
    %v2919 = vsel %vm248, %v2909, 0.0
    %2920 = vadd.xlane.f32.xlu0 %v2919
    %v2921 = vpop.xlane.xlu0 %2920
    %v2922 = vrcp.pop %v2912
    %v2923 = vrcp.pop %v2915
    %v2924 = vrcp.pop %v2918
    %v2925 = vrcp.pop %v2921
    %v2926 = vmul.f32 %v2903, %v2922
    %v2927 = vmul.f32 %v2905, %v2923
    %v2928 = vmul.f32 %v2907, %v2924
    %v2929 = vmul.f32 %v2909, %v2925
    %v2931 = vsel %vm248, %v2926, 0
    %2933 = vmatpush.msra.mxu0 0.0
    %2934 = vmatpush.msra.mxu0 0.0
    %2935 = vmatpush.msra.mxu0 0.0
    %2936 = vmatpush.msra.mxu0 0.0
    %2937 = vmatpush.msra.mxu0 0.0
    %2938 = vmatpush.msra.mxu0 0.0
    %2939 = vmatpush.msra.mxu0 0.0
    %2940 = vmatpush.msra.mxu0 0.0
    %2941 = vmatpush.msra.mxu0 0.0
    %2942 = vmatpush.msra.mxu0 0.0
    %2943 = vmatpush.msra.mxu0 0.0
    %2944 = vmatpush.msra.mxu0 0.0
    %2945 = vmatpush.msra.mxu0 0.0
    %2946 = vmatpush.msra.mxu0 0.0
    %2947 = vmatpush.msra.mxu0 0.0
    %2948 = vmatpush.msra.mxu0 %v2771
    %2949 = vmatmul.f32.gmra.mxu0 %v2931
    %v2950 = vpop.f32.mrf.mxu0
    %v2951 = vadd.f32 0.0, %v2950
    %2952 = vdwg.mxu0
    %v2954 = vsel %vm248, %v2927, 0
    %2956 = vmatpush.msra.mxu0 0.0
    %2957 = vmatpush.msra.mxu0 0.0
    %2958 = vmatpush.msra.mxu0 0.0
    %2959 = vmatpush.msra.mxu0 0.0
    %2960 = vmatpush.msra.mxu0 0.0
    %2961 = vmatpush.msra.mxu0 0.0
    %2962 = vmatpush.msra.mxu0 0.0
    %2963 = vmatpush.msra.mxu0 0.0
    %2964 = vmatpush.msra.mxu0 0.0
    %2965 = vmatpush.msra.mxu0 0.0
    %2966 = vmatpush.msra.mxu0 0.0
    %2967 = vmatpush.msra.mxu0 0.0
    %2968 = vmatpush.msra.mxu0 0.0
    %2969 = vmatpush.msra.mxu0 0.0
    %2970 = vmatpush.msra.mxu0 0.0
    %2971 = vmatpush.msra.mxu0 %v2774
    %2972 = vmatmul.f32.gmra.mxu0 %v2954
    %v2973 = vpop.f32.mrf.mxu0
    %v2974 = vadd.f32 0.0, %v2973
    %2975 = vdwg.mxu0
    %v2977 = vsel %vm248, %v2928, 0
    %2979 = vmatpush.msra.mxu0 0.0
    %2980 = vmatpush.msra.mxu0 0.0
    %2981 = vmatpush.msra.mxu0 0.0
    %2982 = vmatpush.msra.mxu0 0.0
    %2983 = vmatpush.msra.mxu0 0.0
    %2984 = vmatpush.msra.mxu0 0.0
    %2985 = vmatpush.msra.mxu0 0.0
    %2986 = vmatpush.msra.mxu0 0.0
    %2987 = vmatpush.msra.mxu0 0.0
    %2988 = vmatpush.msra.mxu0 0.0
    %2989 = vmatpush.msra.mxu0 0.0
    %2990 = vmatpush.msra.mxu0 0.0
    %2991 = vmatpush.msra.mxu0 0.0
    %2992 = vmatpush.msra.mxu0 0.0
    %2993 = vmatpush.msra.mxu0 0.0
    %2994 = vmatpush.msra.mxu0 %v2777
    %2995 = vmatmul.f32.gmra.mxu0 %v2977
    %v2996 = vpop.f32.mrf.mxu0
    %v2997 = vadd.f32 0.0, %v2996
    %2998 = vdwg.mxu0
    %v3000 = vsel %vm248, %v2929, 0
    %3002 = vmatpush.msra.mxu0 0.0
    %3003 = vmatpush.msra.mxu0 0.0
    %3004 = vmatpush.msra.mxu0 0.0
    %3005 = vmatpush.msra.mxu0 0.0
    %3006 = vmatpush.msra.mxu0 0.0
    %3007 = vmatpush.msra.mxu0 0.0
    %3008 = vmatpush.msra.mxu0 0.0
    %3009 = vmatpush.msra.mxu0 0.0
    %3010 = vmatpush.msra.mxu0 0.0
    %3011 = vmatpush.msra.mxu0 0.0
    %3012 = vmatpush.msra.mxu0 0.0
    %3013 = vmatpush.msra.mxu0 0.0
    %3014 = vmatpush.msra.mxu0 0.0
    %3015 = vmatpush.msra.mxu0 0.0
    %3016 = vmatpush.msra.mxu0 0.0
    %3017 = vmatpush.msra.mxu0 %v2780
    %3018 = vmatmul.f32.gmra.mxu0 %v3000
    %v3019 = vpop.f32.mrf.mxu0
    %v3020 = vadd.f32 0.0, %v3019
    %3021 = vdwg.mxu0
    %s3022 = scalar_lea.vmem %s6, 192
    %v3023 = vld [vmem:[%s3022] sm:$0xff]
    %v3024 = vld [vmem:[%s3022 + $0x8] sm:$0xff]
    %v3025 = vld [vmem:[%s3022 + $0x10] sm:$0xff]
    %v3026 = vld [vmem:[%s3022 + $0x18] sm:$0xff]
    %v3028 = vsel %vm248, %v2951, 0
    %v3031 = vsel %vm248, %v2974, 0
    %v3034 = vsel %vm248, %v2997, 0
    %v3037 = vsel %vm248, %v3020, 0
    %v3040 = vsel %vm248, %v3023, 0
    %v3043 = vsel %vm248, %v3024, 0
    %v3046 = vsel %vm248, %v3025, 0
    %v3049 = vsel %vm248, %v3026, 0
    %3051 = vmatpush.xpose.msra.mxu0 0.0
    %3052 = vmatpush.xpose.msra.mxu0 0.0
    %3053 = vmatpush.xpose.msra.mxu0 0.0
    %3054 = vmatpush.xpose.msra.mxu0 0.0
    %3055 = vmatpush.xpose.msra.mxu0 0.0
    %3056 = vmatpush.xpose.msra.mxu0 0.0
    %3057 = vmatpush.xpose.msra.mxu0 0.0
    %3058 = vmatpush.xpose.msra.mxu0 0.0
    %3059 = vmatpush.xpose.msra.mxu0 0.0
    %3060 = vmatpush.xpose.msra.mxu0 0.0
    %3061 = vmatpush.xpose.msra.mxu0 0.0
    %3062 = vmatpush.xpose.msra.mxu0 0.0
    %3063 = vmatpush.xpose.msra.mxu0 %v3049
    %3064 = vmatpush.xpose.msra.mxu0 %v3046
    %3065 = vmatpush.xpose.msra.mxu0 %v3043
    %3066 = vmatpush.xpose.msra.mxu0 %v3040
    %3067 = vmatmul.f32.gmra.mxu0 %v3028
    %v3068 = vpop.f32.mrf.mxu0
    %v3069 = vadd.f32 0.0, %v3068
    %3070 = vmatmul.f32.gmra.mxu0 %v3031
    %v3071 = vpop.f32.mrf.mxu0
    %v3072 = vadd.f32 0.0, %v3071
    %3073 = vmatmul.f32.gmra.mxu0 %v3034
    %v3074 = vpop.f32.mrf.mxu0
    %v3075 = vadd.f32 0.0, %v3074
    %3076 = vmatmul.f32.gmra.mxu0 %v3037
    %v3077 = vpop.f32.mrf.mxu0
    %v3078 = vadd.f32 0.0, %v3077
    %3079 = vdwg.mxu0
    %v3080 = vadd.f32 %v2661, %v3069
    %v3081 = vadd.f32 %v2662, %v3072
    %v3082 = vadd.f32 %v2663, %v3075
    %v3083 = vadd.f32 %v2664, %v3078
    %s3084 = scalar_lea.vmem %s4, 120
    %v3085 = vld [vmem:[%s3084] sm:$0xff]
    %s3086 = scalar_lea.vmem %s5, 15
    %v3087 = vld [vmem:[%s3086] sm:$0x1]
    %v3089 = vperm.slane %v3087, 0
    %v3092 = vsel %vm125, %v3085, 0
    %3094 = vmatpush.xpose.msra.mxu0 0.0
    %3095 = vmatpush.xpose.msra.mxu0 0.0
    %3096 = vmatpush.xpose.msra.mxu0 0.0
    %3097 = vmatpush.xpose.msra.mxu0 0.0
    %3098 = vmatpush.xpose.msra.mxu0 0.0
    %3099 = vmatpush.xpose.msra.mxu0 0.0
    %3100 = vmatpush.xpose.msra.mxu0 0.0
    %3101 = vmatpush.xpose.msra.mxu0 0.0
    %3102 = vmatpush.xpose.msra.mxu0 0.0
    %3103 = vmatpush.xpose.msra.mxu0 0.0
    %3104 = vmatpush.xpose.msra.mxu0 0.0
    %3105 = vmatpush.xpose.msra.mxu0 0.0
    %3106 = vmatpush.xpose.msra.mxu0 0.0
    %3107 = vmatpush.xpose.msra.mxu0 0.0
    %3108 = vmatpush.xpose.msra.mxu0 0.0
    %3109 = vmatpush.xpose.msra.mxu0 %v3092
    %3110 = vmatmul.f32.gmra.mxu0 %v1820
    %v3111 = vpop.f32.mrf.mxu0
    %v3112 = vadd.f32 %v3089, %v3111
    %3113 = vmatmul.f32.gmra.mxu0 %v1823
    %v3114 = vpop.f32.mrf.mxu0
    %v3115 = vadd.f32 %v3089, %v3114
    %3116 = vmatmul.f32.gmra.mxu0 %v1826
    %v3117 = vpop.f32.mrf.mxu0
    %v3118 = vadd.f32 %v3089, %v3117
    %3119 = vmatmul.f32.gmra.mxu0 %v1829
    %v3120 = vpop.f32.mrf.mxu0
    %v3121 = vadd.f32 %v3089, %v3120
    %3122 = vdwg.mxu0
    %s3123 = scalar_lea.vmem %s4, 152
    %v3124 = vld [vmem:[%s3123] sm:$0xff]
    %s3125 = scalar_lea.vmem %s5, 19
    %v3126 = vld [vmem:[%s3125] sm:$0x1]
    %v3128 = vperm.slane %v3126, 0
    %v3131 = vsel %vm125, %v3124, 0
    %3133 = vmatpush.xpose.msra.mxu0 0.0
    %3134 = vmatpush.xpose.msra.mxu0 0.0
    %3135 = vmatpush.xpose.msra.mxu0 0.0
    %3136 = vmatpush.xpose.msra.mxu0 0.0
    %3137 = vmatpush.xpose.msra.mxu0 0.0
    %3138 = vmatpush.xpose.msra.mxu0 0.0
    %3139 = vmatpush.xpose.msra.mxu0 0.0
    %3140 = vmatpush.xpose.msra.mxu0 0.0
    %3141 = vmatpush.xpose.msra.mxu0 0.0
    %3142 = vmatpush.xpose.msra.mxu0 0.0
    %3143 = vmatpush.xpose.msra.mxu0 0.0
    %3144 = vmatpush.xpose.msra.mxu0 0.0
    %3145 = vmatpush.xpose.msra.mxu0 0.0
    %3146 = vmatpush.xpose.msra.mxu0 0.0
    %3147 = vmatpush.xpose.msra.mxu0 0.0
    %3148 = vmatpush.xpose.msra.mxu0 %v3131
    %3149 = vmatmul.f32.gmra.mxu0 %v1820
    %v3150 = vpop.f32.mrf.mxu0
    %v3151 = vadd.f32 %v3128, %v3150
    %3152 = vmatmul.f32.gmra.mxu0 %v1823
    %v3153 = vpop.f32.mrf.mxu0
    %v3154 = vadd.f32 %v3128, %v3153
    %3155 = vmatmul.f32.gmra.mxu0 %v1826
    %v3156 = vpop.f32.mrf.mxu0
    %v3157 = vadd.f32 %v3128, %v3156
    %3158 = vmatmul.f32.gmra.mxu0 %v1829
    %v3159 = vpop.f32.mrf.mxu0
    %v3160 = vadd.f32 %v3128, %v3159
    %3161 = vdwg.mxu0
    %s3162 = scalar_lea.vmem %s4, 184
    %v3163 = vld [vmem:[%s3162] sm:$0xff]
    %s3164 = scalar_lea.vmem %s5, 23
    %v3165 = vld [vmem:[%s3164] sm:$0x1]
    %v3167 = vperm.slane %v3165, 0
    %v3170 = vsel %vm125, %v3163, 0
    %3172 = vmatpush.xpose.msra.mxu0 0.0
    %3173 = vmatpush.xpose.msra.mxu0 0.0
    %3174 = vmatpush.xpose.msra.mxu0 0.0
    %3175 = vmatpush.xpose.msra.mxu0 0.0
    %3176 = vmatpush.xpose.msra.mxu0 0.0
    %3177 = vmatpush.xpose.msra.mxu0 0.0
    %3178 = vmatpush.xpose.msra.mxu0 0.0
    %3179 = vmatpush.xpose.msra.mxu0 0.0
    %3180 = vmatpush.xpose.msra.mxu0 0.0
    %3181 = vmatpush.xpose.msra.mxu0 0.0
    %3182 = vmatpush.xpose.msra.mxu0 0.0
    %3183 = vmatpush.xpose.msra.mxu0 0.0
    %3184 = vmatpush.xpose.msra.mxu0 0.0
    %3185 = vmatpush.xpose.msra.mxu0 0.0
    %3186 = vmatpush.xpose.msra.mxu0 0.0
    %3187 = vmatpush.xpose.msra.mxu0 %v3170
    %3188 = vmatmul.f32.gmra.mxu0 %v1820
    %v3189 = vpop.f32.mrf.mxu0
    %v3190 = vadd.f32 %v3167, %v3189
    %3191 = vmatmul.f32.gmra.mxu0 %v1823
    %v3192 = vpop.f32.mrf.mxu0
    %v3193 = vadd.f32 %v3167, %v3192
    %3194 = vmatmul.f32.gmra.mxu0 %v1826
    %v3195 = vpop.f32.mrf.mxu0
    %v3196 = vadd.f32 %v3167, %v3195
    %3197 = vmatmul.f32.gmra.mxu0 %v1829
    %v3198 = vpop.f32.mrf.mxu0
    %v3199 = vadd.f32 %v3167, %v3198
    %3200 = vdwg.mxu0
    %v3202 = vsel %vm248, %v3112, 0
    %v3205 = vsel %vm248, %v3151, 0
    %3207 = vmatpush.xpose.msra.mxu0 0.0
    %3208 = vmatpush.xpose.msra.mxu0 0.0
    %3209 = vmatpush.xpose.msra.mxu0 0.0
    %3210 = vmatpush.xpose.msra.mxu0 0.0
    %3211 = vmatpush.xpose.msra.mxu0 0.0
    %3212 = vmatpush.xpose.msra.mxu0 0.0
    %3213 = vmatpush.xpose.msra.mxu0 0.0
    %3214 = vmatpush.xpose.msra.mxu0 0.0
    %3215 = vmatpush.xpose.msra.mxu0 0.0
    %3216 = vmatpush.xpose.msra.mxu0 0.0
    %3217 = vmatpush.xpose.msra.mxu0 0.0
    %3218 = vmatpush.xpose.msra.mxu0 0.0
    %3219 = vmatpush.xpose.msra.mxu0 0.0
    %3220 = vmatpush.xpose.msra.mxu0 0.0
    %3221 = vmatpush.xpose.msra.mxu0 0.0
    %3222 = vmatpush.xpose.msra.mxu0 %v3205
    %3223 = vmatmul.f32.gmra.mxu0 %v3202
    %v3224 = vpop.f32.mrf.mxu0
    %v3225 = vadd.f32 0.0, %v3224
    %3226 = vdwg.mxu0
    %v3228 = vsel %vm248, %v3115, 0
    %v3231 = vsel %vm248, %v3154, 0
    %3233 = vmatpush.xpose.msra.mxu0 0.0
    %3234 = vmatpush.xpose.msra.mxu0 0.0
    %3235 = vmatpush.xpose.msra.mxu0 0.0
    %3236 = vmatpush.xpose.msra.mxu0 0.0
    %3237 = vmatpush.xpose.msra.mxu0 0.0
    %3238 = vmatpush.xpose.msra.mxu0 0.0
    %3239 = vmatpush.xpose.msra.mxu0 0.0
    %3240 = vmatpush.xpose.msra.mxu0 0.0
    %3241 = vmatpush.xpose.msra.mxu0 0.0
    %3242 = vmatpush.xpose.msra.mxu0 0.0
    %3243 = vmatpush.xpose.msra.mxu0 0.0
    %3244 = vmatpush.xpose.msra.mxu0 0.0
    %3245 = vmatpush.xpose.msra.mxu0 0.0
    %3246 = vmatpush.xpose.msra.mxu0 0.0
    %3247 = vmatpush.xpose.msra.mxu0 0.0
    %3248 = vmatpush.xpose.msra.mxu0 %v3231
    %3249 = vmatmul.f32.gmra.mxu0 %v3228
    %v3250 = vpop.f32.mrf.mxu0
    %v3251 = vadd.f32 0.0, %v3250
    %3252 = vdwg.mxu0
    %v3254 = vsel %vm248, %v3118, 0
    %v3257 = vsel %vm248, %v3157, 0
    %3259 = vmatpush.xpose.msra.mxu0 0.0
    %3260 = vmatpush.xpose.msra.mxu0 0.0
    %3261 = vmatpush.xpose.msra.mxu0 0.0
    %3262 = vmatpush.xpose.msra.mxu0 0.0
    %3263 = vmatpush.xpose.msra.mxu0 0.0
    %3264 = vmatpush.xpose.msra.mxu0 0.0
    %3265 = vmatpush.xpose.msra.mxu0 0.0
    %3266 = vmatpush.xpose.msra.mxu0 0.0
    %3267 = vmatpush.xpose.msra.mxu0 0.0
    %3268 = vmatpush.xpose.msra.mxu0 0.0
    %3269 = vmatpush.xpose.msra.mxu0 0.0
    %3270 = vmatpush.xpose.msra.mxu0 0.0
    %3271 = vmatpush.xpose.msra.mxu0 0.0
    %3272 = vmatpush.xpose.msra.mxu0 0.0
    %3273 = vmatpush.xpose.msra.mxu0 0.0
    %3274 = vmatpush.xpose.msra.mxu0 %v3257
    %3275 = vmatmul.f32.gmra.mxu0 %v3254
    %v3276 = vpop.f32.mrf.mxu0
    %v3277 = vadd.f32 0.0, %v3276
    %3278 = vdwg.mxu0
    %v3280 = vsel %vm248, %v3121, 0
    %v3283 = vsel %vm248, %v3160, 0
    %3285 = vmatpush.xpose.msra.mxu0 0.0
    %3286 = vmatpush.xpose.msra.mxu0 0.0
    %3287 = vmatpush.xpose.msra.mxu0 0.0
    %3288 = vmatpush.xpose.msra.mxu0 0.0
    %3289 = vmatpush.xpose.msra.mxu0 0.0
    %3290 = vmatpush.xpose.msra.mxu0 0.0
    %3291 = vmatpush.xpose.msra.mxu0 0.0
    %3292 = vmatpush.xpose.msra.mxu0 0.0
    %3293 = vmatpush.xpose.msra.mxu0 0.0
    %3294 = vmatpush.xpose.msra.mxu0 0.0
    %3295 = vmatpush.xpose.msra.mxu0 0.0
    %3296 = vmatpush.xpose.msra.mxu0 0.0
    %3297 = vmatpush.xpose.msra.mxu0 0.0
    %3298 = vmatpush.xpose.msra.mxu0 0.0
    %3299 = vmatpush.xpose.msra.mxu0 0.0
    %3300 = vmatpush.xpose.msra.mxu0 %v3283
    %3301 = vmatmul.f32.gmra.mxu0 %v3280
    %v3302 = vpop.f32.mrf.mxu0
    %v3303 = vadd.f32 0.0, %v3302
    %3304 = vdwg.mxu0
    %v3305 = vsel %vm248, %v3225, -inf
    %3306 = vmax.xlane.f32.xlu0 %v3305
    %v3307 = vpop.xlane.xlu0 %3306
    %v3308 = vsel %vm248, %v3251, -inf
    %3309 = vmax.xlane.f32.xlu0 %v3308
    %v3310 = vpop.xlane.xlu0 %3309
    %v3311 = vsel %vm248, %v3277, -inf
    %3312 = vmax.xlane.f32.xlu0 %v3311
    %v3313 = vpop.xlane.xlu0 %3312
    %v3314 = vsel %vm248, %v3303, -inf
    %3315 = vmax.xlane.f32.xlu0 %v3314
    %v3316 = vpop.xlane.xlu0 %3315
    %v3317 = vsub.f32 %v3225, %v3307
    %v3318 = vsub.f32 %v3251, %v3310
    %v3319 = vsub.f32 %v3277, %v3313
    %v3320 = vsub.f32 %v3303, %v3316
    %v3321 = vmul.f32 %v3317, 1.442695
    %v3322 = vpow.pop %v3321
    %v3323 = vmul.f32 %v3318, 1.442695
    %v3324 = vpow.pop %v3323
    %v3325 = vmul.f32 %v3319, 1.442695
    %v3326 = vpow.pop %v3325
    %v3327 = vmul.f32 %v3320, 1.442695
    %v3328 = vpow.pop %v3327
    %v3329 = vsel %vm248, %v3322, 0.0
    %3330 = vadd.xlane.f32.xlu0 %v3329
    %v3331 = vpop.xlane.xlu0 %3330
    %v3332 = vsel %vm248, %v3324, 0.0
    %3333 = vadd.xlane.f32.xlu0 %v3332
    %v3334 = vpop.xlane.xlu0 %3333
    %v3335 = vsel %vm248, %v3326, 0.0
    %3336 = vadd.xlane.f32.xlu0 %v3335
    %v3337 = vpop.xlane.xlu0 %3336
    %v3338 = vsel %vm248, %v3328, 0.0
    %3339 = vadd.xlane.f32.xlu0 %v3338
    %v3340 = vpop.xlane.xlu0 %3339
    %v3341 = vrcp.pop %v3331
    %v3342 = vrcp.pop %v3334
    %v3343 = vrcp.pop %v3337
    %v3344 = vrcp.pop %v3340
    %v3345 = vmul.f32 %v3322, %v3341
    %v3346 = vmul.f32 %v3324, %v3342
    %v3347 = vmul.f32 %v3326, %v3343
    %v3348 = vmul.f32 %v3328, %v3344
    %v3350 = vsel %vm248, %v3345, 0
    %3352 = vmatpush.msra.mxu0 0.0
    %3353 = vmatpush.msra.mxu0 0.0
    %3354 = vmatpush.msra.mxu0 0.0
    %3355 = vmatpush.msra.mxu0 0.0
    %3356 = vmatpush.msra.mxu0 0.0
    %3357 = vmatpush.msra.mxu0 0.0
    %3358 = vmatpush.msra.mxu0 0.0
    %3359 = vmatpush.msra.mxu0 0.0
    %3360 = vmatpush.msra.mxu0 0.0
    %3361 = vmatpush.msra.mxu0 0.0
    %3362 = vmatpush.msra.mxu0 0.0
    %3363 = vmatpush.msra.mxu0 0.0
    %3364 = vmatpush.msra.mxu0 0.0
    %3365 = vmatpush.msra.mxu0 0.0
    %3366 = vmatpush.msra.mxu0 0.0
    %3367 = vmatpush.msra.mxu0 %v3190
    %3368 = vmatmul.f32.gmra.mxu0 %v3350
    %v3369 = vpop.f32.mrf.mxu0
    %v3370 = vadd.f32 0.0, %v3369
    %3371 = vdwg.mxu0
    %v3373 = vsel %vm248, %v3346, 0
    %3375 = vmatpush.msra.mxu0 0.0
    %3376 = vmatpush.msra.mxu0 0.0
    %3377 = vmatpush.msra.mxu0 0.0
    %3378 = vmatpush.msra.mxu0 0.0
    %3379 = vmatpush.msra.mxu0 0.0
    %3380 = vmatpush.msra.mxu0 0.0
    %3381 = vmatpush.msra.mxu0 0.0
    %3382 = vmatpush.msra.mxu0 0.0
    %3383 = vmatpush.msra.mxu0 0.0
    %3384 = vmatpush.msra.mxu0 0.0
    %3385 = vmatpush.msra.mxu0 0.0
    %3386 = vmatpush.msra.mxu0 0.0
    %3387 = vmatpush.msra.mxu0 0.0
    %3388 = vmatpush.msra.mxu0 0.0
    %3389 = vmatpush.msra.mxu0 0.0
    %3390 = vmatpush.msra.mxu0 %v3193
    %3391 = vmatmul.f32.gmra.mxu0 %v3373
    %v3392 = vpop.f32.mrf.mxu0
    %v3393 = vadd.f32 0.0, %v3392
    %3394 = vdwg.mxu0
    %v3396 = vsel %vm248, %v3347, 0
    %3398 = vmatpush.msra.mxu0 0.0
    %3399 = vmatpush.msra.mxu0 0.0
    %3400 = vmatpush.msra.mxu0 0.0
    %3401 = vmatpush.msra.mxu0 0.0
    %3402 = vmatpush.msra.mxu0 0.0
    %3403 = vmatpush.msra.mxu0 0.0
    %3404 = vmatpush.msra.mxu0 0.0
    %3405 = vmatpush.msra.mxu0 0.0
    %3406 = vmatpush.msra.mxu0 0.0
    %3407 = vmatpush.msra.mxu0 0.0
    %3408 = vmatpush.msra.mxu0 0.0
    %3409 = vmatpush.msra.mxu0 0.0
    %3410 = vmatpush.msra.mxu0 0.0
    %3411 = vmatpush.msra.mxu0 0.0
    %3412 = vmatpush.msra.mxu0 0.0
    %3413 = vmatpush.msra.mxu0 %v3196
    %3414 = vmatmul.f32.gmra.mxu0 %v3396
    %v3415 = vpop.f32.mrf.mxu0
    %v3416 = vadd.f32 0.0, %v3415
    %3417 = vdwg.mxu0
    %v3419 = vsel %vm248, %v3348, 0
    %3421 = vmatpush.msra.mxu0 0.0
    %3422 = vmatpush.msra.mxu0 0.0
    %3423 = vmatpush.msra.mxu0 0.0
    %3424 = vmatpush.msra.mxu0 0.0
    %3425 = vmatpush.msra.mxu0 0.0
    %3426 = vmatpush.msra.mxu0 0.0
    %3427 = vmatpush.msra.mxu0 0.0
    %3428 = vmatpush.msra.mxu0 0.0
    %3429 = vmatpush.msra.mxu0 0.0
    %3430 = vmatpush.msra.mxu0 0.0
    %3431 = vmatpush.msra.mxu0 0.0
    %3432 = vmatpush.msra.mxu0 0.0
    %3433 = vmatpush.msra.mxu0 0.0
    %3434 = vmatpush.msra.mxu0 0.0
    %3435 = vmatpush.msra.mxu0 0.0
    %3436 = vmatpush.msra.mxu0 %v3199
    %3437 = vmatmul.f32.gmra.mxu0 %v3419
    %v3438 = vpop.f32.mrf.mxu0
    %v3439 = vadd.f32 0.0, %v3438
    %3440 = vdwg.mxu0
    %s3441 = scalar_lea.vmem %s6, 224
    %v3442 = vld [vmem:[%s3441] sm:$0xff]
    %v3443 = vld [vmem:[%s3441 + $0x8] sm:$0xff]
    %v3444 = vld [vmem:[%s3441 + $0x10] sm:$0xff]
    %v3445 = vld [vmem:[%s3441 + $0x18] sm:$0xff]
    %v3447 = vsel %vm248, %v3370, 0
    %v3450 = vsel %vm248, %v3393, 0
    %v3453 = vsel %vm248, %v3416, 0
    %v3456 = vsel %vm248, %v3439, 0
    %v3459 = vsel %vm248, %v3442, 0
    %v3462 = vsel %vm248, %v3443, 0
    %v3465 = vsel %vm248, %v3444, 0
    %v3468 = vsel %vm248, %v3445, 0
    %3470 = vmatpush.xpose.msra.mxu0 0.0
    %3471 = vmatpush.xpose.msra.mxu0 0.0
    %3472 = vmatpush.xpose.msra.mxu0 0.0
    %3473 = vmatpush.xpose.msra.mxu0 0.0
    %3474 = vmatpush.xpose.msra.mxu0 0.0
    %3475 = vmatpush.xpose.msra.mxu0 0.0
    %3476 = vmatpush.xpose.msra.mxu0 0.0
    %3477 = vmatpush.xpose.msra.mxu0 0.0
    %3478 = vmatpush.xpose.msra.mxu0 0.0
    %3479 = vmatpush.xpose.msra.mxu0 0.0
    %3480 = vmatpush.xpose.msra.mxu0 0.0
    %3481 = vmatpush.xpose.msra.mxu0 0.0
    %3482 = vmatpush.xpose.msra.mxu0 %v3468
    %3483 = vmatpush.xpose.msra.mxu0 %v3465
    %3484 = vmatpush.xpose.msra.mxu0 %v3462
    %3485 = vmatpush.xpose.msra.mxu0 %v3459
    %3486 = vmatmul.f32.gmra.mxu0 %v3447
    %v3487 = vpop.f32.mrf.mxu0
    %v3488 = vadd.f32 0.0, %v3487
    %3489 = vmatmul.f32.gmra.mxu0 %v3450
    %v3490 = vpop.f32.mrf.mxu0
    %v3491 = vadd.f32 0.0, %v3490
    %3492 = vmatmul.f32.gmra.mxu0 %v3453
    %v3493 = vpop.f32.mrf.mxu0
    %v3494 = vadd.f32 0.0, %v3493
    %3495 = vmatmul.f32.gmra.mxu0 %v3456
    %v3496 = vpop.f32.mrf.mxu0
    %v3497 = vadd.f32 0.0, %v3496
    %3498 = vdwg.mxu0
    %v3499 = vadd.f32 %v3080, %v3488
    %v3500 = vadd.f32 %v3081, %v3491
    %v3501 = vadd.f32 %v3082, %v3494
    %v3502 = vadd.f32 %v3083, %v3497
    %s3503 = scalar_lea.vmem %s2, 32
    %v3504 = vld [vmem:[%s3503] sm:$0xff]
    %v3505 = vld [vmem:[%s3503 + $0x8] sm:$0xff]
    %v3506 = vld [vmem:[%s3503 + $0x10] sm:$0xff]
    %v3507 = vld [vmem:[%s3503 + $0x18] sm:$0xff]
    %s3508 = scalar_lea.vmem %s3, 1
    %v3509 = vld [vmem:[%s3508] sm:$0x1]
    %v3511 = vperm.slane %v3509, 0
    %v3514 = vsel %vm65, %v3504, 0
    %v3517 = vsel %vm65, %v3505, 0
    %v3520 = vsel %vm65, %v3506, 0
    %v3523 = vsel %vm65, %v3507, 0
    %3525 = vmatpush.xpose.msra.mxu0 0.0
    %3526 = vmatpush.xpose.msra.mxu0 0.0
    %3527 = vmatpush.xpose.msra.mxu0 0.0
    %3528 = vmatpush.xpose.msra.mxu0 0.0
    %3529 = vmatpush.xpose.msra.mxu0 0.0
    %3530 = vmatpush.xpose.msra.mxu0 0.0
    %3531 = vmatpush.xpose.msra.mxu0 0.0
    %3532 = vmatpush.xpose.msra.mxu0 0.0
    %3533 = vmatpush.xpose.msra.mxu0 0.0
    %3534 = vmatpush.xpose.msra.mxu0 0.0
    %3535 = vmatpush.xpose.msra.mxu0 0.0
    %3536 = vmatpush.xpose.msra.mxu0 0.0
    %3537 = vmatpush.xpose.msra.mxu0 %v3523
    %3538 = vmatpush.xpose.msra.mxu0 %v3520
    %3539 = vmatpush.xpose.msra.mxu0 %v3517
    %3540 = vmatpush.xpose.msra.mxu0 %v3514
    %3541 = vmatmul.f32.gmra.mxu0 %v67
    %v3542 = vpop.f32.mrf.mxu0
    %v3543 = vadd.f32 %v3511, %v3542
    %3544 = vmatmul.f32.gmra.mxu0 %v70
    %v3545 = vpop.f32.mrf.mxu0
    %v3546 = vadd.f32 %v3511, %v3545
    %3547 = vmatmul.f32.gmra.mxu0 %v73
    %v3548 = vpop.f32.mrf.mxu0
    %v3549 = vadd.f32 %v3511, %v3548
    %3550 = vmatmul.f32.gmra.mxu0 %v76
    %v3551 = vpop.f32.mrf.mxu0
    %v3552 = vadd.f32 %v3511, %v3551
    %3553 = vdwg.mxu0
    %v3554 = vadd.f32 %v3499, %v3543
    %v3555 = vadd.f32 %v3500, %v3546
    %v3556 = vadd.f32 %v3501, %v3549
    %v3557 = vadd.f32 %v3502, %v3552
    %v3558 = vmax.f32 %v3554, 0.0
    %v3559 = vmax.f32 %v3555, 0.0
    %v3560 = vmax.f32 %v3556, 0.0
    %v3561 = vmax.f32 %v3557, 0.0
    %v3562 = vld [vmem:[%s8] sm:$0xff]
    %v3563 = vmul.f32 %v3558, %v3562
    %v3564 = vmul.f32 %v3559, %v3562
    %v3565 = vmul.f32 %v3560, %v3562
    %v3566 = vmul.f32 %v3561, %v3562
    %v3567 = vsel %vm125, %v3563, 0.0
    %3568 = vadd.xlane.f32.xlu0 %v3567
    %v3569 = vpop.xlane.xlu0 %3568
    %v3570 = vsel %vm125, %v3564, 0.0
    %3571 = vadd.xlane.f32.xlu0 %v3570
    %v3572 = vpop.xlane.xlu0 %3571
    %v3573 = vsel %vm125, %v3565, 0.0
    %3574 = vadd.xlane.f32.xlu0 %v3573
    %v3575 = vpop.xlane.xlu0 %3574
    %v3576 = vsel %vm125, %v3566, 0.0
    %3577 = vadd.xlane.f32.xlu0 %v3576
    %v3578 = vpop.xlane.xlu0 %3577
    %v3583 = vlaneseq
    %v3584 = vand.u32 %v3583, 127
    %v3585 = vperm.slane %v3569, %v3584
    %v3586 = vperm.slane %v3572, %v3584
    %v3587 = vperm.slane %v3575, %v3584
    %v3588 = vperm.slane %v3578, %v3584
    %vm3589 = vcmask 1041409
    %v3590 = vsel %vm3589, %v3586, %v3585
    %vm3591 = vcmask 1042434
    %v3592 = vsel %vm3591, %v3587, %v3590
    %vm3593 = vcmask 1043459
    %v3594 = vsel %vm3593, %v3588, %v3592
    %v3596 = vsel %vm248, 1.0, 0
    %v3598 = vsel %vm248, %v3594, 0
    %3600 = vmatpush.xpose.msra.mxu0 0.0
    %3601 = vmatpush.xpose.msra.mxu0 0.0
    %3602 = vmatpush.xpose.msra.mxu0 0.0
    %3603 = vmatpush.xpose.msra.mxu0 0.0
    %3604 = vmatpush.xpose.msra.mxu0 0.0
    %3605 = vmatpush.xpose.msra.mxu0 0.0
    %3606 = vmatpush.xpose.msra.mxu0 0.0
    %3607 = vmatpush.xpose.msra.mxu0 0.0
    %3608 = vmatpush.xpose.msra.mxu0 0.0
    %3609 = vmatpush.xpose.msra.mxu0 0.0
    %3610 = vmatpush.xpose.msra.mxu0 0.0
    %3611 = vmatpush.xpose.msra.mxu0 0.0
    %3612 = vmatpush.xpose.msra.mxu0 0.0
    %3613 = vmatpush.xpose.msra.mxu0 0.0
    %3614 = vmatpush.xpose.msra.mxu0 0.0
    %3615 = vmatpush.xpose.msra.mxu0 %v3598
    %3616 = vmatmul.f32.gmra.mxu0 %v3596
    %v3617 = vpop.f32.mrf.mxu0
    %v3618 = vadd.f32 0.0, %v3617
    %3619 = vdwg.mxu0
    %v3620 = vld [vmem:[%s1] sm:$0xf]
    %v3621 = vld [vmem:[%s10] sm:$0x1]
    %v3622 = vld [vmem:[%s0] sm:$0x1]
    %v3623 = vld [vmem:[%s0 + $0x8] sm:$0x1]
    %v3624 = vld [vmem:[%s0 + $0x10] sm:$0x1]
    %v3625 = vld [vmem:[%s0 + $0x18] sm:$0x1]
    %v3626 = vld [vmem:[%s9] sm:$0xff]
    %v3627 = vld [vmem:[%s9 + $0x8] sm:$0xff]
    %v3628 = vld [vmem:[%s9 + $0x10] sm:$0xff]
    %v3629 = vld [vmem:[%s9 + $0x18] sm:$0xff]
    %v3630 = vld [vmem:[%s9 + $0x20] sm:$0xff]
    %v3631 = vld [vmem:[%s9 + $0x28] sm:$0xff]
    %v3632 = vld [vmem:[%s9 + $0x30] sm:$0xff]
    %v3633 = vld [vmem:[%s9 + $0x38] sm:$0xff]
    %v3638 = vrot.slane %v3623, 7
    %v3639 = vsel %vm3589, %v3638, %v3622
    %v3640 = vrot.slane %v3624, 6
    %v3641 = vsel %vm3591, %v3640, %v3639
    %v3642 = vrot.slane %v3625, 5
    %v3643 = vsel %vm3593, %v3642, %v3641
    %v3644 = vsel %vm65, %v3643, 0
    %v3647 = vsel %vm65, %v3626, 0
    %v3650 = vsel %vm65, %v3627, 0
    %v3653 = vsel %vm65, %v3628, 0
    %v3656 = vsel %vm65, %v3629, 0
    %v3659 = vsel %vm65, %v3630, 0
    %v3662 = vsel %vm65, %v3631, 0
    %v3665 = vsel %vm65, %v3632, 0
    %v3668 = vsel %vm65, %v3633, 0
    %3670 = vmatpush.xpose.msra.mxu0 0.0
    %3671 = vmatpush.xpose.msra.mxu0 0.0
    %3672 = vmatpush.xpose.msra.mxu0 0.0
    %3673 = vmatpush.xpose.msra.mxu0 0.0
    %3674 = vmatpush.xpose.msra.mxu0 0.0
    %3675 = vmatpush.xpose.msra.mxu0 0.0
    %3676 = vmatpush.xpose.msra.mxu0 0.0
    %3677 = vmatpush.xpose.msra.mxu0 0.0
    %3678 = vmatpush.xpose.msra.mxu0 %v3668
    %3679 = vmatpush.xpose.msra.mxu0 %v3665
    %3680 = vmatpush.xpose.msra.mxu0 %v3662
    %3681 = vmatpush.xpose.msra.mxu0 %v3659
    %3682 = vmatpush.xpose.msra.mxu0 %v3656
    %3683 = vmatpush.xpose.msra.mxu0 %v3653
    %3684 = vmatpush.xpose.msra.mxu0 %v3650
    %3685 = vmatpush.xpose.msra.mxu0 %v3647
    %3686 = vmatmul.f32.gmra.mxu0 %v3644
    %v3687 = vpop.f32.mrf.mxu0
    %v3688 = vadd.f32 0.0, %v3687
    %3689 = vdwg.mxu0
    %v3691 = vperm.slane %v3621, 0
    %v3693 = vadd.f32 %v3691, %v3688
    %v3694 = vld [vmem:[%s0 + $0x1] sm:$0x1]
    %v3695 = vld [vmem:[%s0 + $0x9] sm:$0x1]
    %v3696 = vld [vmem:[%s0 + $0x11] sm:$0x1]
    %v3697 = vld [vmem:[%s0 + $0x19] sm:$0x1]
    %s3698 = scalar_lea.vmem %s9, 64
    %v3699 = vld [vmem:[%s3698] sm:$0xff]
    %v3700 = vld [vmem:[%s3698 + $0x8] sm:$0xff]
    %v3701 = vld [vmem:[%s3698 + $0x10] sm:$0xff]
    %v3702 = vld [vmem:[%s3698 + $0x18] sm:$0xff]
    %v3703 = vld [vmem:[%s3698 + $0x20] sm:$0xff]
    %v3704 = vld [vmem:[%s3698 + $0x28] sm:$0xff]
    %v3705 = vld [vmem:[%s3698 + $0x30] sm:$0xff]
    %v3706 = vld [vmem:[%s3698 + $0x38] sm:$0xff]
    %v3711 = vrot.slane %v3695, 7
    %v3712 = vsel %vm3589, %v3711, %v3694
    %v3713 = vrot.slane %v3696, 6
    %v3714 = vsel %vm3591, %v3713, %v3712
    %v3715 = vrot.slane %v3697, 5
    %v3716 = vsel %vm3593, %v3715, %v3714
    %v3717 = vsel %vm65, %v3716, 0
    %v3720 = vsel %vm65, %v3699, 0
    %v3723 = vsel %vm65, %v3700, 0
    %v3726 = vsel %vm65, %v3701, 0
    %v3729 = vsel %vm65, %v3702, 0
    %v3732 = vsel %vm65, %v3703, 0
    %v3735 = vsel %vm65, %v3704, 0
    %v3738 = vsel %vm65, %v3705, 0
    %v3741 = vsel %vm65, %v3706, 0
    %3743 = vmatpush.xpose.msra.mxu0 0.0
    %3744 = vmatpush.xpose.msra.mxu0 0.0
    %3745 = vmatpush.xpose.msra.mxu0 0.0
    %3746 = vmatpush.xpose.msra.mxu0 0.0
    %3747 = vmatpush.xpose.msra.mxu0 0.0
    %3748 = vmatpush.xpose.msra.mxu0 0.0
    %3749 = vmatpush.xpose.msra.mxu0 0.0
    %3750 = vmatpush.xpose.msra.mxu0 0.0
    %3751 = vmatpush.xpose.msra.mxu0 %v3741
    %3752 = vmatpush.xpose.msra.mxu0 %v3738
    %3753 = vmatpush.xpose.msra.mxu0 %v3735
    %3754 = vmatpush.xpose.msra.mxu0 %v3732
    %3755 = vmatpush.xpose.msra.mxu0 %v3729
    %3756 = vmatpush.xpose.msra.mxu0 %v3726
    %3757 = vmatpush.xpose.msra.mxu0 %v3723
    %3758 = vmatpush.xpose.msra.mxu0 %v3720
    %3759 = vmatmul.f32.gmra.mxu0 %v3717
    %v3760 = vpop.f32.mrf.mxu0
    %v3761 = vadd.f32 0.0, %v3760
    %3762 = vdwg.mxu0
    %v3763 = vadd.f32 %v3693, %v3761
    %v3764 = vld [vmem:[%s0 + $0x2] sm:$0x1]
    %v3765 = vld [vmem:[%s0 + $0xa] sm:$0x1]
    %v3766 = vld [vmem:[%s0 + $0x12] sm:$0x1]
    %v3767 = vld [vmem:[%s0 + $0x1a] sm:$0x1]
    %s3768 = scalar_lea.vmem %s9, 128
    %v3769 = vld [vmem:[%s3768] sm:$0xff]
    %v3770 = vld [vmem:[%s3768 + $0x8] sm:$0xff]
    %v3771 = vld [vmem:[%s3768 + $0x10] sm:$0xff]
    %v3772 = vld [vmem:[%s3768 + $0x18] sm:$0xff]
    %v3773 = vld [vmem:[%s3768 + $0x20] sm:$0xff]
    %v3774 = vld [vmem:[%s3768 + $0x28] sm:$0xff]
    %v3775 = vld [vmem:[%s3768 + $0x30] sm:$0xff]
    %v3776 = vld [vmem:[%s3768 + $0x38] sm:$0xff]
    %v3781 = vrot.slane %v3765, 7
    %v3782 = vsel %vm3589, %v3781, %v3764
    %v3783 = vrot.slane %v3766, 6
    %v3784 = vsel %vm3591, %v3783, %v3782
    %v3785 = vrot.slane %v3767, 5
    %v3786 = vsel %vm3593, %v3785, %v3784
    %v3787 = vsel %vm65, %v3786, 0
    %v3790 = vsel %vm65, %v3769, 0
    %v3793 = vsel %vm65, %v3770, 0
    %v3796 = vsel %vm65, %v3771, 0
    %v3799 = vsel %vm65, %v3772, 0
    %v3802 = vsel %vm65, %v3773, 0
    %v3805 = vsel %vm65, %v3774, 0
    %v3808 = vsel %vm65, %v3775, 0
    %v3811 = vsel %vm65, %v3776, 0
    %3813 = vmatpush.xpose.msra.mxu0 0.0
    %3814 = vmatpush.xpose.msra.mxu0 0.0
    %3815 = vmatpush.xpose.msra.mxu0 0.0
    %3816 = vmatpush.xpose.msra.mxu0 0.0
    %3817 = vmatpush.xpose.msra.mxu0 0.0
    %3818 = vmatpush.xpose.msra.mxu0 0.0
    %3819 = vmatpush.xpose.msra.mxu0 0.0
    %3820 = vmatpush.xpose.msra.mxu0 0.0
    %3821 = vmatpush.xpose.msra.mxu0 %v3811
    %3822 = vmatpush.xpose.msra.mxu0 %v3808
    %3823 = vmatpush.xpose.msra.mxu0 %v3805
    %3824 = vmatpush.xpose.msra.mxu0 %v3802
    %3825 = vmatpush.xpose.msra.mxu0 %v3799
    %3826 = vmatpush.xpose.msra.mxu0 %v3796
    %3827 = vmatpush.xpose.msra.mxu0 %v3793
    %3828 = vmatpush.xpose.msra.mxu0 %v3790
    %3829 = vmatmul.f32.gmra.mxu0 %v3787
    %v3830 = vpop.f32.mrf.mxu0
    %v3831 = vadd.f32 0.0, %v3830
    %3832 = vdwg.mxu0
    %v3833 = vadd.f32 %v3763, %v3831
    %v3834 = vld [vmem:[%s0 + $0x3] sm:$0x1]
    %v3835 = vld [vmem:[%s0 + $0xb] sm:$0x1]
    %v3836 = vld [vmem:[%s0 + $0x13] sm:$0x1]
    %v3837 = vld [vmem:[%s0 + $0x1b] sm:$0x1]
    %s3838 = scalar_lea.vmem %s9, 192
    %v3839 = vld [vmem:[%s3838] sm:$0xff]
    %v3840 = vld [vmem:[%s3838 + $0x8] sm:$0xff]
    %v3841 = vld [vmem:[%s3838 + $0x10] sm:$0xff]
    %v3842 = vld [vmem:[%s3838 + $0x18] sm:$0xff]
    %v3843 = vld [vmem:[%s3838 + $0x20] sm:$0xff]
    %v3844 = vld [vmem:[%s3838 + $0x28] sm:$0xff]
    %v3845 = vld [vmem:[%s3838 + $0x30] sm:$0xff]
    %v3846 = vld [vmem:[%s3838 + $0x38] sm:$0xff]
    %v3851 = vrot.slane %v3835, 7
    %v3852 = vsel %vm3589, %v3851, %v3834
    %v3853 = vrot.slane %v3836, 6
    %v3854 = vsel %vm3591, %v3853, %v3852
    %v3855 = vrot.slane %v3837, 5
    %v3856 = vsel %vm3593, %v3855, %v3854
    %v3857 = vsel %vm65, %v3856, 0
    %v3860 = vsel %vm65, %v3839, 0
    %v3863 = vsel %vm65, %v3840, 0
    %v3866 = vsel %vm65, %v3841, 0
    %v3869 = vsel %vm65, %v3842, 0
    %v3872 = vsel %vm65, %v3843, 0
    %v3875 = vsel %vm65, %v3844, 0
    %v3878 = vsel %vm65, %v3845, 0
    %v3881 = vsel %vm65, %v3846, 0
    %3883 = vmatpush.xpose.msra.mxu0 0.0
    %3884 = vmatpush.xpose.msra.mxu0 0.0
    %3885 = vmatpush.xpose.msra.mxu0 0.0
    %3886 = vmatpush.xpose.msra.mxu0 0.0
    %3887 = vmatpush.xpose.msra.mxu0 0.0
    %3888 = vmatpush.xpose.msra.mxu0 0.0
    %3889 = vmatpush.xpose.msra.mxu0 0.0
    %3890 = vmatpush.xpose.msra.mxu0 0.0
    %3891 = vmatpush.xpose.msra.mxu0 %v3881
    %3892 = vmatpush.xpose.msra.mxu0 %v3878
    %3893 = vmatpush.xpose.msra.mxu0 %v3875
    %3894 = vmatpush.xpose.msra.mxu0 %v3872
    %3895 = vmatpush.xpose.msra.mxu0 %v3869
    %3896 = vmatpush.xpose.msra.mxu0 %v3866
    %3897 = vmatpush.xpose.msra.mxu0 %v3863
    %3898 = vmatpush.xpose.msra.mxu0 %v3860
    %3899 = vmatmul.f32.gmra.mxu0 %v3857
    %v3900 = vpop.f32.mrf.mxu0
    %v3901 = vadd.f32 0.0, %v3900
    %3902 = vdwg.mxu0
    %v3903 = vadd.f32 %v3833, %v3901
    %v3904 = vld [vmem:[%s0 + $0x4] sm:$0x1]
    %v3905 = vld [vmem:[%s0 + $0xc] sm:$0x1]
    %v3906 = vld [vmem:[%s0 + $0x14] sm:$0x1]
    %v3907 = vld [vmem:[%s0 + $0x1c] sm:$0x1]
    %s3908 = scalar_lea.vmem %s9, 256
    %v3909 = vld [vmem:[%s3908] sm:$0xff]
    %v3910 = vld [vmem:[%s3908 + $0x8] sm:$0xff]
    %v3911 = vld [vmem:[%s3908 + $0x10] sm:$0xff]
    %v3912 = vld [vmem:[%s3908 + $0x18] sm:$0xff]
    %v3913 = vld [vmem:[%s3908 + $0x20] sm:$0xff]
    %v3914 = vld [vmem:[%s3908 + $0x28] sm:$0xff]
    %v3915 = vld [vmem:[%s3908 + $0x30] sm:$0xff]
    %v3916 = vld [vmem:[%s3908 + $0x38] sm:$0xff]
    %v3921 = vrot.slane %v3905, 7
    %v3922 = vsel %vm3589, %v3921, %v3904
    %v3923 = vrot.slane %v3906, 6
    %v3924 = vsel %vm3591, %v3923, %v3922
    %v3925 = vrot.slane %v3907, 5
    %v3926 = vsel %vm3593, %v3925, %v3924
    %v3927 = vsel %vm65, %v3926, 0
    %v3930 = vsel %vm65, %v3909, 0
    %v3933 = vsel %vm65, %v3910, 0
    %v3936 = vsel %vm65, %v3911, 0
    %v3939 = vsel %vm65, %v3912, 0
    %v3942 = vsel %vm65, %v3913, 0
    %v3945 = vsel %vm65, %v3914, 0
    %v3948 = vsel %vm65, %v3915, 0
    %v3951 = vsel %vm65, %v3916, 0
    %3953 = vmatpush.xpose.msra.mxu0 0.0
    %3954 = vmatpush.xpose.msra.mxu0 0.0
    %3955 = vmatpush.xpose.msra.mxu0 0.0
    %3956 = vmatpush.xpose.msra.mxu0 0.0
    %3957 = vmatpush.xpose.msra.mxu0 0.0
    %3958 = vmatpush.xpose.msra.mxu0 0.0
    %3959 = vmatpush.xpose.msra.mxu0 0.0
    %3960 = vmatpush.xpose.msra.mxu0 0.0
    %3961 = vmatpush.xpose.msra.mxu0 %v3951
    %3962 = vmatpush.xpose.msra.mxu0 %v3948
    %3963 = vmatpush.xpose.msra.mxu0 %v3945
    %3964 = vmatpush.xpose.msra.mxu0 %v3942
    %3965 = vmatpush.xpose.msra.mxu0 %v3939
    %3966 = vmatpush.xpose.msra.mxu0 %v3936
    %3967 = vmatpush.xpose.msra.mxu0 %v3933
    %3968 = vmatpush.xpose.msra.mxu0 %v3930
    %3969 = vmatmul.f32.gmra.mxu0 %v3927
    %v3970 = vpop.f32.mrf.mxu0
    %v3971 = vadd.f32 0.0, %v3970
    %3972 = vdwg.mxu0
    %v3973 = vadd.f32 %v3903, %v3971
    %v3974 = vld [vmem:[%s0 + $0x5] sm:$0x1]
    %v3975 = vld [vmem:[%s0 + $0xd] sm:$0x1]
    %v3976 = vld [vmem:[%s0 + $0x15] sm:$0x1]
    %v3977 = vld [vmem:[%s0 + $0x1d] sm:$0x1]
    %s3978 = scalar_lea.vmem %s9, 320
    %v3979 = vld [vmem:[%s3978] sm:$0xff]
    %v3980 = vld [vmem:[%s3978 + $0x8] sm:$0xff]
    %v3981 = vld [vmem:[%s3978 + $0x10] sm:$0xff]
    %v3982 = vld [vmem:[%s3978 + $0x18] sm:$0xff]
    %v3983 = vld [vmem:[%s3978 + $0x20] sm:$0xff]
    %v3984 = vld [vmem:[%s3978 + $0x28] sm:$0xff]
    %v3985 = vld [vmem:[%s3978 + $0x30] sm:$0xff]
    %v3986 = vld [vmem:[%s3978 + $0x38] sm:$0xff]
    %v3991 = vrot.slane %v3975, 7
    %v3992 = vsel %vm3589, %v3991, %v3974
    %v3993 = vrot.slane %v3976, 6
    %v3994 = vsel %vm3591, %v3993, %v3992
    %v3995 = vrot.slane %v3977, 5
    %v3996 = vsel %vm3593, %v3995, %v3994
    %v3997 = vsel %vm65, %v3996, 0
    %v4000 = vsel %vm65, %v3979, 0
    %v4003 = vsel %vm65, %v3980, 0
    %v4006 = vsel %vm65, %v3981, 0
    %v4009 = vsel %vm65, %v3982, 0
    %v4012 = vsel %vm65, %v3983, 0
    %v4015 = vsel %vm65, %v3984, 0
    %v4018 = vsel %vm65, %v3985, 0
    %v4021 = vsel %vm65, %v3986, 0
    %4023 = vmatpush.xpose.msra.mxu0 0.0
    %4024 = vmatpush.xpose.msra.mxu0 0.0
    %4025 = vmatpush.xpose.msra.mxu0 0.0
    %4026 = vmatpush.xpose.msra.mxu0 0.0
    %4027 = vmatpush.xpose.msra.mxu0 0.0
    %4028 = vmatpush.xpose.msra.mxu0 0.0
    %4029 = vmatpush.xpose.msra.mxu0 0.0
    %4030 = vmatpush.xpose.msra.mxu0 0.0
    %4031 = vmatpush.xpose.msra.mxu0 %v4021
    %4032 = vmatpush.xpose.msra.mxu0 %v4018
    %4033 = vmatpush.xpose.msra.mxu0 %v4015
    %4034 = vmatpush.xpose.msra.mxu0 %v4012
    %4035 = vmatpush.xpose.msra.mxu0 %v4009
    %4036 = vmatpush.xpose.msra.mxu0 %v4006
    %4037 = vmatpush.xpose.msra.mxu0 %v4003
    %4038 = vmatpush.xpose.msra.mxu0 %v4000
    %4039 = vmatmul.f32.gmra.mxu0 %v3997
    %v4040 = vpop.f32.mrf.mxu0
    %v4041 = vadd.f32 0.0, %v4040
    %4042 = vdwg.mxu0
    %v4043 = vadd.f32 %v3973, %v4041
    %v4044 = vld [vmem:[%s0 + $0x6] sm:$0x1]
    %v4045 = vld [vmem:[%s0 + $0xe] sm:$0x1]
    %v4046 = vld [vmem:[%s0 + $0x16] sm:$0x1]
    %v4047 = vld [vmem:[%s0 + $0x1e] sm:$0x1]
    %s4048 = scalar_lea.vmem %s9, 384
    %v4049 = vld [vmem:[%s4048] sm:$0xff]
    %v4050 = vld [vmem:[%s4048 + $0x8] sm:$0xff]
    %v4051 = vld [vmem:[%s4048 + $0x10] sm:$0xff]
    %v4052 = vld [vmem:[%s4048 + $0x18] sm:$0xff]
    %v4053 = vld [vmem:[%s4048 + $0x20] sm:$0xff]
    %v4054 = vld [vmem:[%s4048 + $0x28] sm:$0xff]
    %v4055 = vld [vmem:[%s4048 + $0x30] sm:$0xff]
    %v4056 = vld [vmem:[%s4048 + $0x38] sm:$0xff]
    %v4061 = vrot.slane %v4045, 7
    %v4062 = vsel %vm3589, %v4061, %v4044
    %v4063 = vrot.slane %v4046, 6
    %v4064 = vsel %vm3591, %v4063, %v4062
    %v4065 = vrot.slane %v4047, 5
    %v4066 = vsel %vm3593, %v4065, %v4064
    %v4067 = vsel %vm65, %v4066, 0
    %v4070 = vsel %vm65, %v4049, 0
    %v4073 = vsel %vm65, %v4050, 0
    %v4076 = vsel %vm65, %v4051, 0
    %v4079 = vsel %vm65, %v4052, 0
    %v4082 = vsel %vm65, %v4053, 0
    %v4085 = vsel %vm65, %v4054, 0
    %v4088 = vsel %vm65, %v4055, 0
    %v4091 = vsel %vm65, %v4056, 0
    %4093 = vmatpush.xpose.msra.mxu0 0.0
    %4094 = vmatpush.xpose.msra.mxu0 0.0
    %4095 = vmatpush.xpose.msra.mxu0 0.0
    %4096 = vmatpush.xpose.msra.mxu0 0.0
    %4097 = vmatpush.xpose.msra.mxu0 0.0
    %4098 = vmatpush.xpose.msra.mxu0 0.0
    %4099 = vmatpush.xpose.msra.mxu0 0.0
    %4100 = vmatpush.xpose.msra.mxu0 0.0
    %4101 = vmatpush.xpose.msra.mxu0 %v4091
    %4102 = vmatpush.xpose.msra.mxu0 %v4088
    %4103 = vmatpush.xpose.msra.mxu0 %v4085
    %4104 = vmatpush.xpose.msra.mxu0 %v4082
    %4105 = vmatpush.xpose.msra.mxu0 %v4079
    %4106 = vmatpush.xpose.msra.mxu0 %v4076
    %4107 = vmatpush.xpose.msra.mxu0 %v4073
    %4108 = vmatpush.xpose.msra.mxu0 %v4070
    %4109 = vmatmul.f32.gmra.mxu0 %v4067
    %v4110 = vpop.f32.mrf.mxu0
    %v4111 = vadd.f32 0.0, %v4110
    %4112 = vdwg.mxu0
    %v4113 = vadd.f32 %v4043, %v4111
    %v4114 = vld [vmem:[%s0 + $0x7] sm:$0x1]
    %v4115 = vld [vmem:[%s0 + $0xf] sm:$0x1]
    %v4116 = vld [vmem:[%s0 + $0x17] sm:$0x1]
    %v4117 = vld [vmem:[%s0 + $0x1f] sm:$0x1]
    %s4118 = scalar_lea.vmem %s9, 448
    %v4119 = vld [vmem:[%s4118] sm:$0xff]
    %v4120 = vld [vmem:[%s4118 + $0x8] sm:$0xff]
    %v4121 = vld [vmem:[%s4118 + $0x10] sm:$0xff]
    %v4122 = vld [vmem:[%s4118 + $0x18] sm:$0xff]
    %v4123 = vld [vmem:[%s4118 + $0x20] sm:$0xff]
    %v4124 = vld [vmem:[%s4118 + $0x28] sm:$0xff]
    %v4125 = vld [vmem:[%s4118 + $0x30] sm:$0xff]
    %v4126 = vld [vmem:[%s4118 + $0x38] sm:$0xff]
    %v4131 = vrot.slane %v4115, 7
    %v4132 = vsel %vm3589, %v4131, %v4114
    %v4133 = vrot.slane %v4116, 6
    %v4134 = vsel %vm3591, %v4133, %v4132
    %v4135 = vrot.slane %v4117, 5
    %v4136 = vsel %vm3593, %v4135, %v4134
    %v4137 = vsel %vm65, %v4136, 0
    %v4140 = vsel %vm65, %v4119, 0
    %v4143 = vsel %vm65, %v4120, 0
    %v4146 = vsel %vm65, %v4121, 0
    %v4149 = vsel %vm65, %v4122, 0
    %v4152 = vsel %vm65, %v4123, 0
    %v4155 = vsel %vm65, %v4124, 0
    %v4158 = vsel %vm65, %v4125, 0
    %v4161 = vsel %vm65, %v4126, 0
    %4163 = vmatpush.xpose.msra.mxu0 0.0
    %4164 = vmatpush.xpose.msra.mxu0 0.0
    %4165 = vmatpush.xpose.msra.mxu0 0.0
    %4166 = vmatpush.xpose.msra.mxu0 0.0
    %4167 = vmatpush.xpose.msra.mxu0 0.0
    %4168 = vmatpush.xpose.msra.mxu0 0.0
    %4169 = vmatpush.xpose.msra.mxu0 0.0
    %4170 = vmatpush.xpose.msra.mxu0 0.0
    %4171 = vmatpush.xpose.msra.mxu0 %v4161
    %4172 = vmatpush.xpose.msra.mxu0 %v4158
    %4173 = vmatpush.xpose.msra.mxu0 %v4155
    %4174 = vmatpush.xpose.msra.mxu0 %v4152
    %4175 = vmatpush.xpose.msra.mxu0 %v4149
    %4176 = vmatpush.xpose.msra.mxu0 %v4146
    %4177 = vmatpush.xpose.msra.mxu0 %v4143
    %4178 = vmatpush.xpose.msra.mxu0 %v4140
    %4179 = vmatmul.f32.gmra.mxu0 %v4137
    %v4180 = vpop.f32.mrf.mxu0
    %v4181 = vadd.f32 0.0, %v4180
    %4182 = vdwg.mxu0
    %v4183 = vadd.f32 %v4113, %v4181
    %v4184 = vmax.f32 %v4183, 0.0
    %v4185 = vld [vmem:[%s11] sm:$0xff]
    %v4186 = vld [vmem:[%s11 + $0x8] sm:$0xff]
    %v4187 = vld [vmem:[%s11 + $0x10] sm:$0xff]
    %v4188 = vld [vmem:[%s11 + $0x18] sm:$0xff]
    %v4189 = vld [vmem:[%s12] sm:$0x1]
    %v4191 = vperm.slane %v4189, 0
    %vm4193 = vcmask 523264
    %v4195 = vsel %vm4193, %v4184, 0
    %v4198 = vsel %vm4193, %v4185, 0
    %v4201 = vsel %vm4193, %v4186, 0
    %v4204 = vsel %vm4193, %v4187, 0
    %v4207 = vsel %vm4193, %v4188, 0
    %4209 = vmatpush.xpose.msra.mxu0 0.0
    %4210 = vmatpush.xpose.msra.mxu0 0.0
    %4211 = vmatpush.xpose.msra.mxu0 0.0
    %4212 = vmatpush.xpose.msra.mxu0 0.0
    %4213 = vmatpush.xpose.msra.mxu0 0.0
    %4214 = vmatpush.xpose.msra.mxu0 0.0
    %4215 = vmatpush.xpose.msra.mxu0 0.0
    %4216 = vmatpush.xpose.msra.mxu0 0.0
    %4217 = vmatpush.xpose.msra.mxu0 0.0
    %4218 = vmatpush.xpose.msra.mxu0 0.0
    %4219 = vmatpush.xpose.msra.mxu0 0.0
    %4220 = vmatpush.xpose.msra.mxu0 0.0
    %4221 = vmatpush.xpose.msra.mxu0 %v4207
    %4222 = vmatpush.xpose.msra.mxu0 %v4204
    %4223 = vmatpush.xpose.msra.mxu0 %v4201
    %4224 = vmatpush.xpose.msra.mxu0 %v4198
    %4225 = vmatmul.f32.gmra.mxu0 %v4195
    %v4226 = vpop.f32.mrf.mxu0
    %v4227 = vadd.f32 %v4191, %v4226
    %4228 = vdwg.mxu0
    %v4229 = vmax.f32 %v4227, 0.0
    %v4230 = vld [vmem:[%s13] sm:$0x1]
    %v4232 = vsel %vm125, %v4230, 0
    %v4235 = vsel %vm125, %v4229, 0
    %4237 = vmatpush.xpose.msra.mxu0 0.0
    %4238 = vmatpush.xpose.msra.mxu0 0.0
    %4239 = vmatpush.xpose.msra.mxu0 0.0
    %4240 = vmatpush.xpose.msra.mxu0 0.0
    %4241 = vmatpush.xpose.msra.mxu0 0.0
    %4242 = vmatpush.xpose.msra.mxu0 0.0
    %4243 = vmatpush.xpose.msra.mxu0 0.0
    %4244 = vmatpush.xpose.msra.mxu0 0.0
    %4245 = vmatpush.xpose.msra.mxu0 0.0
    %4246 = vmatpush.xpose.msra.mxu0 0.0
    %4247 = vmatpush.xpose.msra.mxu0 0.0
    %4248 = vmatpush.xpose.msra.mxu0 0.0
    %4249 = vmatpush.xpose.msra.mxu0 0.0
    %4250 = vmatpush.xpose.msra.mxu0 0.0
    %4251 = vmatpush.xpose.msra.mxu0 0.0
    %4252 = vmatpush.xpose.msra.mxu0 %v4235
    %4253 = vmatmul.f32.gmra.mxu0 %v4232
    %v4254 = vpop.f32.mrf.mxu0
    %v4255 = vadd.f32 0.0, %v4254
    %4256 = vdwg.mxu0
    %v4258 = vsel %vm248, %v3620, 0
    %4260 = vmatpush.xpose.msra.mxu0 0.0
    %4261 = vmatpush.xpose.msra.mxu0 0.0
    %4262 = vmatpush.xpose.msra.mxu0 0.0
    %4263 = vmatpush.xpose.msra.mxu0 0.0
    %4264 = vmatpush.xpose.msra.mxu0 0.0
    %4265 = vmatpush.xpose.msra.mxu0 0.0
    %4266 = vmatpush.xpose.msra.mxu0 0.0
    %4267 = vmatpush.xpose.msra.mxu0 0.0
    %4268 = vmatpush.xpose.msra.mxu0 0.0
    %4269 = vmatpush.xpose.msra.mxu0 0.0
    %4270 = vmatpush.xpose.msra.mxu0 0.0
    %4271 = vmatpush.xpose.msra.mxu0 0.0
    %4272 = vmatpush.xpose.msra.mxu0 0.0
    %4273 = vmatpush.xpose.msra.mxu0 0.0
    %4274 = vmatpush.xpose.msra.mxu0 0.0
    %4275 = vmatpush.xpose.msra.mxu0 %v4258
    %4276 = vmatmul.f32.gmra.mxu0 %v3596
    %v4277 = vpop.f32.mrf.mxu0
    %v4278 = vadd.f32 %v3618, %v4277
    %4279 = vdwg.mxu0
    %v4280 = vadd.f32 %v4278, %v4255
    %v4281 = vld [vmem:[#allocation2] sm:$0x1]
    %4283 = vset.pattern.permute.xlu0 0
    %4284 = vperm.xlu0 %4283, %v4281
    %v4285 = vpop.permute.xlu0 %4284
    %v4287 = vperm.slane %v4285, 0
    %v4288 = vadd.f32 %v4280, %v4287
    %v4289 = vand.u32 2147483647, %v4288
    %v4290 = vsub.f32 0.0, %v4289
    %v4291 = vmul.f32 %v4290, 1.442695
    %v4292 = vpow.pop %v4291
    %v4293 = vadd.f32 %v4292, 1.0
    %v4294 = vrcp.pop %v4293
    %v4295 = vmul.f32 %v4293, %v4294
    %v4296 = vsub.f32 1.0, %v4295
    %v4297 = vmul.f32 %v4294, %v4296
    %v4298 = vadd.f32 %v4294, %v4297
    %vm4299 = vweird.f32 %v4293
    %vm4300 = vweird.f32 %v4294
    %vm4301 = vmor %vm4299, %vm4300
    %v4302 = vsel %vm4301, %v4294, %v4298
    %v4303 = vand.u32 2147483647, %v4293
    %vm4304 = vcmp.eq.f32.partialorder %v4303, 8.507059e+37
    %v4305 = vand.u32 %v4293, 2147483648
    %v4306 = vor.u32 1.1754944e-38, %v4305
    %v4307 = vsel %vm4304, %v4306, %v4302
    %v4308 = vmul.f32 1.0, %v4307
    %vm4309 = vcmp.ge.f32.partialorder %v4288, 0.0
    %v4310 = vsub.f32 1.0, %v4308
    %v4311 = vsel %vm4309, %v4308, %v4310
    %vm4312 = vcmask 24576
    %4313 = vst.msk [vmem:[#allocation3] sm:$0x1] %vm4312, %v4311
    // Predicated region
    $region62: #{tpu_custom_call.1} parent=1 // pred_check
      _
    $region63: #{tpu_custom_call.1} parent=1 // pred_check_branch
      %4315 = sbr.rel (0) target = $region65
    $region64: #{tpu_custom_call.1} parent=1 // pred_region
      %4317 = vsyncadd [#allocation4], 0
      %s4319 = sshll.u32 [#allocation3], 4
      %s4320 = int_to_ptr.vmem [resolvable:$true] %s4319
      %s4321 = sshll.u32 %s15, 4
      %s4322 = int_to_ptr.hbm [resolvable:$true] %s4321
      %4324 = dma.vmem_to_hbm [thread:$0]  %s4320, 16, %s4322, [#allocation4]
    $region65: #{tpu_custom_call.1} parent=1 // pred_fallthru
      _
    // Predicated region
    $region66: #{tpu_custom_call.1} parent=1 // pred_check
      _
    $region67: #{tpu_custom_call.1} parent=1 // pred_check_branch
      %4326 = sbr.rel (0) target = $region69
    $region68: #{tpu_custom_call.1} parent=1 // pred_region
      %4328 = dma.done [#allocation4], 16
    $region69: #{tpu_custom_call.1} parent=1 // pred_fallthru
      _
    %4329 = vsyncpa [#allocation4], 1

</llo_original>
